<compile_context>
chip_gen: v5e
topology: v5e:2x2
jax: 0.10.0
libtpu: 0.0.40
codegen_flags: <defaults>
</compile_context>

<pallas_src>
import jax
import jax.numpy as jnp
from jax.experimental import pallas as pl
from jax.experimental.pallas import tpu as pltpu


# ------------------------------- kernel --------------------------------------

def _layernorm_f32(x, g, b, eps=1e-5):
    """Fused single-pass LayerNorm (sum & sum-of-squares). x: (R, D) f32."""
    # TODO(synk): E[x^2]-E[x]^2 in f32 can lose precision when |mean| >> std;
    # switch to a two-pass form if parity tests at real activation scales fail.
    d = x.shape[-1]
    s1 = jnp.sum(x, axis=-1, keepdims=True)
    s2 = jnp.sum(x * x, axis=-1, keepdims=True)
    mu = s1 * (1.0 / d)
    var = s2 * (1.0 / d) - mu * mu
    return (x - mu) * jax.lax.rsqrt(var + eps) * g + b


def vit_block_kernel(x_ref,
                     ln1_g, ln1_b, wq, bq, wkv, bkv, wo, bo,
                     ln2_g, ln2_b, w1, b1, w2, b2,
                     o_ref, k_scr, v_scr, q_scr, ctx_scr):
    nh, n_kv, hd = k_scr.shape              # heads, seq len, head dim
    d_model = x_ref.shape[-1]
    tq = o_ref.shape[1]
    qi = pl.program_id(1)

    # ---- K/V for the whole sequence, once per batch (qi == 0) ---------------
    @pl.when(qi == 0)
    def _compute_kv():
        xf = x_ref[0].astype(jnp.float32)                          # (N, D)
        hf = _layernorm_f32(xf, ln1_g[...], ln1_b[...]).astype(jnp.bfloat16)
        # Wide projection: one (N, D) @ (D, 2D) matmul (full MXU output width).
        kv = (jnp.dot(hf, wkv[...], preferred_element_type=jnp.float32)
              + bkv[...]).astype(jnp.bfloat16)                     # (N, 2D)
        # Head split via static lane slices (transpose-free).
        # TODO(synk): for hd < 128, pack two heads per 128-lane group to avoid
        # lane padding of the K/V scratch on real (hd=64) shapes.
        for h in range(nh):
            k_scr[h] = kv[:, h * hd:(h + 1) * hd]
            v_scr[h] = kv[:, d_model + h * hd:d_model + (h + 1) * hd]

    # ---- per-query-tile attention (heads batched) ----------------------------
    row0 = pl.multiple_of(qi * tq, tq)
    x_t = x_ref[0, pl.ds(row0, tq), :].astype(jnp.float32)         # (tq, D)

    h1 = _layernorm_f32(x_t, ln1_g[...], ln1_b[...]).astype(jnp.bfloat16)
    # Wide Q projection; 1/sqrt(hd) already folded into wq / bq on the host.
    qw = (jnp.dot(h1, wq[...], preferred_element_type=jnp.float32)
          + bq[...]).astype(jnp.bfloat16)                          # (tq, D)
    for h in range(nh):                                            # head split
        q_scr[h] = qw[:, h * hd:(h + 1) * hd]

    # TODO(synk): for very long sequences (N >= 1k) add a KV-chunk loop with
    # online softmax so the live temp is (nh, tq, kv_tile) instead of (nh, tq, N).
    s = jnp.einsum("hqe,hne->hqn", q_scr[...], k_scr[...],
                   preferred_element_type=jnp.float32)             # (nh, tq, N)
    m = jnp.max(s, axis=-1, keepdims=True)
    p = jnp.exp(s - m)                                             # unnormalized
    l = jnp.sum(p, axis=-1, keepdims=True)                         # (nh, tq, 1)

    ctx = jnp.einsum("hqn,hne->hqe", p.astype(jnp.bfloat16), v_scr[...],
                     preferred_element_type=jnp.float32)           # (nh, tq, hd)
    # Deferred softmax normalization (scales hd, not N, columns).
    ctx = (ctx * pl.reciprocal(l, approx=True)).astype(jnp.bfloat16)

    # Repack heads lane-dense -> (tq, D), then one deep output projection.
    for h in range(nh):
        ctx_scr[:, h * hd:(h + 1) * hd] = ctx[h]
    attn = jnp.dot(ctx_scr[...], wo[...],
                   preferred_element_type=jnp.float32) + bo[...]   # (tq, D)

    x1 = x_t + attn                                                # residual 1 (f32)

    # ---- MLP (pre-LN) --------------------------------------------------------
    h2 = _layernorm_f32(x1, ln2_g[...], ln2_b[...]).astype(jnp.bfloat16)
    hm = jnp.dot(h2, w1[...], preferred_element_type=jnp.float32) + b1[...]
    # TODO(synk): timm ViT uses exact erf GELU; tanh approximation used here (EUP path).
    hm = jax.nn.gelu(hm, approximate=True).astype(jnp.bfloat16)
    y = jnp.dot(hm, w2[...], preferred_element_type=jnp.float32) + b2[...]

    o_ref[0] = (x1 + y).astype(o_ref.dtype)                        # residual 2


# ------------------------------- wrapper --------------------------------------

PARAM_ORDER = ("ln1_g", "ln1_b", "wq", "bq", "wkv", "bkv", "wo", "bo",
               "ln2_g", "ln2_b", "w1", "b1", "w2", "b2")


def _pack_block_params(params, num_heads):
    """Host-side prep: fold attn scale into wq/bq, pack K|V weights, cast to bf16."""
    D = params["wo"].shape[0]
    hd = D // num_heads
    scale = 1.0 / float(hd) ** 0.5
    wqkv = params["wqkv"].astype(jnp.float32)               # (D, 3D) = [Q | K | V]
    bqkv = params["bqkv"].reshape(-1).astype(jnp.float32)

    wdt = jnp.bfloat16
    return dict(
        ln1_g=params["ln1_g"].reshape(1, D).astype(jnp.float32),
        ln1_b=params["ln1_b"].reshape(1, D).astype(jnp.float32),
        wq=(wqkv[:, :D] * scale).astype(wdt),                # (D, D), scale folded
        bq=(bqkv[:D] * scale).reshape(1, D).astype(jnp.float32),
        wkv=wqkv[:, D:].astype(wdt),                         # (D, 2D) = [K | V]
        bkv=bqkv[D:].reshape(1, 2 * D).astype(jnp.float32),
        wo=params["wo"].astype(wdt),                         # (D, D)
        bo=params["bo"].reshape(1, D).astype(jnp.float32),
        ln2_g=params["ln2_g"].reshape(1, D).astype(jnp.float32),
        ln2_b=params["ln2_b"].reshape(1, D).astype(jnp.float32),
        w1=params["w1"].astype(wdt),
        b1=params["b1"].reshape(1, -1).astype(jnp.float32),
        w2=params["w2"].astype(wdt),
        b2=params["b2"].reshape(1, D).astype(jnp.float32),
    )


def _pad128(v):
    return ((v + 127) // 128) * 128


def null_vit_block_wrapper(x, average_language_embedding, params, *,
                           num_heads, q_tile=None, single_buffer_weights=True):
    """Equivalent of NullVisionTransformerBlockWrapper.forward.

    average_language_embedding is accepted and ignored (null wrapper semantics).
    """
    del average_language_embedding  # unused by the null wrapper
    B, N, D = x.shape
    assert D % num_heads == 0
    hd = D // num_heads
    if q_tile is None:
        q_tile = N
        for cand in (256, 128, 64, 32, 16, 8):   # v6e/v7x: prefer 256 when it fits
            if N % cand == 0:
                q_tile = cand
                break
    assert N % q_tile == 0 and (q_tile % 8 == 0 or q_tile == N)
    # TODO(synk): typical ViT token counts (e.g. 197) need padding + softmax
    # masking of padded KV positions; not implemented here.

    packed = _pack_block_params(params, num_heads)
    plist = [packed[k] for k in PARAM_ORDER]

    def const_spec(p):
        idx = (lambda b, qi, _nd=p.ndim: (0,) * _nd)
        if single_buffer_weights:
            # Grid-invariant weight blocks: no point double-buffering them.
            return pl.BlockSpec(p.shape, idx, pipeline_mode=pl.Buffered(1))
        return pl.BlockSpec(p.shape, idx)

    # Full-sequence block, resident per batch; the query tile is sliced from it
    # inside the kernel (x is passed once).
    # TODO(synk): on v7x, consider Buffered(1) here too once the batch-boundary
    # re-fetch hazard is verified; kept double-buffered for safety.
    x_spec = pl.BlockSpec((1, N, D), lambda b, qi: (b, 0, 0))
    in_specs = [x_spec] + [const_spec(p) for p in plist]
    out_spec = pl.BlockSpec((1, q_tile, D), lambda b, qi: (b, qi, 0))

    # ---- VMEM budget (bytes), accounting for 128-lane padding of hd buffers --
    mib = 1024 * 1024
    hd_pad, d_pad, n_pad = _pad128(hd), _pad128(D), _pad128(N)
    weight_bytes = sum(int(p.size) * p.dtype.itemsize for p in plist)
    weight_bytes *= (1 if single_buffer_weights else 2)
    kv_scratch = 2 * num_heads * N * hd_pad * 2
    q_scratch = num_heads * q_tile * hd_pad * 2
    ctx_scratch = q_tile * d_pad * 2
    x_block = 2 * N * d_pad * x.dtype.itemsize
    out_block = 2 * q_tile * d_pad * x.dtype.itemsize
    # live in-kernel temps: scores/exp (nh, tq, N) f32+bf16, K/V projection f32
    temps = num_heads * q_tile * n_pad * (4 + 2) + 4 * N * _pad128(2 * D)
    est = (weight_bytes + kv_scratch + q_scratch + ctx_scratch
           + x_block + out_block + temps)
    try:
        cap = int(pltpu.get_tpu_info().vmem_capacity_bytes)
    except Exception:
        cap = 128 * mib
    vmem_limit = max(32 * mib, min(int(1.4 * est), int(0.8 * cap)))

    return pl.pallas_call(
        vit_block_kernel,
        out_shape=jax.ShapeDtypeStruct((B, N, D), x.dtype),
        grid_spec=pltpu.PrefetchScalarGridSpec(
            num_scalar_prefetch=0,
            grid=(B, N // q_tile),
            in_specs=in_specs,
            out_specs=out_spec,
            scratch_shapes=[
                pltpu.VMEM((num_heads, N, hd), jnp.bfloat16),       # K (head-split)
                pltpu.VMEM((num_heads, N, hd), jnp.bfloat16),       # V (head-split)
                pltpu.VMEM((num_heads, q_tile, hd), jnp.bfloat16),  # Q (head-split)
                pltpu.VMEM((q_tile, D), jnp.bfloat16),              # ctx repack
            ],
        ),
        # TODO(synk): on v7x with B < 2 only one TensorCore is used; precompute
        # K/V in a separate call (or a leading parallel axis) to parallelize qi.
        compiler_params=pltpu.CompilerParams(
            dimension_semantics=("parallel", "arbitrary"),
            vmem_limit_bytes=vmem_limit,
        ),
    )(x, *plist)


# ----------------------- pure-JAX reference (for checking) --------------------

def _ref_block_single(x, p, num_heads):
    D = x.shape[-1]
    hd = D // num_heads
    scale = 1.0 / float(hd) ** 0.5

    def ln(x, g, b, eps=1e-5):
        mu = jnp.mean(x, -1, keepdims=True)
        var = jnp.mean((x - mu) ** 2, -1, keepdims=True)
        return (x - mu) * jax.lax.rsqrt(var + eps) * g + b

    h = ln(x, p["ln1_g"], p["ln1_b"])
    qkv = h @ p["wqkv"] + p["bqkv"]
    q, k, v = qkv[:, :D], qkv[:, D:2 * D], qkv[:, 2 * D:]
    q = q.reshape(-1, num_heads, hd).transpose(1, 0, 2) * scale
    k = k.reshape(-1, num_heads, hd).transpose(1, 0, 2)
    v = v.reshape(-1, num_heads, hd).transpose(1, 0, 2)
    s = jnp.einsum("hqe,hke->hqk", q, k)
    pr = jax.nn.softmax(s, axis=-1)
    ctx = jnp.einsum("hqk,hke->hqe", pr, v)
    ctx = ctx.transpose(1, 0, 2).reshape(-1, D)
    attn = ctx @ p["wo"] + p["bo"]
    x = x + attn
    h = ln(x, p["ln2_g"], p["ln2_b"])
    h = jax.nn.gelu(h @ p["w1"] + p["b1"], approximate=True) @ p["w2"] + p["b2"]
    return x + h


# ----------------------------------- main --------------------------------------

if __name__ == "__main__":
    B, N, D = 2, 16, 32          # batch, tokens, embed dim (small test shapes)
    NUM_HEADS = 4
    H = 4 * D                    # mlp hidden

    key = jax.random.PRNGKey(0)
    ks = jax.random.split(key, 8)

    x = jax.random.normal(ks[0], (B, N, D), jnp.float32) * 0.1
    avg_lang_emb = jax.random.normal(ks[1], (B, D), jnp.float32)  # ignored

    w_scale = 0.05
    params = {
        "ln1_g": jnp.ones((D,), jnp.float32),
        "ln1_b": jnp.zeros((D,), jnp.float32),
        "wqkv": jax.random.normal(ks[2], (D, 3 * D), jnp.float32) * w_scale,
        "bqkv": jnp.zeros((3 * D,), jnp.float32),
        "wo": jax.random.normal(ks[3], (D, D), jnp.float32) * w_scale,
        "bo": jnp.zeros((D,), jnp.float32),
        "ln2_g": jnp.ones((D,), jnp.float32),
        "ln2_b": jnp.zeros((D,), jnp.float32),
        "w1": jax.random.normal(ks[4], (D, H), jnp.float32) * w_scale,
        "b1": jnp.zeros((H,), jnp.float32),
        "w2": jax.random.normal(ks[5], (H, D), jnp.float32) * w_scale,
        "b2": jnp.zeros((D,), jnp.float32),
    }

    try:
        out = null_vit_block_wrapper(x, avg_lang_emb, params,
                                     num_heads=NUM_HEADS, q_tile=8,
                                     single_buffer_weights=True)
        out = jax.block_until_ready(out)
    except Exception:
        # Fallback if this JAX build rejects pipeline_mode=pl.Buffered(1).
        out = null_vit_block_wrapper(x, avg_lang_emb, params,
                                     num_heads=NUM_HEADS, q_tile=8,
                                     single_buffer_weights=False)
        out = jax.block_until_ready(out)

    # reference (pure f32 JAX) — the null wrapper ignores avg_lang_emb
    ref = jax.vmap(lambda xb: _ref_block_single(xb, params, NUM_HEADS))(x)

    assert out.shape == (B, N, D)
    assert bool(jnp.all(jnp.isfinite(out)))
    err = float(jnp.max(jnp.abs(out - ref)))
    assert err < 2e-2, f"max abs diff {err}"

    print("KERNEL_OK")
</pallas_src>

<mosaic_0001>
module attributes {stable_mosaic.version = 11 : i64} {
  func.func @vit_block_kernel(%arg0: i32, %arg1: i32, %arg2: memref<1x16x32xf32, #tpu.memory_space<vmem>>, %arg3: memref<1x32xf32, #tpu.memory_space<vmem>>, %arg4: memref<1x32xf32, #tpu.memory_space<vmem>>, %arg5: memref<32x32xbf16, #tpu.memory_space<vmem>>, %arg6: memref<1x32xf32, #tpu.memory_space<vmem>>, %arg7: memref<32x64xbf16, #tpu.memory_space<vmem>>, %arg8: memref<1x64xf32, #tpu.memory_space<vmem>>, %arg9: memref<32x32xbf16, #tpu.memory_space<vmem>>, %arg10: memref<1x32xf32, #tpu.memory_space<vmem>>, %arg11: memref<1x32xf32, #tpu.memory_space<vmem>>, %arg12: memref<1x32xf32, #tpu.memory_space<vmem>>, %arg13: memref<32x128xbf16, #tpu.memory_space<vmem>>, %arg14: memref<1x128xf32, #tpu.memory_space<vmem>>, %arg15: memref<128x32xbf16, #tpu.memory_space<vmem>>, %arg16: memref<1x32xf32, #tpu.memory_space<vmem>>, %arg17: memref<1x8x32xf32, #tpu.memory_space<vmem>>, %arg18: memref<4x16x8xbf16, #tpu.memory_space<vmem>>, %arg19: memref<4x16x8xbf16, #tpu.memory_space<vmem>>, %arg20: memref<4x8x8xbf16, #tpu.memory_space<vmem>>, %arg21: memref<8x32xbf16, #tpu.memory_space<vmem>>) attributes {dimension_semantics = [#tpu.dimension_semantics<parallel>, #tpu.dimension_semantics<arbitrary>], iteration_bounds = array<i64: 2, 2>, scalar_prefetch = 0 : i64, scratch_operands = 4 : i64, tpu.core_type = #tpu.core_type<tc>, window_params = [{transform_indices = @transform_0, window_bounds = array<i64: 1, 16, 32>}, {pipeline_mode = #tpu.pipeline_mode<synchronous>, transform_indices = @transform_1, window_bounds = array<i64: 1, 32>}, {pipeline_mode = #tpu.pipeline_mode<synchronous>, transform_indices = @transform_2, window_bounds = array<i64: 1, 32>}, {pipeline_mode = #tpu.pipeline_mode<synchronous>, transform_indices = @transform_3, window_bounds = array<i64: 32, 32>}, {pipeline_mode = #tpu.pipeline_mode<synchronous>, transform_indices = @transform_4, window_bounds = array<i64: 1, 32>}, {pipeline_mode = #tpu.pipeline_mode<synchronous>, transform_indices = @transform_5, window_bounds = array<i64: 32, 64>}, {pipeline_mode = #tpu.pipeline_mode<synchronous>, transform_indices = @transform_6, window_bounds = array<i64: 1, 64>}, {pipeline_mode = #tpu.pipeline_mode<synchronous>, transform_indices = @transform_7, window_bounds = array<i64: 32, 32>}, {pipeline_mode = #tpu.pipeline_mode<synchronous>, transform_indices = @transform_8, window_bounds = array<i64: 1, 32>}, {pipeline_mode = #tpu.pipeline_mode<synchronous>, transform_indices = @transform_9, window_bounds = array<i64: 1, 32>}, {pipeline_mode = #tpu.pipeline_mode<synchronous>, transform_indices = @transform_10, window_bounds = array<i64: 1, 32>}, {pipeline_mode = #tpu.pipeline_mode<synchronous>, transform_indices = @transform_11, window_bounds = array<i64: 32, 128>}, {pipeline_mode = #tpu.pipeline_mode<synchronous>, transform_indices = @transform_12, window_bounds = array<i64: 1, 128>}, {pipeline_mode = #tpu.pipeline_mode<synchronous>, transform_indices = @transform_13, window_bounds = array<i64: 128, 32>}, {pipeline_mode = #tpu.pipeline_mode<synchronous>, transform_indices = @transform_14, window_bounds = array<i64: 1, 32>}, {transform_indices = @transform_15, window_bounds = array<i64: 1, 8, 32>}]} {
    %c0_i32 = arith.constant 0 : i32
    %0 = arith.cmpi eq, %arg1, %c0_i32 : i32
    %1 = arith.extui %0 : i1 to i32
    %c0_i32_0 = arith.constant 0 : i32
    %2 = arith.cmpi ne, %1, %c0_i32_0 : i32
    scf.if %2 {
      %c0_75 = arith.constant 0 : index
      %c0_76 = arith.constant 0 : index
      %c0_77 = arith.constant 0 : index
      %144 = vector.load %arg2[%c0_75, %c0_76, %c0_77] : memref<1x16x32xf32, #tpu.memory_space<vmem>>, vector<1x16x32xf32>
      %145 = vector.shape_cast %144 : vector<1x16x32xf32> to vector<16x32xf32>
      %c0_78 = arith.constant 0 : index
      %c0_79 = arith.constant 0 : index
      %146 = vector.load %arg3[%c0_78, %c0_79] : memref<1x32xf32, #tpu.memory_space<vmem>>, vector<1x32xf32>
      %c0_80 = arith.constant 0 : index
      %c0_81 = arith.constant 0 : index
      %147 = vector.load %arg4[%c0_80, %c0_81] : memref<1x32xf32, #tpu.memory_space<vmem>>, vector<1x32xf32>
      %cst_82 = arith.constant dense<0.000000e+00> : vector<16xf32>
      %148 = vector.multi_reduction <add>, %145, %cst_82 [1] : vector<16x32xf32> to vector<16xf32>
      %149 = vector.shape_cast %148 : vector<16xf32> to vector<16x1xf32>
      %150 = arith.mulf %145, %145 : vector<16x32xf32>
      %cst_83 = arith.constant dense<0.000000e+00> : vector<16xf32>
      %151 = vector.multi_reduction <add>, %150, %cst_83 [1] : vector<16x32xf32> to vector<16xf32>
      %152 = vector.shape_cast %151 : vector<16xf32> to vector<16x1xf32>
      %cst_84 = arith.constant 3.125000e-02 : f32
      %153 = vector.broadcast %cst_84 : f32 to vector<16x1xf32>
      %154 = arith.mulf %149, %153 : vector<16x1xf32>
      %cst_85 = arith.constant 3.125000e-02 : f32
      %155 = vector.broadcast %cst_85 : f32 to vector<16x1xf32>
      %156 = arith.mulf %152, %155 : vector<16x1xf32>
      %157 = arith.mulf %154, %154 : vector<16x1xf32>
      %158 = arith.subf %156, %157 : vector<16x1xf32>
      %159 = vector.broadcast %154 : vector<16x1xf32> to vector<16x32xf32>
      %160 = arith.subf %145, %159 : vector<16x32xf32>
      %cst_86 = arith.constant 9.99999974E-6 : f32
      %161 = vector.broadcast %cst_86 : f32 to vector<16x1xf32>
      %162 = arith.addf %158, %161 : vector<16x1xf32>
      %163 = math.rsqrt %162 : vector<16x1xf32>
      %164 = vector.broadcast %163 : vector<16x1xf32> to vector<16x32xf32>
      %165 = arith.mulf %160, %164 : vector<16x32xf32>
      %166 = vector.broadcast %146 : vector<1x32xf32> to vector<16x32xf32>
      %167 = arith.mulf %165, %166 : vector<16x32xf32>
      %168 = vector.broadcast %147 : vector<1x32xf32> to vector<16x32xf32>
      %169 = arith.addf %167, %168 : vector<16x32xf32>
      %170 = arith.truncf %169 : vector<16x32xf32> to vector<16x32xbf16>
      %c0_87 = arith.constant 0 : index
      %c0_88 = arith.constant 0 : index
      %171 = vector.load %arg7[%c0_87, %c0_88] : memref<32x64xbf16, #tpu.memory_space<vmem>>, vector<32x64xbf16>
      %cst_89 = arith.constant dense<0.000000e+00> : vector<16x64xf32>
      %172 = tpu.matmul %170, %171, %cst_89 {dimension_numbers = #tpu.dot_dimension_numbers<[1], [0], [0], [1], [0, 0, 1, 1], [], []>} : vector<16x32xbf16>, vector<32x64xbf16>, vector<16x64xf32> -> vector<16x64xf32>
      %c0_90 = arith.constant 0 : index
      %c0_91 = arith.constant 0 : index
      %173 = vector.load %arg8[%c0_90, %c0_91] : memref<1x64xf32, #tpu.memory_space<vmem>>, vector<1x64xf32>
      %174 = vector.broadcast %173 : vector<1x64xf32> to vector<16x64xf32>
      %175 = arith.addf %172, %174 : vector<16x64xf32>
      %176 = arith.truncf %175 : vector<16x64xf32> to vector<16x64xbf16>
      %177 = vector.extract_strided_slice %176 {offsets = [0, 0], sizes = [16, 8], strides = [1, 1]} : vector<16x64xbf16> to vector<16x8xbf16>
      %c0_92 = arith.constant 0 : index
      %c0_93 = arith.constant 0 : index
      %c0_94 = arith.constant 0 : index
      %178 = vector.load %arg18[%c0_92, %c0_93, %c0_94] : memref<4x16x8xbf16, #tpu.memory_space<vmem>>, vector<1x16x8xbf16>
      %179 = vector.shape_cast %178 : vector<1x16x8xbf16> to vector<16x8xbf16>
      %180 = vector.shape_cast %177 : vector<16x8xbf16> to vector<1x16x8xbf16>
      tpu.vector_store %arg18[%c0_92, %c0_93, %c0_94], %180 {strides = array<i32>} : memref<4x16x8xbf16, #tpu.memory_space<vmem>>, vector<1x16x8xbf16>,
      %181 = vector.extract_strided_slice %176 {offsets = [0, 32], sizes = [16, 8], strides = [1, 1]} : vector<16x64xbf16> to vector<16x8xbf16>
      %c0_95 = arith.constant 0 : index
      %c0_96 = arith.constant 0 : index
      %c0_97 = arith.constant 0 : index
      %182 = vector.load %arg19[%c0_95, %c0_96, %c0_97] : memref<4x16x8xbf16, #tpu.memory_space<vmem>>, vector<1x16x8xbf16>
      %183 = vector.shape_cast %182 : vector<1x16x8xbf16> to vector<16x8xbf16>
      %184 = vector.shape_cast %181 : vector<16x8xbf16> to vector<1x16x8xbf16>
      tpu.vector_store %arg19[%c0_95, %c0_96, %c0_97], %184 {strides = array<i32>} : memref<4x16x8xbf16, #tpu.memory_space<vmem>>, vector<1x16x8xbf16>,
      %185 = vector.extract_strided_slice %176 {offsets = [0, 8], sizes = [16, 8], strides = [1, 1]} : vector<16x64xbf16> to vector<16x8xbf16>
      %c1_98 = arith.constant 1 : index
      %c0_99 = arith.constant 0 : index
      %c0_100 = arith.constant 0 : index
      %186 = vector.load %arg18[%c1_98, %c0_99, %c0_100] : memref<4x16x8xbf16, #tpu.memory_space<vmem>>, vector<1x16x8xbf16>
      %187 = vector.shape_cast %186 : vector<1x16x8xbf16> to vector<16x8xbf16>
      %188 = vector.shape_cast %185 : vector<16x8xbf16> to vector<1x16x8xbf16>
      tpu.vector_store %arg18[%c1_98, %c0_99, %c0_100], %188 {strides = array<i32>} : memref<4x16x8xbf16, #tpu.memory_space<vmem>>, vector<1x16x8xbf16>,
      %189 = vector.extract_strided_slice %176 {offsets = [0, 40], sizes = [16, 8], strides = [1, 1]} : vector<16x64xbf16> to vector<16x8xbf16>
      %c1_101 = arith.constant 1 : index
      %c0_102 = arith.constant 0 : index
      %c0_103 = arith.constant 0 : index
      %190 = vector.load %arg19[%c1_101, %c0_102, %c0_103] : memref<4x16x8xbf16, #tpu.memory_space<vmem>>, vector<1x16x8xbf16>
      %191 = vector.shape_cast %190 : vector<1x16x8xbf16> to vector<16x8xbf16>
      %192 = vector.shape_cast %189 : vector<16x8xbf16> to vector<1x16x8xbf16>
      tpu.vector_store %arg19[%c1_101, %c0_102, %c0_103], %192 {strides = array<i32>} : memref<4x16x8xbf16, #tpu.memory_space<vmem>>, vector<1x16x8xbf16>,
      %193 = vector.extract_strided_slice %176 {offsets = [0, 16], sizes = [16, 8], strides = [1, 1]} : vector<16x64xbf16> to vector<16x8xbf16>
      %c2_104 = arith.constant 2 : index
      %c0_105 = arith.constant 0 : index
      %c0_106 = arith.constant 0 : index
      %194 = vector.load %arg18[%c2_104, %c0_105, %c0_106] : memref<4x16x8xbf16, #tpu.memory_space<vmem>>, vector<1x16x8xbf16>
      %195 = vector.shape_cast %194 : vector<1x16x8xbf16> to vector<16x8xbf16>
      %196 = vector.shape_cast %193 : vector<16x8xbf16> to vector<1x16x8xbf16>
      tpu.vector_store %arg18[%c2_104, %c0_105, %c0_106], %196 {strides = array<i32>} : memref<4x16x8xbf16, #tpu.memory_space<vmem>>, vector<1x16x8xbf16>,
      %197 = vector.extract_strided_slice %176 {offsets = [0, 48], sizes = [16, 8], strides = [1, 1]} : vector<16x64xbf16> to vector<16x8xbf16>
      %c2_107 = arith.constant 2 : index
      %c0_108 = arith.constant 0 : index
      %c0_109 = arith.constant 0 : index
      %198 = vector.load %arg19[%c2_107, %c0_108, %c0_109] : memref<4x16x8xbf16, #tpu.memory_space<vmem>>, vector<1x16x8xbf16>
      %199 = vector.shape_cast %198 : vector<1x16x8xbf16> to vector<16x8xbf16>
      %200 = vector.shape_cast %197 : vector<16x8xbf16> to vector<1x16x8xbf16>
      tpu.vector_store %arg19[%c2_107, %c0_108, %c0_109], %200 {strides = array<i32>} : memref<4x16x8xbf16, #tpu.memory_space<vmem>>, vector<1x16x8xbf16>,
      %201 = vector.extract_strided_slice %176 {offsets = [0, 24], sizes = [16, 8], strides = [1, 1]} : vector<16x64xbf16> to vector<16x8xbf16>
      %c3_110 = arith.constant 3 : index
      %c0_111 = arith.constant 0 : index
      %c0_112 = arith.constant 0 : index
      %202 = vector.load %arg18[%c3_110, %c0_111, %c0_112] : memref<4x16x8xbf16, #tpu.memory_space<vmem>>, vector<1x16x8xbf16>
      %203 = vector.shape_cast %202 : vector<1x16x8xbf16> to vector<16x8xbf16>
      %204 = vector.shape_cast %201 : vector<16x8xbf16> to vector<1x16x8xbf16>
      tpu.vector_store %arg18[%c3_110, %c0_111, %c0_112], %204 {strides = array<i32>} : memref<4x16x8xbf16, #tpu.memory_space<vmem>>, vector<1x16x8xbf16>,
      %205 = vector.extract_strided_slice %176 {offsets = [0, 56], sizes = [16, 8], strides = [1, 1]} : vector<16x64xbf16> to vector<16x8xbf16>
      %c3_113 = arith.constant 3 : index
      %c0_114 = arith.constant 0 : index
      %c0_115 = arith.constant 0 : index
      %206 = vector.load %arg19[%c3_113, %c0_114, %c0_115] : memref<4x16x8xbf16, #tpu.memory_space<vmem>>, vector<1x16x8xbf16>
      %207 = vector.shape_cast %206 : vector<1x16x8xbf16> to vector<16x8xbf16>
      %208 = vector.shape_cast %205 : vector<16x8xbf16> to vector<1x16x8xbf16>
      tpu.vector_store %arg19[%c3_113, %c0_114, %c0_115], %208 {strides = array<i32>} : memref<4x16x8xbf16, #tpu.memory_space<vmem>>, vector<1x16x8xbf16>,
    } else {
    }
    %c8_i32 = arith.constant 8 : i32
    %3 = arith.muli %arg1, %c8_i32 : i32
    %4 = tpu.assume_multiple %3, 8 : i32
    %c0 = arith.constant 0 : index
    %5 = arith.index_cast %4 : i32 to index
    %c0_1 = arith.constant 0 : index
    %6 = vector.load %arg2[%c0, %5, %c0_1] : memref<1x16x32xf32, #tpu.memory_space<vmem>>, vector<1x8x32xf32>
    %7 = vector.shape_cast %6 : vector<1x8x32xf32> to vector<8x32xf32>
    %c0_2 = arith.constant 0 : index
    %c0_3 = arith.constant 0 : index
    %8 = vector.load %arg3[%c0_2, %c0_3] : memref<1x32xf32, #tpu.memory_space<vmem>>, vector<1x32xf32>
    %c0_4 = arith.constant 0 : index
    %c0_5 = arith.constant 0 : index
    %9 = vector.load %arg4[%c0_4, %c0_5] : memref<1x32xf32, #tpu.memory_space<vmem>>, vector<1x32xf32>
    %cst = arith.constant dense<0.000000e+00> : vector<8xf32>
    %10 = vector.multi_reduction <add>, %7, %cst [1] : vector<8x32xf32> to vector<8xf32>
    %11 = vector.shape_cast %10 : vector<8xf32> to vector<8x1xf32>
    %12 = arith.mulf %7, %7 : vector<8x32xf32>
    %cst_6 = arith.constant dense<0.000000e+00> : vector<8xf32>
    %13 = vector.multi_reduction <add>, %12, %cst_6 [1] : vector<8x32xf32> to vector<8xf32>
    %14 = vector.shape_cast %13 : vector<8xf32> to vector<8x1xf32>
    %cst_7 = arith.constant 3.125000e-02 : f32
    %15 = vector.broadcast %cst_7 : f32 to vector<8x1xf32>
    %16 = arith.mulf %11, %15 : vector<8x1xf32>
    %cst_8 = arith.constant 3.125000e-02 : f32
    %17 = vector.broadcast %cst_8 : f32 to vector<8x1xf32>
    %18 = arith.mulf %14, %17 : vector<8x1xf32>
    %19 = arith.mulf %16, %16 : vector<8x1xf32>
    %20 = arith.subf %18, %19 : vector<8x1xf32>
    %21 = vector.broadcast %16 : vector<8x1xf32> to vector<8x32xf32>
    %22 = arith.subf %7, %21 : vector<8x32xf32>
    %cst_9 = arith.constant 9.99999974E-6 : f32
    %23 = vector.broadcast %cst_9 : f32 to vector<8x1xf32>
    %24 = arith.addf %20, %23 : vector<8x1xf32>
    %25 = math.rsqrt %24 : vector<8x1xf32>
    %26 = vector.broadcast %25 : vector<8x1xf32> to vector<8x32xf32>
    %27 = arith.mulf %22, %26 : vector<8x32xf32>
    %28 = vector.broadcast %8 : vector<1x32xf32> to vector<8x32xf32>
    %29 = arith.mulf %27, %28 : vector<8x32xf32>
    %30 = vector.broadcast %9 : vector<1x32xf32> to vector<8x32xf32>
    %31 = arith.addf %29, %30 : vector<8x32xf32>
    %32 = arith.truncf %31 : vector<8x32xf32> to vector<8x32xbf16>
    %c0_10 = arith.constant 0 : index
    %c0_11 = arith.constant 0 : index
    %33 = vector.load %arg5[%c0_10, %c0_11] : memref<32x32xbf16, #tpu.memory_space<vmem>>, vector<32x32xbf16>
    %cst_12 = arith.constant dense<0.000000e+00> : vector<8x32xf32>
    %34 = tpu.matmul %32, %33, %cst_12 {dimension_numbers = #tpu.dot_dimension_numbers<[1], [0], [0], [1], [0, 0, 1, 1], [], []>} : vector<8x32xbf16>, vector<32x32xbf16>, vector<8x32xf32> -> vector<8x32xf32>
    %c0_13 = arith.constant 0 : index
    %c0_14 = arith.constant 0 : index
    %35 = vector.load %arg6[%c0_13, %c0_14] : memref<1x32xf32, #tpu.memory_space<vmem>>, vector<1x32xf32>
    %36 = vector.broadcast %35 : vector<1x32xf32> to vector<8x32xf32>
    %37 = arith.addf %34, %36 : vector<8x32xf32>
    %38 = arith.truncf %37 : vector<8x32xf32> to vector<8x32xbf16>
    %39 = vector.extract_strided_slice %38 {offsets = [0, 0], sizes = [8, 8], strides = [1, 1]} : vector<8x32xbf16> to vector<8x8xbf16>
    %c0_15 = arith.constant 0 : index
    %c0_16 = arith.constant 0 : index
    %c0_17 = arith.constant 0 : index
    %40 = vector.load %arg20[%c0_15, %c0_16, %c0_17] : memref<4x8x8xbf16, #tpu.memory_space<vmem>>, vector<1x8x8xbf16>
    %41 = vector.shape_cast %40 : vector<1x8x8xbf16> to vector<8x8xbf16>
    %42 = vector.shape_cast %39 : vector<8x8xbf16> to vector<1x8x8xbf16>
    tpu.vector_store %arg20[%c0_15, %c0_16, %c0_17], %42 {strides = array<i32>} : memref<4x8x8xbf16, #tpu.memory_space<vmem>>, vector<1x8x8xbf16>,
    %43 = vector.extract_strided_slice %38 {offsets = [0, 8], sizes = [8, 8], strides = [1, 1]} : vector<8x32xbf16> to vector<8x8xbf16>
    %c1 = arith.constant 1 : index
    %c0_18 = arith.constant 0 : index
    %c0_19 = arith.constant 0 : index
    %44 = vector.load %arg20[%c1, %c0_18, %c0_19] : memref<4x8x8xbf16, #tpu.memory_space<vmem>>, vector<1x8x8xbf16>
    %45 = vector.shape_cast %44 : vector<1x8x8xbf16> to vector<8x8xbf16>
    %46 = vector.shape_cast %43 : vector<8x8xbf16> to vector<1x8x8xbf16>
    tpu.vector_store %arg20[%c1, %c0_18, %c0_19], %46 {strides = array<i32>} : memref<4x8x8xbf16, #tpu.memory_space<vmem>>, vector<1x8x8xbf16>,
    %47 = vector.extract_strided_slice %38 {offsets = [0, 16], sizes = [8, 8], strides = [1, 1]} : vector<8x32xbf16> to vector<8x8xbf16>
    %c2 = arith.constant 2 : index
    %c0_20 = arith.constant 0 : index
    %c0_21 = arith.constant 0 : index
    %48 = vector.load %arg20[%c2, %c0_20, %c0_21] : memref<4x8x8xbf16, #tpu.memory_space<vmem>>, vector<1x8x8xbf16>
    %49 = vector.shape_cast %48 : vector<1x8x8xbf16> to vector<8x8xbf16>
    %50 = vector.shape_cast %47 : vector<8x8xbf16> to vector<1x8x8xbf16>
    tpu.vector_store %arg20[%c2, %c0_20, %c0_21], %50 {strides = array<i32>} : memref<4x8x8xbf16, #tpu.memory_space<vmem>>, vector<1x8x8xbf16>,
    %51 = vector.extract_strided_slice %38 {offsets = [0, 24], sizes = [8, 8], strides = [1, 1]} : vector<8x32xbf16> to vector<8x8xbf16>
    %c3 = arith.constant 3 : index
    %c0_22 = arith.constant 0 : index
    %c0_23 = arith.constant 0 : index
    %52 = vector.load %arg20[%c3, %c0_22, %c0_23] : memref<4x8x8xbf16, #tpu.memory_space<vmem>>, vector<1x8x8xbf16>
    %53 = vector.shape_cast %52 : vector<1x8x8xbf16> to vector<8x8xbf16>
    %54 = vector.shape_cast %51 : vector<8x8xbf16> to vector<1x8x8xbf16>
    tpu.vector_store %arg20[%c3, %c0_22, %c0_23], %54 {strides = array<i32>} : memref<4x8x8xbf16, #tpu.memory_space<vmem>>, vector<1x8x8xbf16>,
    %c0_24 = arith.constant 0 : index
    %c0_25 = arith.constant 0 : index
    %c0_26 = arith.constant 0 : index
    %55 = vector.load %arg20[%c0_24, %c0_25, %c0_26] : memref<4x8x8xbf16, #tpu.memory_space<vmem>>, vector<4x8x8xbf16>
    %c0_27 = arith.constant 0 : index
    %c0_28 = arith.constant 0 : index
    %c0_29 = arith.constant 0 : index
    %56 = vector.load %arg18[%c0_27, %c0_28, %c0_29] : memref<4x16x8xbf16, #tpu.memory_space<vmem>>, vector<4x16x8xbf16>
    "tpu.trace_start"() <{level = 10 : i32, message = "hqe,hne->hqn"}> : () -> ()
    %cst_30 = arith.constant dense<0.000000e+00> : vector<4x8x16xf32>
    %57 = tpu.matmul %55, %56, %cst_30 {dimension_numbers = #tpu.dot_dimension_numbers<[2], [2], [1], [1], [0, 0, 0, 1, 1, 1], [0], [0]>} : vector<4x8x8xbf16>, vector<4x16x8xbf16>, vector<4x8x16xf32> -> vector<4x8x16xf32>
    "tpu.trace_stop"() : () -> ()
    %cst_31 = arith.constant dense<0xFF800000> : vector<4x8xf32>
    %58 = vector.multi_reduction <maximumf>, %57, %cst_31 [2] : vector<4x8x16xf32> to vector<4x8xf32>
    %59 = vector.shape_cast %58 : vector<4x8xf32> to vector<4x8x1xf32>
    %60 = vector.broadcast %59 : vector<4x8x1xf32> to vector<4x8x16xf32>
    %61 = arith.subf %57, %60 : vector<4x8x16xf32>
    %62 = math.exp %61 : vector<4x8x16xf32>
    %cst_32 = arith.constant dense<0.000000e+00> : vector<4x8xf32>
    %63 = vector.multi_reduction <add>, %62, %cst_32 [2] : vector<4x8x16xf32> to vector<4x8xf32>
    %64 = vector.shape_cast %63 : vector<4x8xf32> to vector<4x8x1xf32>
    %65 = arith.truncf %62 : vector<4x8x16xf32> to vector<4x8x16xbf16>
    %c0_33 = arith.constant 0 : index
    %c0_34 = arith.constant 0 : index
    %c0_35 = arith.constant 0 : index
    %66 = vector.load %arg19[%c0_33, %c0_34, %c0_35] : memref<4x16x8xbf16, #tpu.memory_space<vmem>>, vector<4x16x8xbf16>
    "tpu.trace_start"() <{level = 10 : i32, message = "hqn,hne->hqe"}> : () -> ()
    %cst_36 = arith.constant dense<0.000000e+00> : vector<4x8x8xf32>
    %67 = tpu.matmul %65, %66, %cst_36 {dimension_numbers = #tpu.dot_dimension_numbers<[2], [1], [1], [2], [0, 0, 0, 1, 1, 2], [0], [0]>} : vector<4x8x16xbf16>, vector<4x16x8xbf16>, vector<4x8x8xf32> -> vector<4x8x8xf32>
    "tpu.trace_stop"() : () -> ()
    %68 = tpu.reciprocal %64 {approx = true} : vector<4x8x1xf32> -> vector<4x8x1xf32>
    %69 = vector.broadcast %68 : vector<4x8x1xf32> to vector<4x8x8xf32>
    %70 = arith.mulf %67, %69 : vector<4x8x8xf32>
    %71 = arith.truncf %70 : vector<4x8x8xf32> to vector<4x8x8xbf16>
    %72 = vector.extract_strided_slice %71 {offsets = [0, 0, 0], sizes = [1, 8, 8], strides = [1, 1, 1]} : vector<4x8x8xbf16> to vector<1x8x8xbf16>
    %73 = vector.shape_cast %72 : vector<1x8x8xbf16> to vector<8x8xbf16>
    %c0_37 = arith.constant 0 : index
    %c0_38 = arith.constant 0 : index
    %74 = vector.load %arg21[%c0_37, %c0_38] : memref<8x32xbf16, #tpu.memory_space<vmem>>, vector<8x8xbf16>
    tpu.vector_store %arg21[%c0_37, %c0_38], %73 {strides = array<i32>} : memref<8x32xbf16, #tpu.memory_space<vmem>>, vector<8x8xbf16>,
    %75 = vector.extract_strided_slice %71 {offsets = [1, 0, 0], sizes = [1, 8, 8], strides = [1, 1, 1]} : vector<4x8x8xbf16> to vector<1x8x8xbf16>
    %76 = vector.shape_cast %75 : vector<1x8x8xbf16> to vector<8x8xbf16>
    %c0_39 = arith.constant 0 : index
    %c8 = arith.constant 8 : index
    %77 = vector.load %arg21[%c0_39, %c8] : memref<8x32xbf16, #tpu.memory_space<vmem>>, vector<8x8xbf16>
    tpu.vector_store %arg21[%c0_39, %c8], %76 {strides = array<i32>} : memref<8x32xbf16, #tpu.memory_space<vmem>>, vector<8x8xbf16>,
    %78 = vector.extract_strided_slice %71 {offsets = [2, 0, 0], sizes = [1, 8, 8], strides = [1, 1, 1]} : vector<4x8x8xbf16> to vector<1x8x8xbf16>
    %79 = vector.shape_cast %78 : vector<1x8x8xbf16> to vector<8x8xbf16>
    %c0_40 = arith.constant 0 : index
    %c16 = arith.constant 16 : index
    %80 = vector.load %arg21[%c0_40, %c16] : memref<8x32xbf16, #tpu.memory_space<vmem>>, vector<8x8xbf16>
    tpu.vector_store %arg21[%c0_40, %c16], %79 {strides = array<i32>} : memref<8x32xbf16, #tpu.memory_space<vmem>>, vector<8x8xbf16>,
    %81 = vector.extract_strided_slice %71 {offsets = [3, 0, 0], sizes = [1, 8, 8], strides = [1, 1, 1]} : vector<4x8x8xbf16> to vector<1x8x8xbf16>
    %82 = vector.shape_cast %81 : vector<1x8x8xbf16> to vector<8x8xbf16>
    %c0_41 = arith.constant 0 : index
    %c24 = arith.constant 24 : index
    %83 = vector.load %arg21[%c0_41, %c24] : memref<8x32xbf16, #tpu.memory_space<vmem>>, vector<8x8xbf16>
    tpu.vector_store %arg21[%c0_41, %c24], %82 {strides = array<i32>} : memref<8x32xbf16, #tpu.memory_space<vmem>>, vector<8x8xbf16>,
    %c0_42 = arith.constant 0 : index
    %c0_43 = arith.constant 0 : index
    %84 = vector.load %arg21[%c0_42, %c0_43] : memref<8x32xbf16, #tpu.memory_space<vmem>>, vector<8x32xbf16>
    %c0_44 = arith.constant 0 : index
    %c0_45 = arith.constant 0 : index
    %85 = vector.load %arg9[%c0_44, %c0_45] : memref<32x32xbf16, #tpu.memory_space<vmem>>, vector<32x32xbf16>
    %cst_46 = arith.constant dense<0.000000e+00> : vector<8x32xf32>
    %86 = tpu.matmul %84, %85, %cst_46 {dimension_numbers = #tpu.dot_dimension_numbers<[1], [0], [0], [1], [0, 0, 1, 1], [], []>} : vector<8x32xbf16>, vector<32x32xbf16>, vector<8x32xf32> -> vector<8x32xf32>
    %c0_47 = arith.constant 0 : index
    %c0_48 = arith.constant 0 : index
    %87 = vector.load %arg10[%c0_47, %c0_48] : memref<1x32xf32, #tpu.memory_space<vmem>>, vector<1x32xf32>
    %88 = vector.broadcast %87 : vector<1x32xf32> to vector<8x32xf32>
    %89 = arith.addf %86, %88 : vector<8x32xf32>
    %90 = arith.addf %7, %89 : vector<8x32xf32>
    %c0_49 = arith.constant 0 : index
    %c0_50 = arith.constant 0 : index
    %91 = vector.load %arg11[%c0_49, %c0_50] : memref<1x32xf32, #tpu.memory_space<vmem>>, vector<1x32xf32>
    %c0_51 = arith.constant 0 : index
    %c0_52 = arith.constant 0 : index
    %92 = vector.load %arg12[%c0_51, %c0_52] : memref<1x32xf32, #tpu.memory_space<vmem>>, vector<1x32xf32>
    %cst_53 = arith.constant dense<0.000000e+00> : vector<8xf32>
    %93 = vector.multi_reduction <add>, %90, %cst_53 [1] : vector<8x32xf32> to vector<8xf32>
    %94 = vector.shape_cast %93 : vector<8xf32> to vector<8x1xf32>
    %95 = arith.mulf %90, %90 : vector<8x32xf32>
    %cst_54 = arith.constant dense<0.000000e+00> : vector<8xf32>
    %96 = vector.multi_reduction <add>, %95, %cst_54 [1] : vector<8x32xf32> to vector<8xf32>
    %97 = vector.shape_cast %96 : vector<8xf32> to vector<8x1xf32>
    %cst_55 = arith.constant 3.125000e-02 : f32
    %98 = vector.broadcast %cst_55 : f32 to vector<8x1xf32>
    %99 = arith.mulf %94, %98 : vector<8x1xf32>
    %cst_56 = arith.constant 3.125000e-02 : f32
    %100 = vector.broadcast %cst_56 : f32 to vector<8x1xf32>
    %101 = arith.mulf %97, %100 : vector<8x1xf32>
    %102 = arith.mulf %99, %99 : vector<8x1xf32>
    %103 = arith.subf %101, %102 : vector<8x1xf32>
    %104 = vector.broadcast %99 : vector<8x1xf32> to vector<8x32xf32>
    %105 = arith.subf %90, %104 : vector<8x32xf32>
    %cst_57 = arith.constant 9.99999974E-6 : f32
    %106 = vector.broadcast %cst_57 : f32 to vector<8x1xf32>
    %107 = arith.addf %103, %106 : vector<8x1xf32>
    %108 = math.rsqrt %107 : vector<8x1xf32>
    %109 = vector.broadcast %108 : vector<8x1xf32> to vector<8x32xf32>
    %110 = arith.mulf %105, %109 : vector<8x32xf32>
    %111 = vector.broadcast %91 : vector<1x32xf32> to vector<8x32xf32>
    %112 = arith.mulf %110, %111 : vector<8x32xf32>
    %113 = vector.broadcast %92 : vector<1x32xf32> to vector<8x32xf32>
    %114 = arith.addf %112, %113 : vector<8x32xf32>
    %115 = arith.truncf %114 : vector<8x32xf32> to vector<8x32xbf16>
    %c0_58 = arith.constant 0 : index
    %c0_59 = arith.constant 0 : index
    %116 = vector.load %arg13[%c0_58, %c0_59] : memref<32x128xbf16, #tpu.memory_space<vmem>>, vector<32x128xbf16>
    %cst_60 = arith.constant dense<0.000000e+00> : vector<8x128xf32>
    %117 = tpu.matmul %115, %116, %cst_60 {dimension_numbers = #tpu.dot_dimension_numbers<[1], [0], [0], [1], [0, 0, 1, 1], [], []>} : vector<8x32xbf16>, vector<32x128xbf16>, vector<8x128xf32> -> vector<8x128xf32>
    %c0_61 = arith.constant 0 : index
    %c0_62 = arith.constant 0 : index
    %118 = vector.load %arg14[%c0_61, %c0_62] : memref<1x128xf32, #tpu.memory_space<vmem>>, vector<1x128xf32>
    %119 = vector.broadcast %118 : vector<1x128xf32> to vector<8x128xf32>
    %120 = arith.addf %117, %119 : vector<8x128xf32>
    %121 = arith.mulf %120, %120 : vector<8x128xf32>
    %122 = arith.mulf %120, %121 : vector<8x128xf32>
    %cst_63 = arith.constant 4.471500e-02 : f32
    %123 = vector.broadcast %cst_63 : f32 to vector<8x128xf32>
    %124 = arith.mulf %123, %122 : vector<8x128xf32>
    %125 = arith.addf %120, %124 : vector<8x128xf32>
    %cst_64 = arith.constant 0.797884583 : f32
    %126 = vector.broadcast %cst_64 : f32 to vector<8x128xf32>
    %127 = arith.mulf %126, %125 : vector<8x128xf32>
    %128 = math.tanh %127 : vector<8x128xf32>
    %cst_65 = arith.constant 1.000000e+00 : f32
    %129 = vector.broadcast %cst_65 : f32 to vector<8x128xf32>
    %130 = arith.addf %129, %128 : vector<8x128xf32>
    %cst_66 = arith.constant 5.000000e-01 : f32
    %131 = vector.broadcast %cst_66 : f32 to vector<8x128xf32>
    %132 = arith.mulf %131, %130 : vector<8x128xf32>
    %133 = arith.mulf %120, %132 : vector<8x128xf32>
    %134 = arith.truncf %133 : vector<8x128xf32> to vector<8x128xbf16>
    %c0_67 = arith.constant 0 : index
    %c0_68 = arith.constant 0 : index
    %135 = vector.load %arg15[%c0_67, %c0_68] : memref<128x32xbf16, #tpu.memory_space<vmem>>, vector<128x32xbf16>
    %cst_69 = arith.constant dense<0.000000e+00> : vector<8x32xf32>
    %136 = tpu.matmul %134, %135, %cst_69 {dimension_numbers = #tpu.dot_dimension_numbers<[1], [0], [0], [1], [0, 0, 1, 1], [], []>} : vector<8x128xbf16>, vector<128x32xbf16>, vector<8x32xf32> -> vector<8x32xf32>
    %c0_70 = arith.constant 0 : index
    %c0_71 = arith.constant 0 : index
    %137 = vector.load %arg16[%c0_70, %c0_71] : memref<1x32xf32, #tpu.memory_space<vmem>>, vector<1x32xf32>
    %138 = vector.broadcast %137 : vector<1x32xf32> to vector<8x32xf32>
    %139 = arith.addf %136, %138 : vector<8x32xf32>
    %140 = arith.addf %90, %139 : vector<8x32xf32>
    %c0_72 = arith.constant 0 : index
    %c0_73 = arith.constant 0 : index
    %c0_74 = arith.constant 0 : index
    %141 = vector.load %arg17[%c0_72, %c0_73, %c0_74] : memref<1x8x32xf32, #tpu.memory_space<vmem>>, vector<1x8x32xf32>
    %142 = vector.shape_cast %141 : vector<1x8x32xf32> to vector<8x32xf32>
    %143 = vector.shape_cast %140 : vector<8x32xf32> to vector<1x8x32xf32>
    tpu.vector_store %arg17[%c0_72, %c0_73, %c0_74], %143 {strides = array<i32>} : memref<1x8x32xf32, #tpu.memory_space<vmem>>, vector<1x8x32xf32>,
    return
  }
  func.func @transform_0(%arg0: i32, %arg1: i32) -> (i32, i32, i32) {
    %c0_i32 = arith.constant 0 : i32
    %c0_i32_0 = arith.constant 0 : i32
    %c0_i32_1 = arith.constant 0 : i32
    return %arg0, %c0_i32, %c0_i32_0 : i32, i32, i32
  }
  func.func @transform_1(%arg0: i32, %arg1: i32) -> (i32, i32) {
    %c0_i32 = arith.constant 0 : i32
    %c0_i32_0 = arith.constant 0 : i32
    %c0_i32_1 = arith.constant 0 : i32
    return %c0_i32, %c0_i32_0 : i32, i32
  }
  func.func @transform_2(%arg0: i32, %arg1: i32) -> (i32, i32) {
    %c0_i32 = arith.constant 0 : i32
    %c0_i32_0 = arith.constant 0 : i32
    %c0_i32_1 = arith.constant 0 : i32
    return %c0_i32, %c0_i32_0 : i32, i32
  }
  func.func @transform_3(%arg0: i32, %arg1: i32) -> (i32, i32) {
    %c0_i32 = arith.constant 0 : i32
    %c0_i32_0 = arith.constant 0 : i32
    %c0_i32_1 = arith.constant 0 : i32
    return %c0_i32, %c0_i32_0 : i32, i32
  }
  func.func @transform_4(%arg0: i32, %arg1: i32) -> (i32, i32) {
    %c0_i32 = arith.constant 0 : i32
    %c0_i32_0 = arith.constant 0 : i32
    %c0_i32_1 = arith.constant 0 : i32
    return %c0_i32, %c0_i32_0 : i32, i32
  }
  func.func @transform_5(%arg0: i32, %arg1: i32) -> (i32, i32) {
    %c0_i32 = arith.constant 0 : i32
    %c0_i32_0 = arith.constant 0 : i32
    %c0_i32_1 = arith.constant 0 : i32
    return %c0_i32, %c0_i32_0 : i32, i32
  }
  func.func @transform_6(%arg0: i32, %arg1: i32) -> (i32, i32) {
    %c0_i32 = arith.constant 0 : i32
    %c0_i32_0 = arith.constant 0 : i32
    %c0_i32_1 = arith.constant 0 : i32
    return %c0_i32, %c0_i32_0 : i32, i32
  }
  func.func @transform_7(%arg0: i32, %arg1: i32) -> (i32, i32) {
    %c0_i32 = arith.constant 0 : i32
    %c0_i32_0 = arith.constant 0 : i32
    %c0_i32_1 = arith.constant 0 : i32
    return %c0_i32, %c0_i32_0 : i32, i32
  }
  func.func @transform_8(%arg0: i32, %arg1: i32) -> (i32, i32) {
    %c0_i32 = arith.constant 0 : i32
    %c0_i32_0 = arith.constant 0 : i32
    %c0_i32_1 = arith.constant 0 : i32
    return %c0_i32, %c0_i32_0 : i32, i32
  }
  func.func @transform_9(%arg0: i32, %arg1: i32) -> (i32, i32) {
    %c0_i32 = arith.constant 0 : i32
    %c0_i32_0 = arith.constant 0 : i32
    %c0_i32_1 = arith.constant 0 : i32
    return %c0_i32, %c0_i32_0 : i32, i32
  }
  func.func @transform_10(%arg0: i32, %arg1: i32) -> (i32, i32) {
    %c0_i32 = arith.constant 0 : i32
    %c0_i32_0 = arith.constant 0 : i32
    %c0_i32_1 = arith.constant 0 : i32
    return %c0_i32, %c0_i32_0 : i32, i32
  }
  func.func @transform_11(%arg0: i32, %arg1: i32) -> (i32, i32) {
    %c0_i32 = arith.constant 0 : i32
    %c0_i32_0 = arith.constant 0 : i32
    %c0_i32_1 = arith.constant 0 : i32
    return %c0_i32, %c0_i32_0 : i32, i32
  }
  func.func @transform_12(%arg0: i32, %arg1: i32) -> (i32, i32) {
    %c0_i32 = arith.constant 0 : i32
    %c0_i32_0 = arith.constant 0 : i32
    %c0_i32_1 = arith.constant 0 : i32
    return %c0_i32, %c0_i32_0 : i32, i32
  }
  func.func @transform_13(%arg0: i32, %arg1: i32) -> (i32, i32) {
    %c0_i32 = arith.constant 0 : i32
    %c0_i32_0 = arith.constant 0 : i32
    %c0_i32_1 = arith.constant 0 : i32
    return %c0_i32, %c0_i32_0 : i32, i32
  }
  func.func @transform_14(%arg0: i32, %arg1: i32) -> (i32, i32) {
    %c0_i32 = arith.constant 0 : i32
    %c0_i32_0 = arith.constant 0 : i32
    %c0_i32_1 = arith.constant 0 : i32
    return %c0_i32, %c0_i32_0 : i32, i32
  }
  func.func @transform_15(%arg0: i32, %arg1: i32) -> (i32, i32, i32) {
    %c0_i32 = arith.constant 0 : i32
    %c0_i32_0 = arith.constant 0 : i32
    return %arg0, %arg1, %c0_i32 : i32, i32, i32
  }
}

module attributes {stable_mosaic.version = 11 : i64} {
  func.func @vit_block_kernel(%arg0: i32, %arg1: i32, %arg2: memref<1x16x32xf32, #tpu.memory_space<vmem>>, %arg3: memref<1x32xf32, #tpu.memory_space<vmem>>, %arg4: memref<1x32xf32, #tpu.memory_space<vmem>>, %arg5: memref<32x32xbf16, #tpu.memory_space<vmem>>, %arg6: memref<1x32xf32, #tpu.memory_space<vmem>>, %arg7: memref<32x64xbf16, #tpu.memory_space<vmem>>, %arg8: memref<1x64xf32, #tpu.memory_space<vmem>>, %arg9: memref<32x32xbf16, #tpu.memory_space<vmem>>, %arg10: memref<1x32xf32, #tpu.memory_space<vmem>>, %arg11: memref<1x32xf32, #tpu.memory_space<vmem>>, %arg12: memref<1x32xf32, #tpu.memory_space<vmem>>, %arg13: memref<32x128xbf16, #tpu.memory_space<vmem>>, %arg14: memref<1x128xf32, #tpu.memory_space<vmem>>, %arg15: memref<128x32xbf16, #tpu.memory_space<vmem>>, %arg16: memref<1x32xf32, #tpu.memory_space<vmem>>, %arg17: memref<1x8x32xf32, #tpu.memory_space<vmem>>, %arg18: memref<4x16x8xbf16, #tpu.memory_space<vmem>>, %arg19: memref<4x16x8xbf16, #tpu.memory_space<vmem>>, %arg20: memref<4x8x8xbf16, #tpu.memory_space<vmem>>, %arg21: memref<8x32xbf16, #tpu.memory_space<vmem>>) attributes {dimension_semantics = [#tpu.dimension_semantics<parallel>, #tpu.dimension_semantics<arbitrary>], iteration_bounds = array<i64: 2, 2>, scalar_prefetch = 0 : i64, scratch_operands = 4 : i64, tpu.core_type = #tpu.core_type<tc>, window_params = [{transform_indices = @transform_0, window_bounds = array<i64: 1, 16, 32>}, {pipeline_mode = #tpu.pipeline_mode<synchronous>, transform_indices = @transform_1, window_bounds = array<i64: 1, 32>}, {pipeline_mode = #tpu.pipeline_mode<synchronous>, transform_indices = @transform_2, window_bounds = array<i64: 1, 32>}, {pipeline_mode = #tpu.pipeline_mode<synchronous>, transform_indices = @transform_3, window_bounds = array<i64: 32, 32>}, {pipeline_mode = #tpu.pipeline_mode<synchronous>, transform_indices = @transform_4, window_bounds = array<i64: 1, 32>}, {pipeline_mode = #tpu.pipeline_mode<synchronous>, transform_indices = @transform_5, window_bounds = array<i64: 32, 64>}, {pipeline_mode = #tpu.pipeline_mode<synchronous>, transform_indices = @transform_6, window_bounds = array<i64: 1, 64>}, {pipeline_mode = #tpu.pipeline_mode<synchronous>, transform_indices = @transform_7, window_bounds = array<i64: 32, 32>}, {pipeline_mode = #tpu.pipeline_mode<synchronous>, transform_indices = @transform_8, window_bounds = array<i64: 1, 32>}, {pipeline_mode = #tpu.pipeline_mode<synchronous>, transform_indices = @transform_9, window_bounds = array<i64: 1, 32>}, {pipeline_mode = #tpu.pipeline_mode<synchronous>, transform_indices = @transform_10, window_bounds = array<i64: 1, 32>}, {pipeline_mode = #tpu.pipeline_mode<synchronous>, transform_indices = @transform_11, window_bounds = array<i64: 32, 128>}, {pipeline_mode = #tpu.pipeline_mode<synchronous>, transform_indices = @transform_12, window_bounds = array<i64: 1, 128>}, {pipeline_mode = #tpu.pipeline_mode<synchronous>, transform_indices = @transform_13, window_bounds = array<i64: 128, 32>}, {pipeline_mode = #tpu.pipeline_mode<synchronous>, transform_indices = @transform_14, window_bounds = array<i64: 1, 32>}, {transform_indices = @transform_15, window_bounds = array<i64: 1, 8, 32>}]} {
    %c0_i32 = arith.constant 0 : i32
    %0 = arith.cmpi eq, %arg1, %c0_i32 : i32
    %1 = arith.extui %0 : i1 to i32
    %c0_i32_0 = arith.constant 0 : i32
    %2 = arith.cmpi ne, %1, %c0_i32_0 : i32
    scf.if %2 {
      %c0_75 = arith.constant 0 : index
      %c0_76 = arith.constant 0 : index
      %c0_77 = arith.constant 0 : index
      %144 = vector.load %arg2[%c0_75, %c0_76, %c0_77] : memref<1x16x32xf32, #tpu.memory_space<vmem>>, vector<1x16x32xf32>
      %145 = vector.shape_cast %144 : vector<1x16x32xf32> to vector<16x32xf32>
      %c0_78 = arith.constant 0 : index
      %c0_79 = arith.constant 0 : index
      %146 = vector.load %arg3[%c0_78, %c0_79] : memref<1x32xf32, #tpu.memory_space<vmem>>, vector<1x32xf32>
      %c0_80 = arith.constant 0 : index
      %c0_81 = arith.constant 0 : index
      %147 = vector.load %arg4[%c0_80, %c0_81] : memref<1x32xf32, #tpu.memory_space<vmem>>, vector<1x32xf32>
      %cst_82 = arith.constant dense<0.000000e+00> : vector<16xf32>
      %148 = vector.multi_reduction <add>, %145, %cst_82 [1] : vector<16x32xf32> to vector<16xf32>
      %149 = vector.shape_cast %148 : vector<16xf32> to vector<16x1xf32>
      %150 = arith.mulf %145, %145 : vector<16x32xf32>
      %cst_83 = arith.constant dense<0.000000e+00> : vector<16xf32>
      %151 = vector.multi_reduction <add>, %150, %cst_83 [1] : vector<16x32xf32> to vector<16xf32>
      %152 = vector.shape_cast %151 : vector<16xf32> to vector<16x1xf32>
      %cst_84 = arith.constant 3.125000e-02 : f32
      %153 = vector.broadcast %cst_84 : f32 to vector<16x1xf32>
      %154 = arith.mulf %149, %153 : vector<16x1xf32>
      %cst_85 = arith.constant 3.125000e-02 : f32
      %155 = vector.broadcast %cst_85 : f32 to vector<16x1xf32>
      %156 = arith.mulf %152, %155 : vector<16x1xf32>
      %157 = arith.mulf %154, %154 : vector<16x1xf32>
      %158 = arith.subf %156, %157 : vector<16x1xf32>
      %159 = vector.broadcast %154 : vector<16x1xf32> to vector<16x32xf32>
      %160 = arith.subf %145, %159 : vector<16x32xf32>
      %cst_86 = arith.constant 9.99999974E-6 : f32
      %161 = vector.broadcast %cst_86 : f32 to vector<16x1xf32>
      %162 = arith.addf %158, %161 : vector<16x1xf32>
      %163 = math.rsqrt %162 : vector<16x1xf32>
      %164 = vector.broadcast %163 : vector<16x1xf32> to vector<16x32xf32>
      %165 = arith.mulf %160, %164 : vector<16x32xf32>
      %166 = vector.broadcast %146 : vector<1x32xf32> to vector<16x32xf32>
      %167 = arith.mulf %165, %166 : vector<16x32xf32>
      %168 = vector.broadcast %147 : vector<1x32xf32> to vector<16x32xf32>
      %169 = arith.addf %167, %168 : vector<16x32xf32>
      %170 = arith.truncf %169 : vector<16x32xf32> to vector<16x32xbf16>
      %c0_87 = arith.constant 0 : index
      %c0_88 = arith.constant 0 : index
      %171 = vector.load %arg7[%c0_87, %c0_88] : memref<32x64xbf16, #tpu.memory_space<vmem>>, vector<32x64xbf16>
      %cst_89 = arith.constant dense<0.000000e+00> : vector<16x64xf32>
      %172 = tpu.matmul %170, %171, %cst_89 {dimension_numbers = #tpu.dot_dimension_numbers<[1], [0], [0], [1], [0, 0, 1, 1], [], []>} : vector<16x32xbf16>, vector<32x64xbf16>, vector<16x64xf32> -> vector<16x64xf32>
      %c0_90 = arith.constant 0 : index
      %c0_91 = arith.constant 0 : index
      %173 = vector.load %arg8[%c0_90, %c0_91] : memref<1x64xf32, #tpu.memory_space<vmem>>, vector<1x64xf32>
      %174 = vector.broadcast %173 : vector<1x64xf32> to vector<16x64xf32>
      %175 = arith.addf %172, %174 : vector<16x64xf32>
      %176 = arith.truncf %175 : vector<16x64xf32> to vector<16x64xbf16>
      %177 = vector.extract_strided_slice %176 {offsets = [0, 0], sizes = [16, 8], strides = [1, 1]} : vector<16x64xbf16> to vector<16x8xbf16>
      %c0_92 = arith.constant 0 : index
      %c0_93 = arith.constant 0 : index
      %c0_94 = arith.constant 0 : index
      %178 = vector.load %arg18[%c0_92, %c0_93, %c0_94] : memref<4x16x8xbf16, #tpu.memory_space<vmem>>, vector<1x16x8xbf16>
      %179 = vector.shape_cast %178 : vector<1x16x8xbf16> to vector<16x8xbf16>
      %180 = vector.shape_cast %177 : vector<16x8xbf16> to vector<1x16x8xbf16>
      tpu.vector_store %arg18[%c0_92, %c0_93, %c0_94], %180 {strides = array<i32>} : memref<4x16x8xbf16, #tpu.memory_space<vmem>>, vector<1x16x8xbf16>,
      %181 = vector.extract_strided_slice %176 {offsets = [0, 32], sizes = [16, 8], strides = [1, 1]} : vector<16x64xbf16> to vector<16x8xbf16>
      %c0_95 = arith.constant 0 : index
      %c0_96 = arith.constant 0 : index
      %c0_97 = arith.constant 0 : index
      %182 = vector.load %arg19[%c0_95, %c0_96, %c0_97] : memref<4x16x8xbf16, #tpu.memory_space<vmem>>, vector<1x16x8xbf16>
      %183 = vector.shape_cast %182 : vector<1x16x8xbf16> to vector<16x8xbf16>
      %184 = vector.shape_cast %181 : vector<16x8xbf16> to vector<1x16x8xbf16>
      tpu.vector_store %arg19[%c0_95, %c0_96, %c0_97], %184 {strides = array<i32>} : memref<4x16x8xbf16, #tpu.memory_space<vmem>>, vector<1x16x8xbf16>,
      %185 = vector.extract_strided_slice %176 {offsets = [0, 8], sizes = [16, 8], strides = [1, 1]} : vector<16x64xbf16> to vector<16x8xbf16>
      %c1_98 = arith.constant 1 : index
      %c0_99 = arith.constant 0 : index
      %c0_100 = arith.constant 0 : index
      %186 = vector.load %arg18[%c1_98, %c0_99, %c0_100] : memref<4x16x8xbf16, #tpu.memory_space<vmem>>, vector<1x16x8xbf16>
      %187 = vector.shape_cast %186 : vector<1x16x8xbf16> to vector<16x8xbf16>
      %188 = vector.shape_cast %185 : vector<16x8xbf16> to vector<1x16x8xbf16>
      tpu.vector_store %arg18[%c1_98, %c0_99, %c0_100], %188 {strides = array<i32>} : memref<4x16x8xbf16, #tpu.memory_space<vmem>>, vector<1x16x8xbf16>,
      %189 = vector.extract_strided_slice %176 {offsets = [0, 40], sizes = [16, 8], strides = [1, 1]} : vector<16x64xbf16> to vector<16x8xbf16>
      %c1_101 = arith.constant 1 : index
      %c0_102 = arith.constant 0 : index
      %c0_103 = arith.constant 0 : index
      %190 = vector.load %arg19[%c1_101, %c0_102, %c0_103] : memref<4x16x8xbf16, #tpu.memory_space<vmem>>, vector<1x16x8xbf16>
      %191 = vector.shape_cast %190 : vector<1x16x8xbf16> to vector<16x8xbf16>
      %192 = vector.shape_cast %189 : vector<16x8xbf16> to vector<1x16x8xbf16>
      tpu.vector_store %arg19[%c1_101, %c0_102, %c0_103], %192 {strides = array<i32>} : memref<4x16x8xbf16, #tpu.memory_space<vmem>>, vector<1x16x8xbf16>,
      %193 = vector.extract_strided_slice %176 {offsets = [0, 16], sizes = [16, 8], strides = [1, 1]} : vector<16x64xbf16> to vector<16x8xbf16>
      %c2_104 = arith.constant 2 : index
      %c0_105 = arith.constant 0 : index
      %c0_106 = arith.constant 0 : index
      %194 = vector.load %arg18[%c2_104, %c0_105, %c0_106] : memref<4x16x8xbf16, #tpu.memory_space<vmem>>, vector<1x16x8xbf16>
      %195 = vector.shape_cast %194 : vector<1x16x8xbf16> to vector<16x8xbf16>
      %196 = vector.shape_cast %193 : vector<16x8xbf16> to vector<1x16x8xbf16>
      tpu.vector_store %arg18[%c2_104, %c0_105, %c0_106], %196 {strides = array<i32>} : memref<4x16x8xbf16, #tpu.memory_space<vmem>>, vector<1x16x8xbf16>,
      %197 = vector.extract_strided_slice %176 {offsets = [0, 48], sizes = [16, 8], strides = [1, 1]} : vector<16x64xbf16> to vector<16x8xbf16>
      %c2_107 = arith.constant 2 : index
      %c0_108 = arith.constant 0 : index
      %c0_109 = arith.constant 0 : index
      %198 = vector.load %arg19[%c2_107, %c0_108, %c0_109] : memref<4x16x8xbf16, #tpu.memory_space<vmem>>, vector<1x16x8xbf16>
      %199 = vector.shape_cast %198 : vector<1x16x8xbf16> to vector<16x8xbf16>
      %200 = vector.shape_cast %197 : vector<16x8xbf16> to vector<1x16x8xbf16>
      tpu.vector_store %arg19[%c2_107, %c0_108, %c0_109], %200 {strides = array<i32>} : memref<4x16x8xbf16, #tpu.memory_space<vmem>>, vector<1x16x8xbf16>,
      %201 = vector.extract_strided_slice %176 {offsets = [0, 24], sizes = [16, 8], strides = [1, 1]} : vector<16x64xbf16> to vector<16x8xbf16>
      %c3_110 = arith.constant 3 : index
      %c0_111 = arith.constant 0 : index
      %c0_112 = arith.constant 0 : index
      %202 = vector.load %arg18[%c3_110, %c0_111, %c0_112] : memref<4x16x8xbf16, #tpu.memory_space<vmem>>, vector<1x16x8xbf16>
      %203 = vector.shape_cast %202 : vector<1x16x8xbf16> to vector<16x8xbf16>
      %204 = vector.shape_cast %201 : vector<16x8xbf16> to vector<1x16x8xbf16>
      tpu.vector_store %arg18[%c3_110, %c0_111, %c0_112], %204 {strides = array<i32>} : memref<4x16x8xbf16, #tpu.memory_space<vmem>>, vector<1x16x8xbf16>,
      %205 = vector.extract_strided_slice %176 {offsets = [0, 56], sizes = [16, 8], strides = [1, 1]} : vector<16x64xbf16> to vector<16x8xbf16>
      %c3_113 = arith.constant 3 : index
      %c0_114 = arith.constant 0 : index
      %c0_115 = arith.constant 0 : index
      %206 = vector.load %arg19[%c3_113, %c0_114, %c0_115] : memref<4x16x8xbf16, #tpu.memory_space<vmem>>, vector<1x16x8xbf16>
      %207 = vector.shape_cast %206 : vector<1x16x8xbf16> to vector<16x8xbf16>
      %208 = vector.shape_cast %205 : vector<16x8xbf16> to vector<1x16x8xbf16>
      tpu.vector_store %arg19[%c3_113, %c0_114, %c0_115], %208 {strides = array<i32>} : memref<4x16x8xbf16, #tpu.memory_space<vmem>>, vector<1x16x8xbf16>,
    } else {
    }
    %c8_i32 = arith.constant 8 : i32
    %3 = arith.muli %arg1, %c8_i32 : i32
    %4 = tpu.assume_multiple %3, 8 : i32
    %c0 = arith.constant 0 : index
    %5 = arith.index_cast %4 : i32 to index
    %c0_1 = arith.constant 0 : index
    %6 = vector.load %arg2[%c0, %5, %c0_1] : memref<1x16x32xf32, #tpu.memory_space<vmem>>, vector<1x8x32xf32>
    %7 = vector.shape_cast %6 : vector<1x8x32xf32> to vector<8x32xf32>
    %c0_2 = arith.constant 0 : index
    %c0_3 = arith.constant 0 : index
    %8 = vector.load %arg3[%c0_2, %c0_3] : memref<1x32xf32, #tpu.memory_space<vmem>>, vector<1x32xf32>
    %c0_4 = arith.constant 0 : index
    %c0_5 = arith.constant 0 : index
    %9 = vector.load %arg4[%c0_4, %c0_5] : memref<1x32xf32, #tpu.memory_space<vmem>>, vector<1x32xf32>
    %cst = arith.constant dense<0.000000e+00> : vector<8xf32>
    %10 = vector.multi_reduction <add>, %7, %cst [1] : vector<8x32xf32> to vector<8xf32>
    %11 = vector.shape_cast %10 : vector<8xf32> to vector<8x1xf32>
    %12 = arith.mulf %7, %7 : vector<8x32xf32>
    %cst_6 = arith.constant dense<0.000000e+00> : vector<8xf32>
    %13 = vector.multi_reduction <add>, %12, %cst_6 [1] : vector<8x32xf32> to vector<8xf32>
    %14 = vector.shape_cast %13 : vector<8xf32> to vector<8x1xf32>
    %cst_7 = arith.constant 3.125000e-02 : f32
    %15 = vector.broadcast %cst_7 : f32 to vector<8x1xf32>
    %16 = arith.mulf %11, %15 : vector<8x1xf32>
    %cst_8 = arith.constant 3.125000e-02 : f32
    %17 = vector.broadcast %cst_8 : f32 to vector<8x1xf32>
    %18 = arith.mulf %14, %17 : vector<8x1xf32>
    %19 = arith.mulf %16, %16 : vector<8x1xf32>
    %20 = arith.subf %18, %19 : vector<8x1xf32>
    %21 = vector.broadcast %16 : vector<8x1xf32> to vector<8x32xf32>
    %22 = arith.subf %7, %21 : vector<8x32xf32>
    %cst_9 = arith.constant 9.99999974E-6 : f32
    %23 = vector.broadcast %cst_9 : f32 to vector<8x1xf32>
    %24 = arith.addf %20, %23 : vector<8x1xf32>
    %25 = math.rsqrt %24 : vector<8x1xf32>
    %26 = vector.broadcast %25 : vector<8x1xf32> to vector<8x32xf32>
    %27 = arith.mulf %22, %26 : vector<8x32xf32>
    %28 = vector.broadcast %8 : vector<1x32xf32> to vector<8x32xf32>
    %29 = arith.mulf %27, %28 : vector<8x32xf32>
    %30 = vector.broadcast %9 : vector<1x32xf32> to vector<8x32xf32>
    %31 = arith.addf %29, %30 : vector<8x32xf32>
    %32 = arith.truncf %31 : vector<8x32xf32> to vector<8x32xbf16>
    %c0_10 = arith.constant 0 : index
    %c0_11 = arith.constant 0 : index
    %33 = vector.load %arg5[%c0_10, %c0_11] : memref<32x32xbf16, #tpu.memory_space<vmem>>, vector<32x32xbf16>
    %cst_12 = arith.constant dense<0.000000e+00> : vector<8x32xf32>
    %34 = tpu.matmul %32, %33, %cst_12 {dimension_numbers = #tpu.dot_dimension_numbers<[1], [0], [0], [1], [0, 0, 1, 1], [], []>} : vector<8x32xbf16>, vector<32x32xbf16>, vector<8x32xf32> -> vector<8x32xf32>
    %c0_13 = arith.constant 0 : index
    %c0_14 = arith.constant 0 : index
    %35 = vector.load %arg6[%c0_13, %c0_14] : memref<1x32xf32, #tpu.memory_space<vmem>>, vector<1x32xf32>
    %36 = vector.broadcast %35 : vector<1x32xf32> to vector<8x32xf32>
    %37 = arith.addf %34, %36 : vector<8x32xf32>
    %38 = arith.truncf %37 : vector<8x32xf32> to vector<8x32xbf16>
    %39 = vector.extract_strided_slice %38 {offsets = [0, 0], sizes = [8, 8], strides = [1, 1]} : vector<8x32xbf16> to vector<8x8xbf16>
    %c0_15 = arith.constant 0 : index
    %c0_16 = arith.constant 0 : index
    %c0_17 = arith.constant 0 : index
    %40 = vector.load %arg20[%c0_15, %c0_16, %c0_17] : memref<4x8x8xbf16, #tpu.memory_space<vmem>>, vector<1x8x8xbf16>
    %41 = vector.shape_cast %40 : vector<1x8x8xbf16> to vector<8x8xbf16>
    %42 = vector.shape_cast %39 : vector<8x8xbf16> to vector<1x8x8xbf16>
    tpu.vector_store %arg20[%c0_15, %c0_16, %c0_17], %42 {strides = array<i32>} : memref<4x8x8xbf16, #tpu.memory_space<vmem>>, vector<1x8x8xbf16>,
    %43 = vector.extract_strided_slice %38 {offsets = [0, 8], sizes = [8, 8], strides = [1, 1]} : vector<8x32xbf16> to vector<8x8xbf16>
    %c1 = arith.constant 1 : index
    %c0_18 = arith.constant 0 : index
    %c0_19 = arith.constant 0 : index
    %44 = vector.load %arg20[%c1, %c0_18, %c0_19] : memref<4x8x8xbf16, #tpu.memory_space<vmem>>, vector<1x8x8xbf16>
    %45 = vector.shape_cast %44 : vector<1x8x8xbf16> to vector<8x8xbf16>
    %46 = vector.shape_cast %43 : vector<8x8xbf16> to vector<1x8x8xbf16>
    tpu.vector_store %arg20[%c1, %c0_18, %c0_19], %46 {strides = array<i32>} : memref<4x8x8xbf16, #tpu.memory_space<vmem>>, vector<1x8x8xbf16>,
    %47 = vector.extract_strided_slice %38 {offsets = [0, 16], sizes = [8, 8], strides = [1, 1]} : vector<8x32xbf16> to vector<8x8xbf16>
    %c2 = arith.constant 2 : index
    %c0_20 = arith.constant 0 : index
    %c0_21 = arith.constant 0 : index
    %48 = vector.load %arg20[%c2, %c0_20, %c0_21] : memref<4x8x8xbf16, #tpu.memory_space<vmem>>, vector<1x8x8xbf16>
    %49 = vector.shape_cast %48 : vector<1x8x8xbf16> to vector<8x8xbf16>
    %50 = vector.shape_cast %47 : vector<8x8xbf16> to vector<1x8x8xbf16>
    tpu.vector_store %arg20[%c2, %c0_20, %c0_21], %50 {strides = array<i32>} : memref<4x8x8xbf16, #tpu.memory_space<vmem>>, vector<1x8x8xbf16>,
    %51 = vector.extract_strided_slice %38 {offsets = [0, 24], sizes = [8, 8], strides = [1, 1]} : vector<8x32xbf16> to vector<8x8xbf16>
    %c3 = arith.constant 3 : index
    %c0_22 = arith.constant 0 : index
    %c0_23 = arith.constant 0 : index
    %52 = vector.load %arg20[%c3, %c0_22, %c0_23] : memref<4x8x8xbf16, #tpu.memory_space<vmem>>, vector<1x8x8xbf16>
    %53 = vector.shape_cast %52 : vector<1x8x8xbf16> to vector<8x8xbf16>
    %54 = vector.shape_cast %51 : vector<8x8xbf16> to vector<1x8x8xbf16>
    tpu.vector_store %arg20[%c3, %c0_22, %c0_23], %54 {strides = array<i32>} : memref<4x8x8xbf16, #tpu.memory_space<vmem>>, vector<1x8x8xbf16>,
    %c0_24 = arith.constant 0 : index
    %c0_25 = arith.constant 0 : index
    %c0_26 = arith.constant 0 : index
    %55 = vector.load %arg20[%c0_24, %c0_25, %c0_26] : memref<4x8x8xbf16, #tpu.memory_space<vmem>>, vector<4x8x8xbf16>
    %c0_27 = arith.constant 0 : index
    %c0_28 = arith.constant 0 : index
    %c0_29 = arith.constant 0 : index
    %56 = vector.load %arg18[%c0_27, %c0_28, %c0_29] : memref<4x16x8xbf16, #tpu.memory_space<vmem>>, vector<4x16x8xbf16>
    "tpu.trace_start"() <{level = 10 : i32, message = "hqe,hne->hqn"}> : () -> ()
    %cst_30 = arith.constant dense<0.000000e+00> : vector<4x8x16xf32>
    %57 = tpu.matmul %55, %56, %cst_30 {dimension_numbers = #tpu.dot_dimension_numbers<[2], [2], [1], [1], [0, 0, 0, 1, 1, 1], [0], [0]>} : vector<4x8x8xbf16>, vector<4x16x8xbf16>, vector<4x8x16xf32> -> vector<4x8x16xf32>
    "tpu.trace_stop"() : () -> ()
    %cst_31 = arith.constant dense<0xFF800000> : vector<4x8xf32>
    %58 = vector.multi_reduction <maximumf>, %57, %cst_31 [2] : vector<4x8x16xf32> to vector<4x8xf32>
    %59 = vector.shape_cast %58 : vector<4x8xf32> to vector<4x8x1xf32>
    %60 = vector.broadcast %59 : vector<4x8x1xf32> to vector<4x8x16xf32>
    %61 = arith.subf %57, %60 : vector<4x8x16xf32>
    %62 = math.exp %61 : vector<4x8x16xf32>
    %cst_32 = arith.constant dense<0.000000e+00> : vector<4x8xf32>
    %63 = vector.multi_reduction <add>, %62, %cst_32 [2] : vector<4x8x16xf32> to vector<4x8xf32>
    %64 = vector.shape_cast %63 : vector<4x8xf32> to vector<4x8x1xf32>
    %65 = arith.truncf %62 : vector<4x8x16xf32> to vector<4x8x16xbf16>
    %c0_33 = arith.constant 0 : index
    %c0_34 = arith.constant 0 : index
    %c0_35 = arith.constant 0 : index
    %66 = vector.load %arg19[%c0_33, %c0_34, %c0_35] : memref<4x16x8xbf16, #tpu.memory_space<vmem>>, vector<4x16x8xbf16>
    "tpu.trace_start"() <{level = 10 : i32, message = "hqn,hne->hqe"}> : () -> ()
    %cst_36 = arith.constant dense<0.000000e+00> : vector<4x8x8xf32>
    %67 = tpu.matmul %65, %66, %cst_36 {dimension_numbers = #tpu.dot_dimension_numbers<[2], [1], [1], [2], [0, 0, 0, 1, 1, 2], [0], [0]>} : vector<4x8x16xbf16>, vector<4x16x8xbf16>, vector<4x8x8xf32> -> vector<4x8x8xf32>
    "tpu.trace_stop"() : () -> ()
    %68 = tpu.reciprocal %64 {approx = true} : vector<4x8x1xf32> -> vector<4x8x1xf32>
    %69 = vector.broadcast %68 : vector<4x8x1xf32> to vector<4x8x8xf32>
    %70 = arith.mulf %67, %69 : vector<4x8x8xf32>
    %71 = arith.truncf %70 : vector<4x8x8xf32> to vector<4x8x8xbf16>
    %72 = vector.extract_strided_slice %71 {offsets = [0, 0, 0], sizes = [1, 8, 8], strides = [1, 1, 1]} : vector<4x8x8xbf16> to vector<1x8x8xbf16>
    %73 = vector.shape_cast %72 : vector<1x8x8xbf16> to vector<8x8xbf16>
    %c0_37 = arith.constant 0 : index
    %c0_38 = arith.constant 0 : index
    %74 = vector.load %arg21[%c0_37, %c0_38] : memref<8x32xbf16, #tpu.memory_space<vmem>>, vector<8x8xbf16>
    tpu.vector_store %arg21[%c0_37, %c0_38], %73 {strides = array<i32>} : memref<8x32xbf16, #tpu.memory_space<vmem>>, vector<8x8xbf16>,
    %75 = vector.extract_strided_slice %71 {offsets = [1, 0, 0], sizes = [1, 8, 8], strides = [1, 1, 1]} : vector<4x8x8xbf16> to vector<1x8x8xbf16>
    %76 = vector.shape_cast %75 : vector<1x8x8xbf16> to vector<8x8xbf16>
    %c0_39 = arith.constant 0 : index
    %c8 = arith.constant 8 : index
    %77 = vector.load %arg21[%c0_39, %c8] : memref<8x32xbf16, #tpu.memory_space<vmem>>, vector<8x8xbf16>
    tpu.vector_store %arg21[%c0_39, %c8], %76 {strides = array<i32>} : memref<8x32xbf16, #tpu.memory_space<vmem>>, vector<8x8xbf16>,
    %78 = vector.extract_strided_slice %71 {offsets = [2, 0, 0], sizes = [1, 8, 8], strides = [1, 1, 1]} : vector<4x8x8xbf16> to vector<1x8x8xbf16>
    %79 = vector.shape_cast %78 : vector<1x8x8xbf16> to vector<8x8xbf16>
    %c0_40 = arith.constant 0 : index
    %c16 = arith.constant 16 : index
    %80 = vector.load %arg21[%c0_40, %c16] : memref<8x32xbf16, #tpu.memory_space<vmem>>, vector<8x8xbf16>
    tpu.vector_store %arg21[%c0_40, %c16], %79 {strides = array<i32>} : memref<8x32xbf16, #tpu.memory_space<vmem>>, vector<8x8xbf16>,
    %81 = vector.extract_strided_slice %71 {offsets = [3, 0, 0], sizes = [1, 8, 8], strides = [1, 1, 1]} : vector<4x8x8xbf16> to vector<1x8x8xbf16>
    %82 = vector.shape_cast %81 : vector<1x8x8xbf16> to vector<8x8xbf16>
    %c0_41 = arith.constant 0 : index
    %c24 = arith.constant 24 : index
    %83 = vector.load %arg21[%c0_41, %c24] : memref<8x32xbf16, #tpu.memory_space<vmem>>, vector<8x8xbf16>
    tpu.vector_store %arg21[%c0_41, %c24], %82 {strides = array<i32>} : memref<8x32xbf16, #tpu.memory_space<vmem>>, vector<8x8xbf16>,
    %c0_42 = arith.constant 0 : index
    %c0_43 = arith.constant 0 : index
    %84 = vector.load %arg21[%c0_42, %c0_43] : memref<8x32xbf16, #tpu.memory_space<vmem>>, vector<8x32xbf16>
    %c0_44 = arith.constant 0 : index
    %c0_45 = arith.constant 0 : index
    %85 = vector.load %arg9[%c0_44, %c0_45] : memref<32x32xbf16, #tpu.memory_space<vmem>>, vector<32x32xbf16>
    %cst_46 = arith.constant dense<0.000000e+00> : vector<8x32xf32>
    %86 = tpu.matmul %84, %85, %cst_46 {dimension_numbers = #tpu.dot_dimension_numbers<[1], [0], [0], [1], [0, 0, 1, 1], [], []>} : vector<8x32xbf16>, vector<32x32xbf16>, vector<8x32xf32> -> vector<8x32xf32>
    %c0_47 = arith.constant 0 : index
    %c0_48 = arith.constant 0 : index
    %87 = vector.load %arg10[%c0_47, %c0_48] : memref<1x32xf32, #tpu.memory_space<vmem>>, vector<1x32xf32>
    %88 = vector.broadcast %87 : vector<1x32xf32> to vector<8x32xf32>
    %89 = arith.addf %86, %88 : vector<8x32xf32>
    %90 = arith.addf %7, %89 : vector<8x32xf32>
    %c0_49 = arith.constant 0 : index
    %c0_50 = arith.constant 0 : index
    %91 = vector.load %arg11[%c0_49, %c0_50] : memref<1x32xf32, #tpu.memory_space<vmem>>, vector<1x32xf32>
    %c0_51 = arith.constant 0 : index
    %c0_52 = arith.constant 0 : index
    %92 = vector.load %arg12[%c0_51, %c0_52] : memref<1x32xf32, #tpu.memory_space<vmem>>, vector<1x32xf32>
    %cst_53 = arith.constant dense<0.000000e+00> : vector<8xf32>
    %93 = vector.multi_reduction <add>, %90, %cst_53 [1] : vector<8x32xf32> to vector<8xf32>
    %94 = vector.shape_cast %93 : vector<8xf32> to vector<8x1xf32>
    %95 = arith.mulf %90, %90 : vector<8x32xf32>
    %cst_54 = arith.constant dense<0.000000e+00> : vector<8xf32>
    %96 = vector.multi_reduction <add>, %95, %cst_54 [1] : vector<8x32xf32> to vector<8xf32>
    %97 = vector.shape_cast %96 : vector<8xf32> to vector<8x1xf32>
    %cst_55 = arith.constant 3.125000e-02 : f32
    %98 = vector.broadcast %cst_55 : f32 to vector<8x1xf32>
    %99 = arith.mulf %94, %98 : vector<8x1xf32>
    %cst_56 = arith.constant 3.125000e-02 : f32
    %100 = vector.broadcast %cst_56 : f32 to vector<8x1xf32>
    %101 = arith.mulf %97, %100 : vector<8x1xf32>
    %102 = arith.mulf %99, %99 : vector<8x1xf32>
    %103 = arith.subf %101, %102 : vector<8x1xf32>
    %104 = vector.broadcast %99 : vector<8x1xf32> to vector<8x32xf32>
    %105 = arith.subf %90, %104 : vector<8x32xf32>
    %cst_57 = arith.constant 9.99999974E-6 : f32
    %106 = vector.broadcast %cst_57 : f32 to vector<8x1xf32>
    %107 = arith.addf %103, %106 : vector<8x1xf32>
    %108 = math.rsqrt %107 : vector<8x1xf32>
    %109 = vector.broadcast %108 : vector<8x1xf32> to vector<8x32xf32>
    %110 = arith.mulf %105, %109 : vector<8x32xf32>
    %111 = vector.broadcast %91 : vector<1x32xf32> to vector<8x32xf32>
    %112 = arith.mulf %110, %111 : vector<8x32xf32>
    %113 = vector.broadcast %92 : vector<1x32xf32> to vector<8x32xf32>
    %114 = arith.addf %112, %113 : vector<8x32xf32>
    %115 = arith.truncf %114 : vector<8x32xf32> to vector<8x32xbf16>
    %c0_58 = arith.constant 0 : index
    %c0_59 = arith.constant 0 : index
    %116 = vector.load %arg13[%c0_58, %c0_59] : memref<32x128xbf16, #tpu.memory_space<vmem>>, vector<32x128xbf16>
    %cst_60 = arith.constant dense<0.000000e+00> : vector<8x128xf32>
    %117 = tpu.matmul %115, %116, %cst_60 {dimension_numbers = #tpu.dot_dimension_numbers<[1], [0], [0], [1], [0, 0, 1, 1], [], []>} : vector<8x32xbf16>, vector<32x128xbf16>, vector<8x128xf32> -> vector<8x128xf32>
    %c0_61 = arith.constant 0 : index
    %c0_62 = arith.constant 0 : index
    %118 = vector.load %arg14[%c0_61, %c0_62] : memref<1x128xf32, #tpu.memory_space<vmem>>, vector<1x128xf32>
    %119 = vector.broadcast %118 : vector<1x128xf32> to vector<8x128xf32>
    %120 = arith.addf %117, %119 : vector<8x128xf32>
    %121 = arith.mulf %120, %120 : vector<8x128xf32>
    %122 = arith.mulf %120, %121 : vector<8x128xf32>
    %cst_63 = arith.constant 4.471500e-02 : f32
    %123 = vector.broadcast %cst_63 : f32 to vector<8x128xf32>
    %124 = arith.mulf %123, %122 : vector<8x128xf32>
    %125 = arith.addf %120, %124 : vector<8x128xf32>
    %cst_64 = arith.constant 0.797884583 : f32
    %126 = vector.broadcast %cst_64 : f32 to vector<8x128xf32>
    %127 = arith.mulf %126, %125 : vector<8x128xf32>
    %128 = math.tanh %127 : vector<8x128xf32>
    %cst_65 = arith.constant 1.000000e+00 : f32
    %129 = vector.broadcast %cst_65 : f32 to vector<8x128xf32>
    %130 = arith.addf %129, %128 : vector<8x128xf32>
    %cst_66 = arith.constant 5.000000e-01 : f32
    %131 = vector.broadcast %cst_66 : f32 to vector<8x128xf32>
    %132 = arith.mulf %131, %130 : vector<8x128xf32>
    %133 = arith.mulf %120, %132 : vector<8x128xf32>
    %134 = arith.truncf %133 : vector<8x128xf32> to vector<8x128xbf16>
    %c0_67 = arith.constant 0 : index
    %c0_68 = arith.constant 0 : index
    %135 = vector.load %arg15[%c0_67, %c0_68] : memref<128x32xbf16, #tpu.memory_space<vmem>>, vector<128x32xbf16>
    %cst_69 = arith.constant dense<0.000000e+00> : vector<8x32xf32>
    %136 = tpu.matmul %134, %135, %cst_69 {dimension_numbers = #tpu.dot_dimension_numbers<[1], [0], [0], [1], [0, 0, 1, 1], [], []>} : vector<8x128xbf16>, vector<128x32xbf16>, vector<8x32xf32> -> vector<8x32xf32>
    %c0_70 = arith.constant 0 : index
    %c0_71 = arith.constant 0 : index
    %137 = vector.load %arg16[%c0_70, %c0_71] : memref<1x32xf32, #tpu.memory_space<vmem>>, vector<1x32xf32>
    %138 = vector.broadcast %137 : vector<1x32xf32> to vector<8x32xf32>
    %139 = arith.addf %136, %138 : vector<8x32xf32>
    %140 = arith.addf %90, %139 : vector<8x32xf32>
    %c0_72 = arith.constant 0 : index
    %c0_73 = arith.constant 0 : index
    %c0_74 = arith.constant 0 : index
    %141 = vector.load %arg17[%c0_72, %c0_73, %c0_74] : memref<1x8x32xf32, #tpu.memory_space<vmem>>, vector<1x8x32xf32>
    %142 = vector.shape_cast %141 : vector<1x8x32xf32> to vector<8x32xf32>
    %143 = vector.shape_cast %140 : vector<8x32xf32> to vector<1x8x32xf32>
    tpu.vector_store %arg17[%c0_72, %c0_73, %c0_74], %143 {strides = array<i32>} : memref<1x8x32xf32, #tpu.memory_space<vmem>>, vector<1x8x32xf32>,
    return
  }
  func.func @transform_0(%arg0: i32, %arg1: i32) -> (i32, i32, i32) {
    %c0_i32 = arith.constant 0 : i32
    %c0_i32_0 = arith.constant 0 : i32
    %c0_i32_1 = arith.constant 0 : i32
    return %arg0, %c0_i32, %c0_i32_0 : i32, i32, i32
  }
  func.func @transform_1(%arg0: i32, %arg1: i32) -> (i32, i32) {
    %c0_i32 = arith.constant 0 : i32
    %c0_i32_0 = arith.constant 0 : i32
    %c0_i32_1 = arith.constant 0 : i32
    return %c0_i32, %c0_i32_0 : i32, i32
  }
  func.func @transform_2(%arg0: i32, %arg1: i32) -> (i32, i32) {
    %c0_i32 = arith.constant 0 : i32
    %c0_i32_0 = arith.constant 0 : i32
    %c0_i32_1 = arith.constant 0 : i32
    return %c0_i32, %c0_i32_0 : i32, i32
  }
  func.func @transform_3(%arg0: i32, %arg1: i32) -> (i32, i32) {
    %c0_i32 = arith.constant 0 : i32
    %c0_i32_0 = arith.constant 0 : i32
    %c0_i32_1 = arith.constant 0 : i32
    return %c0_i32, %c0_i32_0 : i32, i32
  }
  func.func @transform_4(%arg0: i32, %arg1: i32) -> (i32, i32) {
    %c0_i32 = arith.constant 0 : i32
    %c0_i32_0 = arith.constant 0 : i32
    %c0_i32_1 = arith.constant 0 : i32
    return %c0_i32, %c0_i32_0 : i32, i32
  }
  func.func @transform_5(%arg0: i32, %arg1: i32) -> (i32, i32) {
    %c0_i32 = arith.constant 0 : i32
    %c0_i32_0 = arith.constant 0 : i32
    %c0_i32_1 = arith.constant 0 : i32
    return %c0_i32, %c0_i32_0 : i32, i32
  }
  func.func @transform_6(%arg0: i32, %arg1: i32) -> (i32, i32) {
    %c0_i32 = arith.constant 0 : i32
    %c0_i32_0 = arith.constant 0 : i32
    %c0_i32_1 = arith.constant 0 : i32
    return %c0_i32, %c0_i32_0 : i32, i32
  }
  func.func @transform_7(%arg0: i32, %arg1: i32) -> (i32, i32) {
    %c0_i32 = arith.constant 0 : i32
    %c0_i32_0 = arith.constant 0 : i32
    %c0_i32_1 = arith.constant 0 : i32
    return %c0_i32, %c0_i32_0 : i32, i32
  }
  func.func @transform_8(%arg0: i32, %arg1: i32) -> (i32, i32) {
    %c0_i32 = arith.constant 0 : i32
    %c0_i32_0 = arith.constant 0 : i32
    %c0_i32_1 = arith.constant 0 : i32
    return %c0_i32, %c0_i32_0 : i32, i32
  }
  func.func @transform_9(%arg0: i32, %arg1: i32) -> (i32, i32) {
    %c0_i32 = arith.constant 0 : i32
    %c0_i32_0 = arith.constant 0 : i32
    %c0_i32_1 = arith.constant 0 : i32
    return %c0_i32, %c0_i32_0 : i32, i32
  }
  func.func @transform_10(%arg0: i32, %arg1: i32) -> (i32, i32) {
    %c0_i32 = arith.constant 0 : i32
    %c0_i32_0 = arith.constant 0 : i32
    %c0_i32_1 = arith.constant 0 : i32
    return %c0_i32, %c0_i32_0 : i32, i32
  }
  func.func @transform_11(%arg0: i32, %arg1: i32) -> (i32, i32) {
    %c0_i32 = arith.constant 0 : i32
    %c0_i32_0 = arith.constant 0 : i32
    %c0_i32_1 = arith.constant 0 : i32
    return %c0_i32, %c0_i32_0 : i32, i32
  }
  func.func @transform_12(%arg0: i32, %arg1: i32) -> (i32, i32) {
    %c0_i32 = arith.constant 0 : i32
    %c0_i32_0 = arith.constant 0 : i32
    %c0_i32_1 = arith.constant 0 : i32
    return %c0_i32, %c0_i32_0 : i32, i32
  }
  func.func @transform_13(%arg0: i32, %arg1: i32) -> (i32, i32) {
    %c0_i32 = arith.constant 0 : i32
    %c0_i32_0 = arith.constant 0 : i32
    %c0_i32_1 = arith.constant 0 : i32
    return %c0_i32, %c0_i32_0 : i32, i32
  }
  func.func @transform_14(%arg0: i32, %arg1: i32) -> (i32, i32) {
    %c0_i32 = arith.constant 0 : i32
    %c0_i32_0 = arith.constant 0 : i32
    %c0_i32_1 = arith.constant 0 : i32
    return %c0_i32, %c0_i32_0 : i32, i32
  }
  func.func @transform_15(%arg0: i32, %arg1: i32) -> (i32, i32, i32) {
    %c0_i32 = arith.constant 0 : i32
    %c0_i32_0 = arith.constant 0 : i32
    return %arg0, %arg1, %c0_i32 : i32, i32, i32
  }
}

</mosaic_0001>

<llo_original>
// kernel: tpu_custom_call.1
$region0: #{tpu_custom_call.1}
  #allocation0 [shape = 'u32[]', space=smem, size = 0x4, offset = 0x4, fixed_abs, tag = 'smem constant byte address 0x4 - core index']
  #allocation1 [shape = 'u32[72,128]{1,0:T(1,128)}', space=vmem, size = 0x9000, scoped, tag = 'internal scratch']
  #allocation2 [shape = 'bf16[4,16,8]{2,1,0:T(8,128)(2,1)}', space=vmem, size = 0x4000, scoped, tag = 'scratch operand']
  #allocation3 [shape = 'bf16[4,16,8]{2,1,0:T(8,128)(2,1)}', space=vmem, size = 0x4000, scoped, tag = 'scratch operand']
  #allocation4 [shape = 'bf16[4,8,8]{2,1,0:T(8,128)(2,1)}', space=vmem, size = 0x2000, scoped, tag = 'scratch operand']
  #allocation5 [shape = 'bf16[8,32]{1,0:T(8,128)(2,1)}', space=vmem, size = 0x800, scoped, tag = 'scratch operand']
  %s0 = inlined_call_operand.vmem [shape: f32[2,16,32], index: 0, kind: input, shape index: {}]
  %s1 = inlined_call_operand.hbm [shape: f32[1,32], index: 1, kind: input, shape index: {}]
  %s2 = inlined_call_operand.vmem [shape: f32[1,32], index: 2, kind: input, shape index: {}]
  %s3 = inlined_call_operand.vmem [shape: bf16[32,32], index: 3, kind: input, shape index: {}]
  %s4 = inlined_call_operand.vmem [shape: f32[1,32], index: 4, kind: input, shape index: {}]
  %s5 = inlined_call_operand.vmem [shape: bf16[32,64], index: 5, kind: input, shape index: {}]
  %s6 = inlined_call_operand.vmem [shape: f32[1,64], index: 6, kind: input, shape index: {}]
  %s7 = inlined_call_operand.vmem [shape: bf16[32,32], index: 7, kind: input, shape index: {}]
  %s8 = inlined_call_operand.vmem [shape: f32[1,32], index: 8, kind: input, shape index: {}]
  %s9 = inlined_call_operand.vmem [shape: f32[1,32], index: 9, kind: input, shape index: {}]
  %s10 = inlined_call_operand.vmem [shape: f32[1,32], index: 10, kind: input, shape index: {}]
  %s11 = inlined_call_operand.hbm [shape: bf16[32,128], index: 11, kind: input, shape index: {}]
  %s12 = inlined_call_operand.vmem [shape: f32[1,128], index: 12, kind: input, shape index: {}]
  %s13 = inlined_call_operand.vmem [shape: bf16[128,32], index: 13, kind: input, shape index: {}]
  %s14 = inlined_call_operand.vmem [shape: f32[1,32], index: 14, kind: input, shape index: {}]
  %s15 = inlined_call_operand.hbm [shape: f32[2,16,32], index: 15, kind: output, shape index: {}]
  %s16 = sld [smem:[#allocation0]]
  $region105: #{tpu_custom_call.1} parent=0
    _
  %s18 = ssub.s32 1, %s16
  %s19 = scalar_select 0, %s18, %s16
  $region1: #{tpu_custom_call.1} parent=0
    #allocation6 [shape = 'u8[512]{0}', space=vmem, size = 0x400, scoped, tag = 'input window, operand 1, single buffered']
    #allocation7 [shape = 's32[2]{0}', space=sflag, size = 0x8, scoped, tag = 'scoped memory for tpu_custom_call.1']
    #allocation8 [shape = 's32[2]{0}', space=sflag, size = 0x8, scoped, tag = 'scoped memory for tpu_custom_call.1']
    #allocation9 [shape = 'u8[8192]{0}', space=vmem, size = 0x2000, scoped, tag = 'input window, operand 11, single buffered']
    #allocation10 [shape = 's32[1]{0}', space=sflag, size = 0x4, scoped, tag = 'scoped memory for tpu_custom_call.1']
    #allocation11 [shape = 'u8[8192]{0}', space=vmem, size = 0x2000, scoped, tag = 'output window, operand 0']
    %20 = vsyncpa [#allocation7], 0
    %21 = vsyncpa [#allocation10], 0
    %22 = vsyncpa [#allocation8], 0
    %s23 = scalar_lea.sflag [#allocation8], 1
    %24 = vsyncpa %s23, 0
    loop: start=0, step=1, limit=6
    $region2: #{tpu_custom_call.1} parent=1 // loop_pre_header
      _
    $region3: #{tpu_custom_call.1} parent=1 // loop_header
      %s26 = sphi 0, %s30
      %p27 = scmp.ge.s32.totalorder %s26, 6
      %s33 = sphi 0, %s45
      %s34 = sphi 0, %s41
      %s35 = sphi 0, %s33
      %s36 = sphi 0, %s34
      %s37 = sphi 0, %s35
      %s38 = sphi 0, %s36
      %s48 = sphi 0, %s50
      %s51 = sphi 0, %s48
      %s52 = sphi 0, %s51
      %s68 = sphi 0, %s52
      %s72 = sphi 0, %s72
      %s74 = sphi 0, %s72
      %s75 = sphi 0, %s74
      %s89 = sphi 0, %s75
      %s93 = sphi 0, %s93
      %s95 = sphi 0, %s93
      %s96 = sphi 0, %s95
      %s110 = sphi 0, %s96
      %s114 = sphi 0, %s114
      %s116 = sphi 0, %s114
      %s117 = sphi 0, %s116
      %s131 = sphi 0, %s117
      %s135 = sphi 0, %s135
      %s137 = sphi 0, %s135
      %s138 = sphi 0, %s137
      %s152 = sphi 0, %s138
      %s156 = sphi 0, %s156
      %s158 = sphi 0, %s156
      %s159 = sphi 0, %s158
      %s173 = sphi 0, %s159
      %s177 = sphi 0, %s177
      %s179 = sphi 0, %s177
      %s180 = sphi 0, %s179
      %s194 = sphi 0, %s180
      %s198 = sphi 0, %s198
      %s200 = sphi 0, %s198
      %s201 = sphi 0, %s200
      %s215 = sphi 0, %s201
      %s219 = sphi 0, %s219
      %s221 = sphi 0, %s219
      %s222 = sphi 0, %s221
      %s236 = sphi 0, %s222
      %s240 = sphi 0, %s240
      %s242 = sphi 0, %s240
      %s243 = sphi 0, %s242
      %s257 = sphi 0, %s243
      %s261 = sphi 0, %s261
      %s263 = sphi 0, %s261
      %s264 = sphi 0, %s263
      %s278 = sphi 0, %s264
      %s282 = sphi 0, %s282
      %s284 = sphi 0, %s282
      %s285 = sphi 0, %s284
      %s299 = sphi 0, %s285
      %s303 = sphi 0, %s303
      %s305 = sphi 0, %s303
      %s306 = sphi 0, %s305
      %s320 = sphi 0, %s306
      %s324 = sphi 0, %s324
      %s326 = sphi 0, %s324
      %s327 = sphi 0, %s326
      %s341 = sphi 0, %s327
      %s345 = sphi 0, %s345
      %s347 = sphi 0, %s345
      %s348 = sphi 0, %s347
      %s362 = sphi 0, %s348
      %s370 = sphi 0, %s372
      %s373 = sphi 0, %s370
      %s374 = sphi 0, %s373
      %s390 = sphi 0, %s374
    $region4: #{tpu_custom_call.1} parent=1 // loop_header_branch
      %29 = sbr.rel (%p27) target = $region8
    $region5: #{tpu_custom_call.1} parent=1 // loop_body
      %s31 = ssub.s32 %s26, 1
      %s32 = ssub.s32 %s26, 2
      %s39 = sadd.s32 1, %s34
      %p40 = scmp.ge.s32.totalorder %s39, 2
      %s41 = scalar_select %p40, 0, %s39
      %s42 = sadd.s32 1, %s33
      %s43 = scalar_select %p40, %s42, %s33
      %p44 = scmp.ge.s32.totalorder %s43, 2
      %s45 = scalar_select %p44, 0, %s43
      %s46 = ssub.s32 %s33, %s45
      %p47 = scmp.eq.s32.totalorder %s46, 0
      %s49 = sadd.s32 %s48, 1
      %s50 = scalar_select %p47, %s48, %s49
      %p53 = pneg %p47
      %p54 = scmp.eq.s32.totalorder %s26, 3
      %p55 = por %p53, %p54
      %p56 = scmp.ne.s32.totalorder %s48, %s51
      %p57 = scmp.eq.s32.totalorder %s26, 0
      %p58 = por %p56, %p57
      %p59 = scmp.ne.s32.totalorder %s48, %s51
      %p60 = scmp.eq.s32.totalorder %s31, 3
      %p61 = por %p59, %p60
      %p62 = scmp.ne.s32.totalorder %s51, %s52
      %p63 = scmp.eq.s32.totalorder %s31, 0
      %p64 = por %p62, %p63
      %p65 = scmp.ne.s32.totalorder %s51, %s52
      %p66 = scmp.eq.s32.totalorder %s32, 3
      %p67 = por %p65, %p66
      %p69 = scmp.ne.s32.totalorder %s52, %s68
      %p70 = scmp.eq.s32.totalorder %s32, 0
      %p71 = por %p69, %p70
      %s73 = sadd.s32 %s72, 1
      %p76 = scmp.eq.s32.totalorder %s26, 3
      %p77 = scmp.ne.s32.totalorder %s72, %s74
      %p78 = scmp.eq.s32.totalorder %s26, 0
      %p79 = por %p77, %p78
      %p80 = scmp.ne.s32.totalorder %s72, %s74
      %p81 = scmp.eq.s32.totalorder %s31, 3
      %p82 = por %p80, %p81
      %p83 = scmp.ne.s32.totalorder %s74, %s75
      %p84 = scmp.eq.s32.totalorder %s31, 0
      %p85 = por %p83, %p84
      %p86 = scmp.ne.s32.totalorder %s74, %s75
      %p87 = scmp.eq.s32.totalorder %s32, 3
      %p88 = por %p86, %p87
      %p90 = scmp.ne.s32.totalorder %s75, %s89
      %p91 = scmp.eq.s32.totalorder %s32, 0
      %p92 = por %p90, %p91
      %s94 = sadd.s32 %s93, 1
      %p97 = scmp.eq.s32.totalorder %s26, 3
      %p98 = scmp.ne.s32.totalorder %s93, %s95
      %p99 = scmp.eq.s32.totalorder %s26, 0
      %p100 = por %p98, %p99
      %p101 = scmp.ne.s32.totalorder %s93, %s95
      %p102 = scmp.eq.s32.totalorder %s31, 3
      %p103 = por %p101, %p102
      %p104 = scmp.ne.s32.totalorder %s95, %s96
      %p105 = scmp.eq.s32.totalorder %s31, 0
      %p106 = por %p104, %p105
      %p107 = scmp.ne.s32.totalorder %s95, %s96
      %p108 = scmp.eq.s32.totalorder %s32, 3
      %p109 = por %p107, %p108
      %p111 = scmp.ne.s32.totalorder %s96, %s110
      %p112 = scmp.eq.s32.totalorder %s32, 0
      %p113 = por %p111, %p112
      %s115 = sadd.s32 %s114, 1
      %p118 = scmp.eq.s32.totalorder %s26, 3
      %p119 = scmp.ne.s32.totalorder %s114, %s116
      %p120 = scmp.eq.s32.totalorder %s26, 0
      %p121 = por %p119, %p120
      %p122 = scmp.ne.s32.totalorder %s114, %s116
      %p123 = scmp.eq.s32.totalorder %s31, 3
      %p124 = por %p122, %p123
      %p125 = scmp.ne.s32.totalorder %s116, %s117
      %p126 = scmp.eq.s32.totalorder %s31, 0
      %p127 = por %p125, %p126
      %p128 = scmp.ne.s32.totalorder %s116, %s117
      %p129 = scmp.eq.s32.totalorder %s32, 3
      %p130 = por %p128, %p129
      %p132 = scmp.ne.s32.totalorder %s117, %s131
      %p133 = scmp.eq.s32.totalorder %s32, 0
      %p134 = por %p132, %p133
      %s136 = sadd.s32 %s135, 1
      %p139 = scmp.eq.s32.totalorder %s26, 3
      %p140 = scmp.ne.s32.totalorder %s135, %s137
      %p141 = scmp.eq.s32.totalorder %s26, 0
      %p142 = por %p140, %p141
      %p143 = scmp.ne.s32.totalorder %s135, %s137
      %p144 = scmp.eq.s32.totalorder %s31, 3
      %p145 = por %p143, %p144
      %p146 = scmp.ne.s32.totalorder %s137, %s138
      %p147 = scmp.eq.s32.totalorder %s31, 0
      %p148 = por %p146, %p147
      %p149 = scmp.ne.s32.totalorder %s137, %s138
      %p150 = scmp.eq.s32.totalorder %s32, 3
      %p151 = por %p149, %p150
      %p153 = scmp.ne.s32.totalorder %s138, %s152
      %p154 = scmp.eq.s32.totalorder %s32, 0
      %p155 = por %p153, %p154
      %s157 = sadd.s32 %s156, 1
      %p160 = scmp.eq.s32.totalorder %s26, 3
      %p161 = scmp.ne.s32.totalorder %s156, %s158
      %p162 = scmp.eq.s32.totalorder %s26, 0
      %p163 = por %p161, %p162
      %p164 = scmp.ne.s32.totalorder %s156, %s158
      %p165 = scmp.eq.s32.totalorder %s31, 3
      %p166 = por %p164, %p165
      %p167 = scmp.ne.s32.totalorder %s158, %s159
      %p168 = scmp.eq.s32.totalorder %s31, 0
      %p169 = por %p167, %p168
      %p170 = scmp.ne.s32.totalorder %s158, %s159
      %p171 = scmp.eq.s32.totalorder %s32, 3
      %p172 = por %p170, %p171
      %p174 = scmp.ne.s32.totalorder %s159, %s173
      %p175 = scmp.eq.s32.totalorder %s32, 0
      %p176 = por %p174, %p175
      %s178 = sadd.s32 %s177, 1
      %p181 = scmp.eq.s32.totalorder %s26, 3
      %p182 = scmp.ne.s32.totalorder %s177, %s179
      %p183 = scmp.eq.s32.totalorder %s26, 0
      %p184 = por %p182, %p183
      %p185 = scmp.ne.s32.totalorder %s177, %s179
      %p186 = scmp.eq.s32.totalorder %s31, 3
      %p187 = por %p185, %p186
      %p188 = scmp.ne.s32.totalorder %s179, %s180
      %p189 = scmp.eq.s32.totalorder %s31, 0
      %p190 = por %p188, %p189
      %p191 = scmp.ne.s32.totalorder %s179, %s180
      %p192 = scmp.eq.s32.totalorder %s32, 3
      %p193 = por %p191, %p192
      %p195 = scmp.ne.s32.totalorder %s180, %s194
      %p196 = scmp.eq.s32.totalorder %s32, 0
      %p197 = por %p195, %p196
      %s199 = sadd.s32 %s198, 1
      %p202 = scmp.eq.s32.totalorder %s26, 3
      %p203 = scmp.ne.s32.totalorder %s198, %s200
      %p204 = scmp.eq.s32.totalorder %s26, 0
      %p205 = por %p203, %p204
      %p206 = scmp.ne.s32.totalorder %s198, %s200
      %p207 = scmp.eq.s32.totalorder %s31, 3
      %p208 = por %p206, %p207
      %p209 = scmp.ne.s32.totalorder %s200, %s201
      %p210 = scmp.eq.s32.totalorder %s31, 0
      %p211 = por %p209, %p210
      %p212 = scmp.ne.s32.totalorder %s200, %s201
      %p213 = scmp.eq.s32.totalorder %s32, 3
      %p214 = por %p212, %p213
      %p216 = scmp.ne.s32.totalorder %s201, %s215
      %p217 = scmp.eq.s32.totalorder %s32, 0
      %p218 = por %p216, %p217
      %s220 = sadd.s32 %s219, 1
      %p223 = scmp.eq.s32.totalorder %s26, 3
      %p224 = scmp.ne.s32.totalorder %s219, %s221
      %p225 = scmp.eq.s32.totalorder %s26, 0
      %p226 = por %p224, %p225
      %p227 = scmp.ne.s32.totalorder %s219, %s221
      %p228 = scmp.eq.s32.totalorder %s31, 3
      %p229 = por %p227, %p228
      %p230 = scmp.ne.s32.totalorder %s221, %s222
      %p231 = scmp.eq.s32.totalorder %s31, 0
      %p232 = por %p230, %p231
      %p233 = scmp.ne.s32.totalorder %s221, %s222
      %p234 = scmp.eq.s32.totalorder %s32, 3
      %p235 = por %p233, %p234
      %p237 = scmp.ne.s32.totalorder %s222, %s236
      %p238 = scmp.eq.s32.totalorder %s32, 0
      %p239 = por %p237, %p238
      %s241 = sadd.s32 %s240, 1
      %p244 = scmp.eq.s32.totalorder %s26, 3
      %p245 = scmp.ne.s32.totalorder %s240, %s242
      %p246 = scmp.eq.s32.totalorder %s26, 0
      %p247 = por %p245, %p246
      %p248 = scmp.ne.s32.totalorder %s240, %s242
      %p249 = scmp.eq.s32.totalorder %s31, 3
      %p250 = por %p248, %p249
      %p251 = scmp.ne.s32.totalorder %s242, %s243
      %p252 = scmp.eq.s32.totalorder %s31, 0
      %p253 = por %p251, %p252
      %p254 = scmp.ne.s32.totalorder %s242, %s243
      %p255 = scmp.eq.s32.totalorder %s32, 3
      %p256 = por %p254, %p255
      %p258 = scmp.ne.s32.totalorder %s243, %s257
      %p259 = scmp.eq.s32.totalorder %s32, 0
      %p260 = por %p258, %p259
      %s262 = sadd.s32 %s261, 1
      %p265 = scmp.eq.s32.totalorder %s26, 3
      %p266 = scmp.ne.s32.totalorder %s261, %s263
      %p267 = scmp.eq.s32.totalorder %s26, 0
      %p268 = por %p266, %p267
      %p269 = scmp.ne.s32.totalorder %s261, %s263
      %p270 = scmp.eq.s32.totalorder %s31, 3
      %p271 = por %p269, %p270
      %p272 = scmp.ne.s32.totalorder %s263, %s264
      %p273 = scmp.eq.s32.totalorder %s31, 0
      %p274 = por %p272, %p273
      %p275 = scmp.ne.s32.totalorder %s263, %s264
      %p276 = scmp.eq.s32.totalorder %s32, 3
      %p277 = por %p275, %p276
      %p279 = scmp.ne.s32.totalorder %s264, %s278
      %p280 = scmp.eq.s32.totalorder %s32, 0
      %p281 = por %p279, %p280
      %s283 = sadd.s32 %s282, 1
      %p286 = scmp.eq.s32.totalorder %s26, 3
      %p287 = scmp.ne.s32.totalorder %s282, %s284
      %p288 = scmp.eq.s32.totalorder %s26, 0
      %p289 = por %p287, %p288
      %p290 = scmp.ne.s32.totalorder %s282, %s284
      %p291 = scmp.eq.s32.totalorder %s31, 3
      %p292 = por %p290, %p291
      %p293 = scmp.ne.s32.totalorder %s284, %s285
      %p294 = scmp.eq.s32.totalorder %s31, 0
      %p295 = por %p293, %p294
      %p296 = scmp.ne.s32.totalorder %s284, %s285
      %p297 = scmp.eq.s32.totalorder %s32, 3
      %p298 = por %p296, %p297
      %p300 = scmp.ne.s32.totalorder %s285, %s299
      %p301 = scmp.eq.s32.totalorder %s32, 0
      %p302 = por %p300, %p301
      %s304 = sadd.s32 %s303, 1
      %p307 = scmp.eq.s32.totalorder %s26, 3
      %p308 = scmp.ne.s32.totalorder %s303, %s305
      %p309 = scmp.eq.s32.totalorder %s26, 0
      %p310 = por %p308, %p309
      %p311 = scmp.ne.s32.totalorder %s303, %s305
      %p312 = scmp.eq.s32.totalorder %s31, 3
      %p313 = por %p311, %p312
      %p314 = scmp.ne.s32.totalorder %s305, %s306
      %p315 = scmp.eq.s32.totalorder %s31, 0
      %p316 = por %p314, %p315
      %p317 = scmp.ne.s32.totalorder %s305, %s306
      %p318 = scmp.eq.s32.totalorder %s32, 3
      %p319 = por %p317, %p318
      %p321 = scmp.ne.s32.totalorder %s306, %s320
      %p322 = scmp.eq.s32.totalorder %s32, 0
      %p323 = por %p321, %p322
      %s325 = sadd.s32 %s324, 1
      %p328 = scmp.eq.s32.totalorder %s26, 3
      %p329 = scmp.ne.s32.totalorder %s324, %s326
      %p330 = scmp.eq.s32.totalorder %s26, 0
      %p331 = por %p329, %p330
      %p332 = scmp.ne.s32.totalorder %s324, %s326
      %p333 = scmp.eq.s32.totalorder %s31, 3
      %p334 = por %p332, %p333
      %p335 = scmp.ne.s32.totalorder %s326, %s327
      %p336 = scmp.eq.s32.totalorder %s31, 0
      %p337 = por %p335, %p336
      %p338 = scmp.ne.s32.totalorder %s326, %s327
      %p339 = scmp.eq.s32.totalorder %s32, 3
      %p340 = por %p338, %p339
      %p342 = scmp.ne.s32.totalorder %s327, %s341
      %p343 = scmp.eq.s32.totalorder %s32, 0
      %p344 = por %p342, %p343
      %s346 = sadd.s32 %s345, 1
      %p349 = scmp.eq.s32.totalorder %s26, 3
      %p350 = scmp.ne.s32.totalorder %s345, %s347
      %p351 = scmp.eq.s32.totalorder %s26, 0
      %p352 = por %p350, %p351
      %p353 = scmp.ne.s32.totalorder %s345, %s347
      %p354 = scmp.eq.s32.totalorder %s31, 3
      %p355 = por %p353, %p354
      %p356 = scmp.ne.s32.totalorder %s347, %s348
      %p357 = scmp.eq.s32.totalorder %s31, 0
      %p358 = por %p356, %p357
      %p359 = scmp.ne.s32.totalorder %s347, %s348
      %p360 = scmp.eq.s32.totalorder %s32, 3
      %p361 = por %p359, %p360
      %p363 = scmp.ne.s32.totalorder %s348, %s362
      %p364 = scmp.eq.s32.totalorder %s32, 0
      %p365 = por %p363, %p364
      %s366 = ssub.s32 %s33, %s45
      %s367 = ssub.s32 %s34, %s41
      %s368 = sor.u32 %s366, %s367
      %p369 = scmp.eq.s32.totalorder %s368, 0
      %s371 = sadd.s32 %s370, 1
      %s372 = scalar_select %p369, %s370, %s371
      %p375 = pneg %p369
      %p376 = scmp.eq.s32.totalorder %s26, 3
      %p377 = por %p375, %p376
      %p378 = scmp.ne.s32.totalorder %s370, %s373
      %p379 = scmp.eq.s32.totalorder %s26, 0
      %p380 = por %p378, %p379
      %p381 = scmp.ne.s32.totalorder %s370, %s373
      %p382 = scmp.eq.s32.totalorder %s31, 3
      %p383 = por %p381, %p382
      %p384 = scmp.ne.s32.totalorder %s373, %s374
      %p385 = scmp.eq.s32.totalorder %s31, 0
      %p386 = por %p384, %p385
      %p387 = scmp.ne.s32.totalorder %s373, %s374
      %p388 = scmp.eq.s32.totalorder %s32, 3
      %p389 = por %p387, %p388
      %p391 = scmp.ne.s32.totalorder %s374, %s390
      %p392 = scmp.eq.s32.totalorder %s32, 0
      %p393 = por %p391, %p392
      %p394 = scmp.le.s32.totalorder 1, %s26
      %p395 = scmp.lt.s32.totalorder %s26, 5
      %p396 = pnand %p394, %p395
      %p397 = pneg %p396
      // Predicated region
      $region9: #{tpu_custom_call.1} parent=5 // pred_check
        _
      $region10: #{tpu_custom_call.1} parent=5 // pred_check_branch
        %399 = sbr.rel (%p396) target = $region12
      $region11: #{tpu_custom_call.1} parent=5 // pred_region
        %s400 = ssub.s32 %s26, 1
        // Predicated region
        $region13: #{tpu_custom_call.1} parent=11 // pred_check
          %p401 = pneg %p85
        $region14: #{tpu_custom_call.1} parent=11 // pred_check_branch
          %403 = sbr.rel (%p401) target = $region16
        $region15: #{tpu_custom_call.1} parent=11 // pred_region
          %405 = vsyncadd [#allocation7], 0
          %s407 = sshll.u32 %s1, 4
          %s408 = int_to_ptr.hbm [resolvable:$true] %s407
          %s409 = sshll.u32 [#allocation6], 4
          %s410 = int_to_ptr.vmem [resolvable:$true] %s409
          %412 = dma.hbm_to_vmem [thread:$0]  %s408, 16, %s410, [#allocation7]
        $region16: #{tpu_custom_call.1} parent=11 // pred_fallthru
          _
        // Predicated region
        $region17: #{tpu_custom_call.1} parent=11 // pred_check
          %p413 = pneg %p106
        $region18: #{tpu_custom_call.1} parent=11 // pred_check_branch
          %415 = sbr.rel (%p413) target = $region20
        $region19: #{tpu_custom_call.1} parent=11 // pred_region
          _
        $region20: #{tpu_custom_call.1} parent=11 // pred_fallthru
          _
        // Predicated region
        $region21: #{tpu_custom_call.1} parent=11 // pred_check
          %p416 = pneg %p127
        $region22: #{tpu_custom_call.1} parent=11 // pred_check_branch
          %418 = sbr.rel (%p416) target = $region24
        $region23: #{tpu_custom_call.1} parent=11 // pred_region
          _
        $region24: #{tpu_custom_call.1} parent=11 // pred_fallthru
          _
        // Predicated region
        $region25: #{tpu_custom_call.1} parent=11 // pred_check
          %p419 = pneg %p148
        $region26: #{tpu_custom_call.1} parent=11 // pred_check_branch
          %421 = sbr.rel (%p419) target = $region28
        $region27: #{tpu_custom_call.1} parent=11 // pred_region
          _
        $region28: #{tpu_custom_call.1} parent=11 // pred_fallthru
          _
        // Predicated region
        $region29: #{tpu_custom_call.1} parent=11 // pred_check
          %p422 = pneg %p169
        $region30: #{tpu_custom_call.1} parent=11 // pred_check_branch
          %424 = sbr.rel (%p422) target = $region32
        $region31: #{tpu_custom_call.1} parent=11 // pred_region
          _
        $region32: #{tpu_custom_call.1} parent=11 // pred_fallthru
          _
        // Predicated region
        $region33: #{tpu_custom_call.1} parent=11 // pred_check
          %p425 = pneg %p190
        $region34: #{tpu_custom_call.1} parent=11 // pred_check_branch
          %427 = sbr.rel (%p425) target = $region36
        $region35: #{tpu_custom_call.1} parent=11 // pred_region
          _
        $region36: #{tpu_custom_call.1} parent=11 // pred_fallthru
          _
        // Predicated region
        $region37: #{tpu_custom_call.1} parent=11 // pred_check
          %p428 = pneg %p211
        $region38: #{tpu_custom_call.1} parent=11 // pred_check_branch
          %430 = sbr.rel (%p428) target = $region40
        $region39: #{tpu_custom_call.1} parent=11 // pred_region
          _
        $region40: #{tpu_custom_call.1} parent=11 // pred_fallthru
          _
        // Predicated region
        $region41: #{tpu_custom_call.1} parent=11 // pred_check
          %p431 = pneg %p232
        $region42: #{tpu_custom_call.1} parent=11 // pred_check_branch
          %433 = sbr.rel (%p431) target = $region44
        $region43: #{tpu_custom_call.1} parent=11 // pred_region
          _
        $region44: #{tpu_custom_call.1} parent=11 // pred_fallthru
          _
        // Predicated region
        $region45: #{tpu_custom_call.1} parent=11 // pred_check
          %p434 = pneg %p253
        $region46: #{tpu_custom_call.1} parent=11 // pred_check_branch
          %436 = sbr.rel (%p434) target = $region48
        $region47: #{tpu_custom_call.1} parent=11 // pred_region
          _
        $region48: #{tpu_custom_call.1} parent=11 // pred_fallthru
          _
        // Predicated region
        $region49: #{tpu_custom_call.1} parent=11 // pred_check
          %p437 = pneg %p274
        $region50: #{tpu_custom_call.1} parent=11 // pred_check_branch
          %439 = sbr.rel (%p437) target = $region52
        $region51: #{tpu_custom_call.1} parent=11 // pred_region
          _
        $region52: #{tpu_custom_call.1} parent=11 // pred_fallthru
          _
        // Predicated region
        $region53: #{tpu_custom_call.1} parent=11 // pred_check
          %p440 = pneg %p295
        $region54: #{tpu_custom_call.1} parent=11 // pred_check_branch
          %442 = sbr.rel (%p440) target = $region56
        $region55: #{tpu_custom_call.1} parent=11 // pred_region
          %444 = vsyncadd [#allocation10], 0
          %s445 = sshll.u32 %s11, 4
          %s446 = int_to_ptr.hbm [resolvable:$true] %s445
          %s447 = sshll.u32 [#allocation9], 4
          %s448 = int_to_ptr.vmem [resolvable:$true] %s447
          %453 = dma.hbm_to_vmem [thread:$0]  %s446, 256, %s448, [#allocation10], 64, 64, 4
        $region56: #{tpu_custom_call.1} parent=11 // pred_fallthru
          _
        // Predicated region
        $region57: #{tpu_custom_call.1} parent=11 // pred_check
          %p454 = pneg %p316
        $region58: #{tpu_custom_call.1} parent=11 // pred_check_branch
          %456 = sbr.rel (%p454) target = $region60
        $region59: #{tpu_custom_call.1} parent=11 // pred_region
          _
        $region60: #{tpu_custom_call.1} parent=11 // pred_fallthru
          _
        // Predicated region
        $region61: #{tpu_custom_call.1} parent=11 // pred_check
          %p457 = pneg %p337
        $region62: #{tpu_custom_call.1} parent=11 // pred_check_branch
          %459 = sbr.rel (%p457) target = $region64
        $region63: #{tpu_custom_call.1} parent=11 // pred_region
          _
        $region64: #{tpu_custom_call.1} parent=11 // pred_fallthru
          _
        // Predicated region
        $region65: #{tpu_custom_call.1} parent=11 // pred_check
          %p460 = pneg %p358
        $region66: #{tpu_custom_call.1} parent=11 // pred_check_branch
          %462 = sbr.rel (%p460) target = $region68
        $region67: #{tpu_custom_call.1} parent=11 // pred_region
          _
        $region68: #{tpu_custom_call.1} parent=11 // pred_fallthru
          _
      $region12: #{tpu_custom_call.1} parent=5 // pred_fallthru
        _
      %p463 = scmp.lt.s32.totalorder %s26, 4
      // Predicated region
      $region69: #{tpu_custom_call.1} parent=5 // pred_check
        %p464 = pneg %p463
      $region70: #{tpu_custom_call.1} parent=5 // pred_check_branch
        %466 = sbr.rel (%p464) target = $region72
      $region71: #{tpu_custom_call.1} parent=5 // pred_region
        // Predicated region
        $region73: #{tpu_custom_call.1} parent=71 // pred_check
          %p467 = pneg %p58
        $region74: #{tpu_custom_call.1} parent=71 // pred_check_branch
          %469 = sbr.rel (%p467) target = $region76
        $region75: #{tpu_custom_call.1} parent=71 // pred_region
          %p470 = scmp.lt.s32.totalorder %s33, 1
          %s471 = scalar_select %p470, %s33, 1
          %s472 = smul.addr %s471, 2
          %s473 = smul.addr %s472, 8
          %s474 = scalar_lea.vmem %s0, %s473
        $region76: #{tpu_custom_call.1} parent=71 // pred_fallthru
          _
      $region72: #{tpu_custom_call.1} parent=5 // pred_fallthru
        _
      %p475 = scmp.le.s32.totalorder 1, %s26
      %p476 = scmp.lt.s32.totalorder %s26, 5
      %p477 = pnand %p475, %p476
      %p478 = pneg %p477
      // Predicated region
      $region77: #{tpu_custom_call.1} parent=5 // pred_check
        _
      $region78: #{tpu_custom_call.1} parent=5 // pred_check_branch
        %480 = sbr.rel (%p477) target = $region80
      $region79: #{tpu_custom_call.1} parent=5 // pred_region
        %s481 = ssub.s32 %s26, 1
        // Predicated region
        $region81: #{tpu_custom_call.1} parent=79 // pred_check
          %p482 = pneg %p85
        $region82: #{tpu_custom_call.1} parent=79 // pred_check_branch
          %484 = sbr.rel (%p482) target = $region84
        $region83: #{tpu_custom_call.1} parent=79 // pred_region
          %486 = dma.done [#allocation7], 16
        $region84: #{tpu_custom_call.1} parent=79 // pred_fallthru
          _
        // Predicated region
        $region85: #{tpu_custom_call.1} parent=79 // pred_check
          %p487 = pneg %p295
        $region86: #{tpu_custom_call.1} parent=79 // pred_check_branch
          %489 = sbr.rel (%p487) target = $region88
        $region87: #{tpu_custom_call.1} parent=79 // pred_region
          %491 = dma.done [#allocation10], 256
        $region88: #{tpu_custom_call.1} parent=79 // pred_fallthru
          _
        %p492 = scmp.lt.s32.totalorder %s35, 1
        %s493 = scalar_select %p492, %s35, 1
        %s494 = smul.addr %s493, 2
        %s495 = smul.addr %s494, 8
        %s496 = scalar_lea.vmem %s0, %s495
        %p497 = pneg %p64
        %p498 = pneg %p61
        %p499 = pneg %p85
        %p500 = pneg %p82
        %p501 = pneg %p106
        %p502 = pneg %p103
        %p503 = pneg %p127
        %p504 = pneg %p124
        %p505 = pneg %p148
        %p506 = pneg %p145
        %p507 = pneg %p169
        %p508 = pneg %p166
        %p509 = pneg %p190
        %p510 = pneg %p187
        %p511 = pneg %p211
        %p512 = pneg %p208
        %p513 = pneg %p232
        %p514 = pneg %p229
        %p515 = pneg %p253
        %p516 = pneg %p250
        %p517 = pneg %p274
        %p518 = pneg %p271
        %p519 = pneg %p295
        %p520 = pneg %p292
        %p521 = pneg %p316
        %p522 = pneg %p313
        %p523 = pneg %p337
        %p524 = pneg %p334
        %p525 = pneg %p358
        %p526 = pneg %p355
        %p527 = pneg %p386
        %p528 = pneg %p383
        %s529 = sand.u32 %s373, 1
        %s530 = scalar_lea.sflag [#allocation8], %s529
        %s531 = sand.u32 %s373, 1
        %s532 = smul.addr %s531, 8
        %s533 = scalar_lea.vmem [#allocation11], %s532
        %p534 = scmp.lt.s32.totalorder %s35, 1
        %s535 = scalar_select %p534, %s35, 1
        %s536 = smul.addr %s535, 2
        %s537 = smul.addr %s536, 8
        %s538 = scalar_lea.vmem %s0, %s537
        %p540 = scmp.eq.s32.totalorder %s36, 0
        // Predicated region
        $region89: #{tpu_custom_call.1} parent=79 // pred_check
          %p541 = pneg %p540
        $region90: #{tpu_custom_call.1} parent=79 // pred_check_branch
          %543 = sbr.rel (%p541) target = $region92
        $region91: #{tpu_custom_call.1} parent=79 // pred_region
          %v544 = vld [vmem:[%s538] sm:$0xff]
          %v545 = vld [vmem:[%s538 + $0x8] sm:$0xff]
          %v546 = vld [vmem:[#allocation6] sm:$0x1]
          %v547 = vld [vmem:[%s2] sm:$0x1]
          %vm548 = vcmask 261120
          %v549 = vsel %vm548, %v544, 0.0
          %550 = vadd.xlane.f32.xlu0 %v549
          %v551 = vpop.xlane.xlu0 %550
          %v552 = vsel %vm548, %v545, 0.0
          %553 = vadd.xlane.f32.xlu0 %v552
          %v554 = vpop.xlane.xlu0 %553
          %v555 = vmul.f32 %v544, %v544
          %v556 = vmul.f32 %v545, %v545
          %v557 = vsel %vm548, %v555, 0.0
          %558 = vadd.xlane.f32.xlu0 %v557
          %v559 = vpop.xlane.xlu0 %558
          %v560 = vsel %vm548, %v556, 0.0
          %561 = vadd.xlane.f32.xlu0 %v560
          %v562 = vpop.xlane.xlu0 %561
          %v563 = vmul.f32 %v551, 0.03125
          %v564 = vmul.f32 %v554, 0.03125
          %v565 = vmul.f32 %v559, 0.03125
          %v566 = vmul.f32 %v562, 0.03125
          %v567 = vmul.f32 %v563, %v563
          %v568 = vmul.f32 %v564, %v564
          %v569 = vsub.f32 %v565, %v567
          %v570 = vsub.f32 %v566, %v568
          %v571 = vsub.f32 %v544, %v563
          %v572 = vsub.f32 %v545, %v564
          %v573 = vadd.f32 %v569, 1e-05
          %v574 = vadd.f32 %v570, 1e-05
          %v575 = vrsqrt.pop %v573
          %v576 = vmul.f32 %v575, %v573
          %v577 = vmul.f32 %v576, %v575
          %v578 = vmul.f32 0.5, %v577
          %v579 = vsub.f32 1.5, %v578
          %v580 = vmul.f32 %v575, %v579
          %vm581 = vweird.f32 %v573
          %vm582 = vweird.f32 %v575
          %vm583 = vmor %vm581, %vm582
          %v584 = vsel %vm583, %v575, %v580
          %v585 = vrsqrt.pop %v574
          %v586 = vmul.f32 %v585, %v574
          %v587 = vmul.f32 %v586, %v585
          %v588 = vmul.f32 0.5, %v587
          %v589 = vsub.f32 1.5, %v588
          %v590 = vmul.f32 %v585, %v589
          %vm591 = vweird.f32 %v574
          %vm592 = vweird.f32 %v585
          %vm593 = vmor %vm591, %vm592
          %v594 = vsel %vm593, %v585, %v590
          %v595 = vmul.f32 %v571, %v584
          %v596 = vmul.f32 %v572, %v594
          %v598 = vperm.slane %v546, 0
          %v600 = vmul.f32 %v595, %v598
          %v601 = vmul.f32 %v596, %v598
          %v603 = vperm.slane %v547, 0
          %v605 = vadd.f32 %v600, %v603
          %v606 = vadd.f32 %v601, %v603
          %v607 = vpack.c.bf16 %v606, %v605
          %v608 = vld [vmem:[%s5] sm:$0xf]
          %v609 = vld [vmem:[%s5 + $0x4] sm:$0xf]
          %v610 = vld [vmem:[%s5 + $0x8] sm:$0xf]
          %v611 = vld [vmem:[%s5 + $0xc] sm:$0xf]
          %v612 = vld [vmem:[%s6] sm:$0x1]
          %v614 = vperm.slane %v612, 0
          %v620 = vunpack.c.l.b16 %v608
          %v621 = vunpack.c.l.b16 %v609
          %v622 = vunpack.c.l.b16 %v610
          %v623 = vunpack.c.l.b16 %v611
          %v624 = vpack.c.b16 %v621, %v620
          %v625 = vpack.c.b16 %v623, %v622
          %v629 = vsel %vm548, %v607, 0
          %631 = vmatpush.bf16.msra.mxu0 0
          %632 = vmatpush.bf16.msra.mxu0 0
          %633 = vmatpush.bf16.msra.mxu0 0
          %634 = vmatpush.bf16.msra.mxu0 0
          %635 = vmatpush.bf16.msra.mxu0 0
          %636 = vmatpush.bf16.msra.mxu0 0
          %637 = vmatpush.bf16.msra.mxu0 %v625
          %638 = vmatpush.bf16.msra.mxu0 %v624
          %639 = vmatmul.bf16.gmra.mxu0 %v629
          %v640 = vpop.f32.mrf.mxu0
          %v641 = vadd.f32 %v614, %v640
          %v642 = vpop.f32.mrf.mxu0
          %v643 = vadd.f32 %v614, %v642
          %644 = vdwg.mxu0
          %v645 = vpack.c.bf16 %v641, %v641
          %v646 = vpack.c.bf16 %v643, %v643
          %vm647 = vcmask 60416
          %648 = vst.msk [vmem:[#allocation2] sm:$0xf] %vm647, %v645
          %649 = vst.msk [vmem:[#allocation2 + $0x4] sm:$0xf] %vm647, %v646
          %652 = vrot.lane.b32.xlu0 %v645, 96
          %v653 = vpop.permute.xlu0 %652
          %654 = vrot.lane.b32.xlu0 %v646, 96
          %v655 = vpop.permute.xlu0 %654
          %658 = vst.msk [vmem:[#allocation3] sm:$0xf] %vm647, %v653
          %659 = vst.msk [vmem:[#allocation3 + $0x4] sm:$0xf] %vm647, %v655
          %660 = vrot.lane.b32.xlu0 %v645, 120
          %v661 = vpop.permute.xlu0 %660
          %662 = vrot.lane.b32.xlu0 %v646, 120
          %v663 = vpop.permute.xlu0 %662
          %s666 = scalar_lea.vmem [#allocation2], 8
          %667 = vst.msk [vmem:[%s666] sm:$0xf] %vm647, %v661
          %668 = vst.msk [vmem:[%s666 + $0x4] sm:$0xf] %vm647, %v663
          %669 = vrot.lane.b32.xlu0 %v645, 88
          %v670 = vpop.permute.xlu0 %669
          %671 = vrot.lane.b32.xlu0 %v646, 88
          %v672 = vpop.permute.xlu0 %671
          %s675 = scalar_lea.vmem [#allocation3], 8
          %676 = vst.msk [vmem:[%s675] sm:$0xf] %vm647, %v670
          %677 = vst.msk [vmem:[%s675 + $0x4] sm:$0xf] %vm647, %v672
          %678 = vrot.lane.b32.xlu0 %v645, 112
          %v679 = vpop.permute.xlu0 %678
          %680 = vrot.lane.b32.xlu0 %v646, 112
          %v681 = vpop.permute.xlu0 %680
          %s684 = scalar_lea.vmem [#allocation2], 16
          %685 = vst.msk [vmem:[%s684] sm:$0xf] %vm647, %v679
          %686 = vst.msk [vmem:[%s684 + $0x4] sm:$0xf] %vm647, %v681
          %687 = vrot.lane.b32.xlu0 %v645, 80
          %v688 = vpop.permute.xlu0 %687
          %689 = vrot.lane.b32.xlu0 %v646, 80
          %v690 = vpop.permute.xlu0 %689
          %s693 = scalar_lea.vmem [#allocation3], 16
          %694 = vst.msk [vmem:[%s693] sm:$0xf] %vm647, %v688
          %695 = vst.msk [vmem:[%s693 + $0x4] sm:$0xf] %vm647, %v690
          %696 = vrot.lane.b32.xlu0 %v645, 104
          %v697 = vpop.permute.xlu0 %696
          %698 = vrot.lane.b32.xlu0 %v646, 104
          %v699 = vpop.permute.xlu0 %698
          %s702 = scalar_lea.vmem [#allocation2], 24
          %703 = vst.msk [vmem:[%s702] sm:$0xf] %vm647, %v697
          %704 = vst.msk [vmem:[%s702 + $0x4] sm:$0xf] %vm647, %v699
          %705 = vrot.lane.b32.xlu0 %v645, 72
          %v706 = vpop.permute.xlu0 %705
          %707 = vrot.lane.b32.xlu0 %v646, 72
          %v708 = vpop.permute.xlu0 %707
          %s711 = scalar_lea.vmem [#allocation3], 24
          %712 = vst.msk [vmem:[%s711] sm:$0xf] %vm647, %v706
          %713 = vst.msk [vmem:[%s711 + $0x4] sm:$0xf] %vm647, %v708
        $region92: #{tpu_custom_call.1} parent=79 // pred_fallthru
          _
        %s714 = smul.u32 %s36, 8
        %s715 = scalar_lea.vmem %s538, %s714
        %v716 = vld [vmem:[%s715] sm:$0xff]
        %v717 = vld [vmem:[#allocation6] sm:$0x1]
        %v718 = vld [vmem:[%s2] sm:$0x1]
        %vm719 = vcmask 261120
        %v720 = vsel %vm719, %v716, 0.0
        %721 = vadd.xlane.f32.xlu0 %v720
        %v722 = vpop.xlane.xlu0 %721
        %v723 = vmul.f32 %v716, %v716
        %v724 = vsel %vm719, %v723, 0.0
        %725 = vadd.xlane.f32.xlu0 %v724
        %v726 = vpop.xlane.xlu0 %725
        %v727 = vmul.f32 %v722, 0.03125
        %v728 = vmul.f32 %v726, 0.03125
        %v729 = vmul.f32 %v727, %v727
        %v730 = vsub.f32 %v728, %v729
        %v731 = vsub.f32 %v716, %v727
        %v732 = vadd.f32 %v730, 1e-05
        %v733 = vrsqrt.pop %v732
        %v734 = vmul.f32 %v733, %v732
        %v735 = vmul.f32 %v734, %v733
        %v736 = vmul.f32 0.5, %v735
        %v737 = vsub.f32 1.5, %v736
        %v738 = vmul.f32 %v733, %v737
        %vm739 = vweird.f32 %v732
        %vm740 = vweird.f32 %v733
        %vm741 = vmor %vm739, %vm740
        %v742 = vsel %vm741, %v733, %v738
        %v743 = vmul.f32 %v731, %v742
        %v745 = vperm.slane %v717, 0
        %v747 = vmul.f32 %v743, %v745
        %v749 = vperm.slane %v718, 0
        %v751 = vadd.f32 %v747, %v749
        %v752 = vpack.c.bf16 %v751, %v751
        %v753 = vld [vmem:[%s3] sm:$0xf]
        %v754 = vld [vmem:[%s3 + $0x4] sm:$0xf]
        %v755 = vld [vmem:[%s3 + $0x8] sm:$0xf]
        %v756 = vld [vmem:[%s3 + $0xc] sm:$0xf]
        %v757 = vld [vmem:[%s4] sm:$0x1]
        %v759 = vperm.slane %v757, 0
        %v765 = vunpack.c.l.b16 %v753
        %v766 = vunpack.c.l.b16 %v754
        %v767 = vunpack.c.l.b16 %v755
        %v768 = vunpack.c.l.b16 %v756
        %v769 = vpack.c.b16 %v766, %v765
        %v770 = vpack.c.b16 %v768, %v767
        %v774 = vsel %vm719, %v752, 0
        %776 = vmatpush.bf16.msra.mxu0 0
        %777 = vmatpush.bf16.msra.mxu0 0
        %778 = vmatpush.bf16.msra.mxu0 0
        %779 = vmatpush.bf16.msra.mxu0 0
        %780 = vmatpush.bf16.msra.mxu0 0
        %781 = vmatpush.bf16.msra.mxu0 0
        %782 = vmatpush.bf16.msra.mxu0 %v770
        %783 = vmatpush.bf16.msra.mxu0 %v769
        %784 = vmatmul.bf16.gmra.mxu0 %v774
        %v785 = vpop.f32.mrf.mxu0
        %v786 = vadd.f32 %v759, %v785
        %v787 = vpop.f32.mrf.mxu0
        %788 = vdwg.mxu0
        %v789 = vpack.c.bf16 %v786, %v786
        %vm790 = vcmask 60416
        %791 = vst.msk [vmem:[#allocation4] sm:$0xf] %vm790, %v789
        %793 = vrot.lane.b32.xlu0 %v789, 120
        %v794 = vpop.permute.xlu0 %793
        %s796 = scalar_lea.vmem [#allocation4], 4
        %797 = vst.msk [vmem:[%s796] sm:$0xf] %vm790, %v794
        %798 = vrot.lane.b32.xlu0 %v789, 112
        %v799 = vpop.permute.xlu0 %798
        %s801 = scalar_lea.vmem [#allocation4], 8
        %802 = vst.msk [vmem:[%s801] sm:$0xf] %vm790, %v799
        %803 = vrot.lane.b32.xlu0 %v789, 104
        %v804 = vpop.permute.xlu0 %803
        %s806 = scalar_lea.vmem [#allocation4], 12
        %807 = vst.msk [vmem:[%s806] sm:$0xf] %vm790, %v804
        %v808 = vld [vmem:[#allocation4] sm:$0xf]
        %v809 = vld [vmem:[#allocation4 + $0x4] sm:$0xf]
        %v810 = vld [vmem:[#allocation4 + $0x8] sm:$0xf]
        %v811 = vld [vmem:[#allocation4 + $0xc] sm:$0xf]
        %v812 = vld [vmem:[#allocation2] sm:$0xf]
        %v813 = vld [vmem:[#allocation2 + $0x4] sm:$0xf]
        %v814 = vld [vmem:[#allocation2 + $0x8] sm:$0xf]
        %v815 = vld [vmem:[#allocation2 + $0xc] sm:$0xf]
        %v816 = vld [vmem:[#allocation2 + $0x10] sm:$0xf]
        %v817 = vld [vmem:[#allocation2 + $0x14] sm:$0xf]
        %v818 = vld [vmem:[#allocation2 + $0x18] sm:$0xf]
        %v819 = vld [vmem:[#allocation2 + $0x1c] sm:$0xf]
        %v822 = vunpack.c.l.b16 %v812
        %v823 = vunpack.c.l.b16 %v813
        %v824 = vpack.c.b16 %v823, %v822
        %vm825 = vcmask 64512
        %v827 = vsel %vm825, %v808, 0
        %v830 = vsel %vm825, %v824, 0
        %832 = vmatpush.bf16.xpose.msra.mxu0 0
        %833 = vmatpush.bf16.xpose.msra.mxu0 0
        %834 = vmatpush.bf16.xpose.msra.mxu0 0
        %835 = vmatpush.bf16.xpose.msra.mxu0 0
        %836 = vmatpush.bf16.xpose.msra.mxu0 0
        %837 = vmatpush.bf16.xpose.msra.mxu0 0
        %838 = vmatpush.bf16.xpose.msra.mxu0 0
        %839 = vmatpush.bf16.xpose.msra.mxu0 %v830
        %840 = vmatmul.bf16.gmra.mxu0 %v827
        %v841 = vpop.f32.mrf.mxu0
        %v842 = vadd.f32 0.0, %v841
        %v843 = vpop.f32.mrf.mxu0
        %844 = vdwg.mxu0
        %v847 = vunpack.c.l.b16 %v814
        %v848 = vunpack.c.l.b16 %v815
        %v849 = vpack.c.b16 %v848, %v847
        %v851 = vsel %vm825, %v809, 0
        %v854 = vsel %vm825, %v849, 0
        %856 = vmatpush.bf16.xpose.msra.mxu0 0
        %857 = vmatpush.bf16.xpose.msra.mxu0 0
        %858 = vmatpush.bf16.xpose.msra.mxu0 0
        %859 = vmatpush.bf16.xpose.msra.mxu0 0
        %860 = vmatpush.bf16.xpose.msra.mxu0 0
        %861 = vmatpush.bf16.xpose.msra.mxu0 0
        %862 = vmatpush.bf16.xpose.msra.mxu0 0
        %863 = vmatpush.bf16.xpose.msra.mxu0 %v854
        %864 = vmatmul.bf16.gmra.mxu0 %v851
        %v865 = vpop.f32.mrf.mxu0
        %v866 = vadd.f32 0.0, %v865
        %v867 = vpop.f32.mrf.mxu0
        %868 = vdwg.mxu0
        %v871 = vunpack.c.l.b16 %v816
        %v872 = vunpack.c.l.b16 %v817
        %v873 = vpack.c.b16 %v872, %v871
        %v875 = vsel %vm825, %v810, 0
        %v878 = vsel %vm825, %v873, 0
        %880 = vmatpush.bf16.xpose.msra.mxu0 0
        %881 = vmatpush.bf16.xpose.msra.mxu0 0
        %882 = vmatpush.bf16.xpose.msra.mxu0 0
        %883 = vmatpush.bf16.xpose.msra.mxu0 0
        %884 = vmatpush.bf16.xpose.msra.mxu0 0
        %885 = vmatpush.bf16.xpose.msra.mxu0 0
        %886 = vmatpush.bf16.xpose.msra.mxu0 0
        %887 = vmatpush.bf16.xpose.msra.mxu0 %v878
        %888 = vmatmul.bf16.gmra.mxu0 %v875
        %v889 = vpop.f32.mrf.mxu0
        %v890 = vadd.f32 0.0, %v889
        %v891 = vpop.f32.mrf.mxu0
        %892 = vdwg.mxu0
        %v895 = vunpack.c.l.b16 %v818
        %v896 = vunpack.c.l.b16 %v819
        %v897 = vpack.c.b16 %v896, %v895
        %v899 = vsel %vm825, %v811, 0
        %v902 = vsel %vm825, %v897, 0
        %904 = vmatpush.bf16.xpose.msra.mxu0 0
        %905 = vmatpush.bf16.xpose.msra.mxu0 0
        %906 = vmatpush.bf16.xpose.msra.mxu0 0
        %907 = vmatpush.bf16.xpose.msra.mxu0 0
        %908 = vmatpush.bf16.xpose.msra.mxu0 0
        %909 = vmatpush.bf16.xpose.msra.mxu0 0
        %910 = vmatpush.bf16.xpose.msra.mxu0 0
        %911 = vmatpush.bf16.xpose.msra.mxu0 %v902
        %912 = vmatmul.bf16.gmra.mxu0 %v899
        %v913 = vpop.f32.mrf.mxu0
        %v914 = vadd.f32 0.0, %v913
        %v915 = vpop.f32.mrf.mxu0
        %916 = vdwg.mxu0
        %vm917 = vcmask 130048
        %v918 = vsel %vm917, %v842, -inf
        %919 = vmax.xlane.f32.xlu0 %v918
        %v920 = vpop.xlane.xlu0 %919
        %v921 = vsel %vm917, %v866, -inf
        %922 = vmax.xlane.f32.xlu0 %v921
        %v923 = vpop.xlane.xlu0 %922
        %v924 = vsel %vm917, %v890, -inf
        %925 = vmax.xlane.f32.xlu0 %v924
        %v926 = vpop.xlane.xlu0 %925
        %v927 = vsel %vm917, %v914, -inf
        %928 = vmax.xlane.f32.xlu0 %v927
        %v929 = vpop.xlane.xlu0 %928
        %v930 = vsub.f32 %v842, %v920
        %v931 = vsub.f32 %v866, %v923
        %v932 = vsub.f32 %v890, %v926
        %v933 = vsub.f32 %v914, %v929
        %v934 = vmul.f32 %v930, 1.442695
        %v935 = vpow.pop %v934
        %v936 = vmul.f32 %v931, 1.442695
        %v937 = vpow.pop %v936
        %v938 = vmul.f32 %v932, 1.442695
        %v939 = vpow.pop %v938
        %v940 = vmul.f32 %v933, 1.442695
        %v941 = vpow.pop %v940
        %v942 = vsel %vm917, %v935, 0.0
        %943 = vadd.xlane.f32.xlu0 %v942
        %v944 = vpop.xlane.xlu0 %943
        %v945 = vsel %vm917, %v937, 0.0
        %946 = vadd.xlane.f32.xlu0 %v945
        %v947 = vpop.xlane.xlu0 %946
        %v948 = vsel %vm917, %v939, 0.0
        %949 = vadd.xlane.f32.xlu0 %v948
        %v950 = vpop.xlane.xlu0 %949
        %v951 = vsel %vm917, %v941, 0.0
        %952 = vadd.xlane.f32.xlu0 %v951
        %v953 = vpop.xlane.xlu0 %952
        %v954 = vpack.c.bf16 %v935, %v935
        %v955 = vpack.c.bf16 %v937, %v937
        %v956 = vpack.c.bf16 %v939, %v939
        %v957 = vpack.c.bf16 %v941, %v941
        %v958 = vld [vmem:[#allocation3] sm:$0xf]
        %v959 = vld [vmem:[#allocation3 + $0x4] sm:$0xf]
        %v960 = vld [vmem:[#allocation3 + $0x8] sm:$0xf]
        %v961 = vld [vmem:[#allocation3 + $0xc] sm:$0xf]
        %v962 = vld [vmem:[#allocation3 + $0x10] sm:$0xf]
        %v963 = vld [vmem:[#allocation3 + $0x14] sm:$0xf]
        %v964 = vld [vmem:[#allocation3 + $0x18] sm:$0xf]
        %v965 = vld [vmem:[#allocation3 + $0x1c] sm:$0xf]
        %v968 = vunpack.c.l.b16 %v958
        %v969 = vunpack.c.l.b16 %v959
        %v970 = vpack.c.b16 %v969, %v968
        %v973 = vsel %vm917, %v954, 0
        %975 = vmatpush.bf16.msra.mxu0 0
        %976 = vmatpush.bf16.msra.mxu0 0
        %977 = vmatpush.bf16.msra.mxu0 0
        %978 = vmatpush.bf16.msra.mxu0 0
        %979 = vmatpush.bf16.msra.mxu0 0
        %980 = vmatpush.bf16.msra.mxu0 0
        %981 = vmatpush.bf16.msra.mxu0 0
        %982 = vmatpush.bf16.msra.mxu0 %v970
        %983 = vmatmul.bf16.gmra.mxu0 %v973
        %v984 = vpop.f32.mrf.mxu0
        %v985 = vadd.f32 0.0, %v984
        %v986 = vpop.f32.mrf.mxu0
        %987 = vdwg.mxu0
        %v990 = vunpack.c.l.b16 %v960
        %v991 = vunpack.c.l.b16 %v961
        %v992 = vpack.c.b16 %v991, %v990
        %v995 = vsel %vm917, %v955, 0
        %997 = vmatpush.bf16.msra.mxu0 0
        %998 = vmatpush.bf16.msra.mxu0 0
        %999 = vmatpush.bf16.msra.mxu0 0
        %1000 = vmatpush.bf16.msra.mxu0 0
        %1001 = vmatpush.bf16.msra.mxu0 0
        %1002 = vmatpush.bf16.msra.mxu0 0
        %1003 = vmatpush.bf16.msra.mxu0 0
        %1004 = vmatpush.bf16.msra.mxu0 %v992
        %1005 = vmatmul.bf16.gmra.mxu0 %v995
        %v1006 = vpop.f32.mrf.mxu0
        %v1007 = vadd.f32 0.0, %v1006
        %v1008 = vpop.f32.mrf.mxu0
        %1009 = vdwg.mxu0
        %v1012 = vunpack.c.l.b16 %v962
        %v1013 = vunpack.c.l.b16 %v963
        %v1014 = vpack.c.b16 %v1013, %v1012
        %v1017 = vsel %vm917, %v956, 0
        %1019 = vmatpush.bf16.msra.mxu0 0
        %1020 = vmatpush.bf16.msra.mxu0 0
        %1021 = vmatpush.bf16.msra.mxu0 0
        %1022 = vmatpush.bf16.msra.mxu0 0
        %1023 = vmatpush.bf16.msra.mxu0 0
        %1024 = vmatpush.bf16.msra.mxu0 0
        %1025 = vmatpush.bf16.msra.mxu0 0
        %1026 = vmatpush.bf16.msra.mxu0 %v1014
        %1027 = vmatmul.bf16.gmra.mxu0 %v1017
        %v1028 = vpop.f32.mrf.mxu0
        %v1029 = vadd.f32 0.0, %v1028
        %v1030 = vpop.f32.mrf.mxu0
        %1031 = vdwg.mxu0
        %v1034 = vunpack.c.l.b16 %v964
        %v1035 = vunpack.c.l.b16 %v965
        %v1036 = vpack.c.b16 %v1035, %v1034
        %v1039 = vsel %vm917, %v957, 0
        %1041 = vmatpush.bf16.msra.mxu0 0
        %1042 = vmatpush.bf16.msra.mxu0 0
        %1043 = vmatpush.bf16.msra.mxu0 0
        %1044 = vmatpush.bf16.msra.mxu0 0
        %1045 = vmatpush.bf16.msra.mxu0 0
        %1046 = vmatpush.bf16.msra.mxu0 0
        %1047 = vmatpush.bf16.msra.mxu0 0
        %1048 = vmatpush.bf16.msra.mxu0 %v1036
        %1049 = vmatmul.bf16.gmra.mxu0 %v1039
        %v1050 = vpop.f32.mrf.mxu0
        %v1051 = vadd.f32 0.0, %v1050
        %v1052 = vpop.f32.mrf.mxu0
        %1053 = vdwg.mxu0
        %v1054 = vrcp.pop %v944
        %v1055 = vrcp.pop %v947
        %v1056 = vrcp.pop %v950
        %v1057 = vrcp.pop %v953
        %v1058 = vmul.f32 %v985, %v1054
        %v1059 = vmul.f32 %v1007, %v1055
        %v1060 = vmul.f32 %v1029, %v1056
        %v1061 = vmul.f32 %v1051, %v1057
        %v1062 = vpack.c.bf16 %v1058, %v1058
        %v1063 = vpack.c.bf16 %v1059, %v1059
        %v1064 = vpack.c.bf16 %v1060, %v1060
        %v1065 = vpack.c.bf16 %v1061, %v1061
        %1066 = vst.msk [vmem:[#allocation5] sm:$0xf] %vm790, %v1062
        %1068 = vrot.lane.b32.xlu0 %v1063, 8
        %v1069 = vpop.permute.xlu0 %1068
        %vm1071 = vcmask 126016
        %1072 = vst.msk [vmem:[#allocation5] sm:$0xf] %vm1071, %v1069
        %1074 = vrot.lane.b32.xlu0 %v1064, 16
        %v1075 = vpop.permute.xlu0 %1074
        %vm1077 = vcmask 191616
        %1078 = vst.msk [vmem:[#allocation5] sm:$0xf] %vm1077, %v1075
        %1080 = vrot.lane.b32.xlu0 %v1065, 24
        %v1081 = vpop.permute.xlu0 %1080
        %vm1083 = vcmask 257216
        %1084 = vst.msk [vmem:[#allocation5] sm:$0xf] %vm1083, %v1081
        %v1085 = vld [vmem:[#allocation5] sm:$0xf]
        %v1086 = vld [vmem:[%s7] sm:$0xf]
        %v1087 = vld [vmem:[%s7 + $0x4] sm:$0xf]
        %v1088 = vld [vmem:[%s7 + $0x8] sm:$0xf]
        %v1089 = vld [vmem:[%s7 + $0xc] sm:$0xf]
        %v1090 = vld [vmem:[%s8] sm:$0x1]
        %v1092 = vperm.slane %v1090, 0
        %v1098 = vunpack.c.l.b16 %v1086
        %v1099 = vunpack.c.l.b16 %v1087
        %v1100 = vunpack.c.l.b16 %v1088
        %v1101 = vunpack.c.l.b16 %v1089
        %v1102 = vpack.c.b16 %v1099, %v1098
        %v1103 = vpack.c.b16 %v1101, %v1100
        %v1107 = vsel %vm719, %v1085, 0
        %1109 = vmatpush.bf16.msra.mxu0 0
        %1110 = vmatpush.bf16.msra.mxu0 0
        %1111 = vmatpush.bf16.msra.mxu0 0
        %1112 = vmatpush.bf16.msra.mxu0 0
        %1113 = vmatpush.bf16.msra.mxu0 0
        %1114 = vmatpush.bf16.msra.mxu0 0
        %1115 = vmatpush.bf16.msra.mxu0 %v1103
        %1116 = vmatpush.bf16.msra.mxu0 %v1102
        %1117 = vmatmul.bf16.gmra.mxu0 %v1107
        %v1118 = vpop.f32.mrf.mxu0
        %v1119 = vadd.f32 %v1092, %v1118
        %v1120 = vpop.f32.mrf.mxu0
        %1121 = vdwg.mxu0
        %v1122 = vadd.f32 %v716, %v1119
        %v1123 = vld [vmem:[%s9] sm:$0x1]
        %v1124 = vld [vmem:[%s10] sm:$0x1]
        %v1125 = vsel %vm719, %v1122, 0.0
        %1126 = vadd.xlane.f32.xlu0 %v1125
        %v1127 = vpop.xlane.xlu0 %1126
        %v1128 = vmul.f32 %v1122, %v1122
        %v1129 = vsel %vm719, %v1128, 0.0
        %1130 = vadd.xlane.f32.xlu0 %v1129
        %v1131 = vpop.xlane.xlu0 %1130
        %v1132 = vmul.f32 %v1127, 0.03125
        %v1133 = vmul.f32 %v1131, 0.03125
        %v1134 = vmul.f32 %v1132, %v1132
        %v1135 = vsub.f32 %v1133, %v1134
        %v1136 = vsub.f32 %v1122, %v1132
        %v1137 = vadd.f32 %v1135, 1e-05
        %v1138 = vrsqrt.pop %v1137
        %v1139 = vmul.f32 %v1138, %v1137
        %v1140 = vmul.f32 %v1139, %v1138
        %v1141 = vmul.f32 0.5, %v1140
        %v1142 = vsub.f32 1.5, %v1141
        %v1143 = vmul.f32 %v1138, %v1142
        %vm1144 = vweird.f32 %v1137
        %vm1145 = vweird.f32 %v1138
        %vm1146 = vmor %vm1144, %vm1145
        %v1147 = vsel %vm1146, %v1138, %v1143
        %v1148 = vmul.f32 %v1136, %v1147
        %v1150 = vperm.slane %v1123, 0
        %v1152 = vmul.f32 %v1148, %v1150
        %v1154 = vperm.slane %v1124, 0
        %v1156 = vadd.f32 %v1152, %v1154
        %v1157 = vpack.c.bf16 %v1156, %v1156
        %v1158 = vld [vmem:[#allocation9] sm:$0xf]
        %v1159 = vld [vmem:[#allocation9 + $0x4] sm:$0xf]
        %v1160 = vld [vmem:[#allocation9 + $0x8] sm:$0xf]
        %v1161 = vld [vmem:[#allocation9 + $0xc] sm:$0xf]
        %v1162 = vld [vmem:[%s12] sm:$0x1]
        %v1164 = vperm.slane %v1162, 0
        %v1170 = vunpack.c.l.b16 %v1158
        %v1171 = vunpack.c.l.b16 %v1159
        %v1172 = vunpack.c.l.b16 %v1160
        %v1173 = vunpack.c.l.b16 %v1161
        %v1174 = vpack.c.b16 %v1171, %v1170
        %v1175 = vpack.c.b16 %v1173, %v1172
        %v1179 = vsel %vm719, %v1157, 0
        %1181 = vmatpush.bf16.msra.mxu0 0
        %1182 = vmatpush.bf16.msra.mxu0 0
        %1183 = vmatpush.bf16.msra.mxu0 0
        %1184 = vmatpush.bf16.msra.mxu0 0
        %1185 = vmatpush.bf16.msra.mxu0 0
        %1186 = vmatpush.bf16.msra.mxu0 0
        %1187 = vmatpush.bf16.msra.mxu0 %v1175
        %1188 = vmatpush.bf16.msra.mxu0 %v1174
        %1189 = vmatmul.bf16.gmra.mxu0 %v1179
        %v1190 = vpop.f32.mrf.mxu0
        %v1191 = vadd.f32 %v1164, %v1190
        %v1192 = vpop.f32.mrf.mxu0
        %1193 = vdwg.mxu0
        %v1194 = vmul.f32 %v1191, %v1191
        %v1195 = vmul.f32 %v1191, %v1194
        %v1196 = vmul.f32 %v1195, 0.044715
        %v1197 = vadd.f32 %v1191, %v1196
        %v1198 = vmul.f32 %v1197, 0.7978846
        %v1199 = vtanh.pop %v1198
        %v1200 = vadd.f32 %v1199, 1.0
        %v1201 = vmul.f32 %v1200, 0.5
        %v1202 = vmul.f32 %v1191, %v1201
        %v1203 = vpack.c.bf16 %v1202, %v1202
        %v1204 = vld [vmem:[%s13] sm:$0xf]
        %v1205 = vld [vmem:[%s13 + $0x4] sm:$0xf]
        %v1206 = vld [vmem:[%s13 + $0x8] sm:$0xf]
        %v1207 = vld [vmem:[%s13 + $0xc] sm:$0xf]
        %v1208 = vld [vmem:[%s13 + $0x10] sm:$0xf]
        %v1209 = vld [vmem:[%s13 + $0x14] sm:$0xf]
        %v1210 = vld [vmem:[%s13 + $0x18] sm:$0xf]
        %v1211 = vld [vmem:[%s13 + $0x1c] sm:$0xf]
        %v1212 = vld [vmem:[%s13 + $0x20] sm:$0xf]
        %v1213 = vld [vmem:[%s13 + $0x24] sm:$0xf]
        %v1214 = vld [vmem:[%s13 + $0x28] sm:$0xf]
        %v1215 = vld [vmem:[%s13 + $0x2c] sm:$0xf]
        %v1216 = vld [vmem:[%s13 + $0x30] sm:$0xf]
        %v1217 = vld [vmem:[%s13 + $0x34] sm:$0xf]
        %v1218 = vld [vmem:[%s13 + $0x38] sm:$0xf]
        %v1219 = vld [vmem:[%s13 + $0x3c] sm:$0xf]
        %v1220 = vld [vmem:[%s14] sm:$0x1]
        %v1222 = vperm.slane %v1220, 0
        %v1240 = vunpack.c.l.b16 %v1204
        %v1241 = vunpack.c.l.b16 %v1205
        %v1242 = vunpack.c.l.b16 %v1206
        %v1243 = vunpack.c.l.b16 %v1207
        %v1244 = vunpack.c.l.b16 %v1208
        %v1245 = vunpack.c.l.b16 %v1209
        %v1246 = vunpack.c.l.b16 %v1210
        %v1247 = vunpack.c.l.b16 %v1211
        %v1248 = vunpack.c.l.b16 %v1212
        %v1249 = vunpack.c.l.b16 %v1213
        %v1250 = vunpack.c.l.b16 %v1214
        %v1251 = vunpack.c.l.b16 %v1215
        %v1252 = vunpack.c.l.b16 %v1216
        %v1253 = vunpack.c.l.b16 %v1217
        %v1254 = vunpack.c.l.b16 %v1218
        %v1255 = vunpack.c.l.b16 %v1219
        %v1256 = vpack.c.b16 %v1241, %v1240
        %v1257 = vpack.c.b16 %v1243, %v1242
        %v1258 = vpack.c.b16 %v1245, %v1244
        %v1259 = vpack.c.b16 %v1247, %v1246
        %v1260 = vpack.c.b16 %v1249, %v1248
        %v1261 = vpack.c.b16 %v1251, %v1250
        %v1262 = vpack.c.b16 %v1253, %v1252
        %v1263 = vpack.c.b16 %v1255, %v1254
        %1272 = vmatpush.bf16.msra.mxu0 %v1263
        %1273 = vmatpush.bf16.msra.mxu0 %v1262
        %1274 = vmatpush.bf16.msra.mxu0 %v1261
        %1275 = vmatpush.bf16.msra.mxu0 %v1260
        %1276 = vmatpush.bf16.msra.mxu0 %v1259
        %1277 = vmatpush.bf16.msra.mxu0 %v1258
        %1278 = vmatpush.bf16.msra.mxu0 %v1257
        %1279 = vmatpush.bf16.msra.mxu0 %v1256
        %1280 = vmatmul.bf16.gmra.mxu0 %v1203
        %v1281 = vpop.f32.mrf.mxu0
        %v1282 = vadd.f32 %v1222, %v1281
        %v1283 = vpop.f32.mrf.mxu0
        %1284 = vdwg.mxu0
        %v1285 = vadd.f32 %v1122, %v1282
        %1286 = vst.msk [vmem:[%s533] sm:$0xff] %vm719, %v1285
        %s1287 = sand.u32 %s373, 1
        %s1288 = scalar_lea.sflag [#allocation8], %s1287
        %s1289 = sand.u32 %s373, 1
        %s1290 = smul.addr %s1289, 8
        %s1291 = scalar_lea.vmem [#allocation11], %s1290
        // Predicated region
        $region93: #{tpu_custom_call.1} parent=79 // pred_check
          %p1292 = pneg %p383
        $region94: #{tpu_custom_call.1} parent=79 // pred_check_branch
          %1294 = sbr.rel (%p1292) target = $region96
        $region95: #{tpu_custom_call.1} parent=79 // pred_region
          %1296 = vsyncadd %s1288, 0
          %s1297 = smul.addr %s35, 2
          %s1298 = sadd.s32 %s36, %s1297
          %s1299 = smul.addr %s1298, 8
          %s1300 = scalar_lea.hbm %s15, %s1299
          %s1302 = sshll.u32 %s1291, 4
          %s1303 = int_to_ptr.vmem [resolvable:$true] %s1302
          %s1304 = sshll.u32 %s1300, 4
          %s1305 = int_to_ptr.hbm [resolvable:$true] %s1304
          %1307 = dma.vmem_to_hbm [thread:$0]  %s1303, 128, %s1305, %s1288
        $region96: #{tpu_custom_call.1} parent=79 // pred_fallthru
          _
      $region80: #{tpu_custom_call.1} parent=5 // pred_fallthru
        _
      %p1308 = scmp.le.s32.totalorder 2, %s26
      // Predicated region
      $region97: #{tpu_custom_call.1} parent=5 // pred_check
        %p1309 = pneg %p1308
      $region98: #{tpu_custom_call.1} parent=5 // pred_check_branch
        %1311 = sbr.rel (%p1309) target = $region100
      $region99: #{tpu_custom_call.1} parent=5 // pred_region
        %s1312 = ssub.s32 %s26, 2
        // Predicated region
        $region101: #{tpu_custom_call.1} parent=99 // pred_check
          %p1313 = pneg %p389
        $region102: #{tpu_custom_call.1} parent=99 // pred_check_branch
          %1315 = sbr.rel (%p1313) target = $region104
        $region103: #{tpu_custom_call.1} parent=99 // pred_region
          %s1316 = sand.u32 %s374, 1
          %s1317 = scalar_lea.sflag [#allocation8], %s1316
          %s1318 = sand.u32 %s374, 1
          %s1319 = smul.addr %s1318, 8
          %s1320 = scalar_lea.vmem [#allocation11], %s1319
          %1322 = dma.done %s1317, 128
        $region104: #{tpu_custom_call.1} parent=99 // pred_fallthru
          _
      $region100: #{tpu_custom_call.1} parent=5 // pred_fallthru
        _
    $region6: #{tpu_custom_call.1} parent=1 // loop_footer
      %s30 = sadd.s32 1, %s26
    $region7: #{tpu_custom_call.1} parent=1 // loop_footer_branch
      %25 = sbr.rel target = $region3
    $region8: #{tpu_custom_call.1} parent=1 // loop_exit
      _
    %1323 = vsyncpa [#allocation7], 1
    %s1324 = scalar_lea.sflag [#allocation7], 1
    %1325 = vsyncpa %s1324, 1
    %1326 = vsyncpa [#allocation10], 1
    %1327 = vsyncpa [#allocation8], 1
    %s1328 = scalar_lea.sflag [#allocation8], 1
    %1329 = vsyncpa %s1328, 1

// kernel: tpu_custom_call.1
$region0: #{tpu_custom_call.1}
  #allocation0 [shape = 'u32[]', space=smem, size = 0x4, offset = 0x4, fixed_abs, tag = 'smem constant byte address 0x4 - core index']
  #allocation1 [shape = 'u32[72,128]{1,0:T(1,128)}', space=vmem, size = 0x9000, scoped, tag = 'internal scratch']
  #allocation2 [shape = 'bf16[4,16,8]{2,1,0:T(8,128)(2,1)}', space=vmem, size = 0x4000, scoped, tag = 'scratch operand']
  #allocation3 [shape = 'bf16[4,16,8]{2,1,0:T(8,128)(2,1)}', space=vmem, size = 0x4000, scoped, tag = 'scratch operand']
  #allocation4 [shape = 'bf16[4,8,8]{2,1,0:T(8,128)(2,1)}', space=vmem, size = 0x2000, scoped, tag = 'scratch operand']
  #allocation5 [shape = 'bf16[8,32]{1,0:T(8,128)(2,1)}', space=vmem, size = 0x800, scoped, tag = 'scratch operand']
  %s0 = inlined_call_operand.vmem [shape: f32[2,16,32], index: 0, kind: input, shape index: {}]
  %s1 = inlined_call_operand.hbm [shape: f32[1,32], index: 1, kind: input, shape index: {}]
  %s2 = inlined_call_operand.vmem [shape: f32[1,32], index: 2, kind: input, shape index: {}]
  %s3 = inlined_call_operand.vmem [shape: bf16[32,32], index: 3, kind: input, shape index: {}]
  %s4 = inlined_call_operand.vmem [shape: f32[1,32], index: 4, kind: input, shape index: {}]
  %s5 = inlined_call_operand.vmem [shape: bf16[32,64], index: 5, kind: input, shape index: {}]
  %s6 = inlined_call_operand.vmem [shape: f32[1,64], index: 6, kind: input, shape index: {}]
  %s7 = inlined_call_operand.vmem [shape: bf16[32,32], index: 7, kind: input, shape index: {}]
  %s8 = inlined_call_operand.vmem [shape: f32[1,32], index: 8, kind: input, shape index: {}]
  %s9 = inlined_call_operand.vmem [shape: f32[1,32], index: 9, kind: input, shape index: {}]
  %s10 = inlined_call_operand.vmem [shape: f32[1,32], index: 10, kind: input, shape index: {}]
  %s11 = inlined_call_operand.hbm [shape: bf16[32,128], index: 11, kind: input, shape index: {}]
  %s12 = inlined_call_operand.vmem [shape: f32[1,128], index: 12, kind: input, shape index: {}]
  %s13 = inlined_call_operand.vmem [shape: bf16[128,32], index: 13, kind: input, shape index: {}]
  %s14 = inlined_call_operand.vmem [shape: f32[1,32], index: 14, kind: input, shape index: {}]
  %s15 = inlined_call_operand.hbm [shape: f32[2,16,32], index: 15, kind: output, shape index: {}]
  %s16 = sld [smem:[#allocation0]]
  $region105: #{tpu_custom_call.1} parent=0
    _
  %s18 = ssub.s32 1, %s16
  %s19 = scalar_select 0, %s18, %s16
  $region1: #{tpu_custom_call.1} parent=0
    #allocation6 [shape = 'u8[512]{0}', space=vmem, size = 0x400, scoped, tag = 'input window, operand 1, single buffered']
    #allocation7 [shape = 's32[2]{0}', space=sflag, size = 0x8, scoped, tag = 'scoped memory for tpu_custom_call.1']
    #allocation8 [shape = 's32[2]{0}', space=sflag, size = 0x8, scoped, tag = 'scoped memory for tpu_custom_call.1']
    #allocation9 [shape = 'u8[8192]{0}', space=vmem, size = 0x2000, scoped, tag = 'input window, operand 11, single buffered']
    #allocation10 [shape = 's32[1]{0}', space=sflag, size = 0x4, scoped, tag = 'scoped memory for tpu_custom_call.1']
    #allocation11 [shape = 'u8[8192]{0}', space=vmem, size = 0x2000, scoped, tag = 'output window, operand 0']
    %20 = vsyncpa [#allocation7], 0
    %21 = vsyncpa [#allocation10], 0
    %22 = vsyncpa [#allocation8], 0
    %s23 = scalar_lea.sflag [#allocation8], 1
    %24 = vsyncpa %s23, 0
    loop: start=0, step=1, limit=6
    $region2: #{tpu_custom_call.1} parent=1 // loop_pre_header
      _
    $region3: #{tpu_custom_call.1} parent=1 // loop_header
      %s26 = sphi 0, %s30
      %p27 = scmp.ge.s32.totalorder %s26, 6
      %s33 = sphi 0, %s45
      %s34 = sphi 0, %s41
      %s35 = sphi 0, %s33
      %s36 = sphi 0, %s34
      %s37 = sphi 0, %s35
      %s38 = sphi 0, %s36
      %s48 = sphi 0, %s50
      %s51 = sphi 0, %s48
      %s52 = sphi 0, %s51
      %s68 = sphi 0, %s52
      %s72 = sphi 0, %s72
      %s74 = sphi 0, %s72
      %s75 = sphi 0, %s74
      %s89 = sphi 0, %s75
      %s93 = sphi 0, %s93
      %s95 = sphi 0, %s93
      %s96 = sphi 0, %s95
      %s110 = sphi 0, %s96
      %s114 = sphi 0, %s114
      %s116 = sphi 0, %s114
      %s117 = sphi 0, %s116
      %s131 = sphi 0, %s117
      %s135 = sphi 0, %s135
      %s137 = sphi 0, %s135
      %s138 = sphi 0, %s137
      %s152 = sphi 0, %s138
      %s156 = sphi 0, %s156
      %s158 = sphi 0, %s156
      %s159 = sphi 0, %s158
      %s173 = sphi 0, %s159
      %s177 = sphi 0, %s177
      %s179 = sphi 0, %s177
      %s180 = sphi 0, %s179
      %s194 = sphi 0, %s180
      %s198 = sphi 0, %s198
      %s200 = sphi 0, %s198
      %s201 = sphi 0, %s200
      %s215 = sphi 0, %s201
      %s219 = sphi 0, %s219
      %s221 = sphi 0, %s219
      %s222 = sphi 0, %s221
      %s236 = sphi 0, %s222
      %s240 = sphi 0, %s240
      %s242 = sphi 0, %s240
      %s243 = sphi 0, %s242
      %s257 = sphi 0, %s243
      %s261 = sphi 0, %s261
      %s263 = sphi 0, %s261
      %s264 = sphi 0, %s263
      %s278 = sphi 0, %s264
      %s282 = sphi 0, %s282
      %s284 = sphi 0, %s282
      %s285 = sphi 0, %s284
      %s299 = sphi 0, %s285
      %s303 = sphi 0, %s303
      %s305 = sphi 0, %s303
      %s306 = sphi 0, %s305
      %s320 = sphi 0, %s306
      %s324 = sphi 0, %s324
      %s326 = sphi 0, %s324
      %s327 = sphi 0, %s326
      %s341 = sphi 0, %s327
      %s345 = sphi 0, %s345
      %s347 = sphi 0, %s345
      %s348 = sphi 0, %s347
      %s362 = sphi 0, %s348
      %s370 = sphi 0, %s372
      %s373 = sphi 0, %s370
      %s374 = sphi 0, %s373
      %s390 = sphi 0, %s374
    $region4: #{tpu_custom_call.1} parent=1 // loop_header_branch
      %29 = sbr.rel (%p27) target = $region8
    $region5: #{tpu_custom_call.1} parent=1 // loop_body
      %s31 = ssub.s32 %s26, 1
      %s32 = ssub.s32 %s26, 2
      %s39 = sadd.s32 1, %s34
      %p40 = scmp.ge.s32.totalorder %s39, 2
      %s41 = scalar_select %p40, 0, %s39
      %s42 = sadd.s32 1, %s33
      %s43 = scalar_select %p40, %s42, %s33
      %p44 = scmp.ge.s32.totalorder %s43, 2
      %s45 = scalar_select %p44, 0, %s43
      %s46 = ssub.s32 %s33, %s45
      %p47 = scmp.eq.s32.totalorder %s46, 0
      %s49 = sadd.s32 %s48, 1
      %s50 = scalar_select %p47, %s48, %s49
      %p53 = pneg %p47
      %p54 = scmp.eq.s32.totalorder %s26, 3
      %p55 = por %p53, %p54
      %p56 = scmp.ne.s32.totalorder %s48, %s51
      %p57 = scmp.eq.s32.totalorder %s26, 0
      %p58 = por %p56, %p57
      %p59 = scmp.ne.s32.totalorder %s48, %s51
      %p60 = scmp.eq.s32.totalorder %s31, 3
      %p61 = por %p59, %p60
      %p62 = scmp.ne.s32.totalorder %s51, %s52
      %p63 = scmp.eq.s32.totalorder %s31, 0
      %p64 = por %p62, %p63
      %p65 = scmp.ne.s32.totalorder %s51, %s52
      %p66 = scmp.eq.s32.totalorder %s32, 3
      %p67 = por %p65, %p66
      %p69 = scmp.ne.s32.totalorder %s52, %s68
      %p70 = scmp.eq.s32.totalorder %s32, 0
      %p71 = por %p69, %p70
      %s73 = sadd.s32 %s72, 1
      %p76 = scmp.eq.s32.totalorder %s26, 3
      %p77 = scmp.ne.s32.totalorder %s72, %s74
      %p78 = scmp.eq.s32.totalorder %s26, 0
      %p79 = por %p77, %p78
      %p80 = scmp.ne.s32.totalorder %s72, %s74
      %p81 = scmp.eq.s32.totalorder %s31, 3
      %p82 = por %p80, %p81
      %p83 = scmp.ne.s32.totalorder %s74, %s75
      %p84 = scmp.eq.s32.totalorder %s31, 0
      %p85 = por %p83, %p84
      %p86 = scmp.ne.s32.totalorder %s74, %s75
      %p87 = scmp.eq.s32.totalorder %s32, 3
      %p88 = por %p86, %p87
      %p90 = scmp.ne.s32.totalorder %s75, %s89
      %p91 = scmp.eq.s32.totalorder %s32, 0
      %p92 = por %p90, %p91
      %s94 = sadd.s32 %s93, 1
      %p97 = scmp.eq.s32.totalorder %s26, 3
      %p98 = scmp.ne.s32.totalorder %s93, %s95
      %p99 = scmp.eq.s32.totalorder %s26, 0
      %p100 = por %p98, %p99
      %p101 = scmp.ne.s32.totalorder %s93, %s95
      %p102 = scmp.eq.s32.totalorder %s31, 3
      %p103 = por %p101, %p102
      %p104 = scmp.ne.s32.totalorder %s95, %s96
      %p105 = scmp.eq.s32.totalorder %s31, 0
      %p106 = por %p104, %p105
      %p107 = scmp.ne.s32.totalorder %s95, %s96
      %p108 = scmp.eq.s32.totalorder %s32, 3
      %p109 = por %p107, %p108
      %p111 = scmp.ne.s32.totalorder %s96, %s110
      %p112 = scmp.eq.s32.totalorder %s32, 0
      %p113 = por %p111, %p112
      %s115 = sadd.s32 %s114, 1
      %p118 = scmp.eq.s32.totalorder %s26, 3
      %p119 = scmp.ne.s32.totalorder %s114, %s116
      %p120 = scmp.eq.s32.totalorder %s26, 0
      %p121 = por %p119, %p120
      %p122 = scmp.ne.s32.totalorder %s114, %s116
      %p123 = scmp.eq.s32.totalorder %s31, 3
      %p124 = por %p122, %p123
      %p125 = scmp.ne.s32.totalorder %s116, %s117
      %p126 = scmp.eq.s32.totalorder %s31, 0
      %p127 = por %p125, %p126
      %p128 = scmp.ne.s32.totalorder %s116, %s117
      %p129 = scmp.eq.s32.totalorder %s32, 3
      %p130 = por %p128, %p129
      %p132 = scmp.ne.s32.totalorder %s117, %s131
      %p133 = scmp.eq.s32.totalorder %s32, 0
      %p134 = por %p132, %p133
      %s136 = sadd.s32 %s135, 1
      %p139 = scmp.eq.s32.totalorder %s26, 3
      %p140 = scmp.ne.s32.totalorder %s135, %s137
      %p141 = scmp.eq.s32.totalorder %s26, 0
      %p142 = por %p140, %p141
      %p143 = scmp.ne.s32.totalorder %s135, %s137
      %p144 = scmp.eq.s32.totalorder %s31, 3
      %p145 = por %p143, %p144
      %p146 = scmp.ne.s32.totalorder %s137, %s138
      %p147 = scmp.eq.s32.totalorder %s31, 0
      %p148 = por %p146, %p147
      %p149 = scmp.ne.s32.totalorder %s137, %s138
      %p150 = scmp.eq.s32.totalorder %s32, 3
      %p151 = por %p149, %p150
      %p153 = scmp.ne.s32.totalorder %s138, %s152
      %p154 = scmp.eq.s32.totalorder %s32, 0
      %p155 = por %p153, %p154
      %s157 = sadd.s32 %s156, 1
      %p160 = scmp.eq.s32.totalorder %s26, 3
      %p161 = scmp.ne.s32.totalorder %s156, %s158
      %p162 = scmp.eq.s32.totalorder %s26, 0
      %p163 = por %p161, %p162
      %p164 = scmp.ne.s32.totalorder %s156, %s158
      %p165 = scmp.eq.s32.totalorder %s31, 3
      %p166 = por %p164, %p165
      %p167 = scmp.ne.s32.totalorder %s158, %s159
      %p168 = scmp.eq.s32.totalorder %s31, 0
      %p169 = por %p167, %p168
      %p170 = scmp.ne.s32.totalorder %s158, %s159
      %p171 = scmp.eq.s32.totalorder %s32, 3
      %p172 = por %p170, %p171
      %p174 = scmp.ne.s32.totalorder %s159, %s173
      %p175 = scmp.eq.s32.totalorder %s32, 0
      %p176 = por %p174, %p175
      %s178 = sadd.s32 %s177, 1
      %p181 = scmp.eq.s32.totalorder %s26, 3
      %p182 = scmp.ne.s32.totalorder %s177, %s179
      %p183 = scmp.eq.s32.totalorder %s26, 0
      %p184 = por %p182, %p183
      %p185 = scmp.ne.s32.totalorder %s177, %s179
      %p186 = scmp.eq.s32.totalorder %s31, 3
      %p187 = por %p185, %p186
      %p188 = scmp.ne.s32.totalorder %s179, %s180
      %p189 = scmp.eq.s32.totalorder %s31, 0
      %p190 = por %p188, %p189
      %p191 = scmp.ne.s32.totalorder %s179, %s180
      %p192 = scmp.eq.s32.totalorder %s32, 3
      %p193 = por %p191, %p192
      %p195 = scmp.ne.s32.totalorder %s180, %s194
      %p196 = scmp.eq.s32.totalorder %s32, 0
      %p197 = por %p195, %p196
      %s199 = sadd.s32 %s198, 1
      %p202 = scmp.eq.s32.totalorder %s26, 3
      %p203 = scmp.ne.s32.totalorder %s198, %s200
      %p204 = scmp.eq.s32.totalorder %s26, 0
      %p205 = por %p203, %p204
      %p206 = scmp.ne.s32.totalorder %s198, %s200
      %p207 = scmp.eq.s32.totalorder %s31, 3
      %p208 = por %p206, %p207
      %p209 = scmp.ne.s32.totalorder %s200, %s201
      %p210 = scmp.eq.s32.totalorder %s31, 0
      %p211 = por %p209, %p210
      %p212 = scmp.ne.s32.totalorder %s200, %s201
      %p213 = scmp.eq.s32.totalorder %s32, 3
      %p214 = por %p212, %p213
      %p216 = scmp.ne.s32.totalorder %s201, %s215
      %p217 = scmp.eq.s32.totalorder %s32, 0
      %p218 = por %p216, %p217
      %s220 = sadd.s32 %s219, 1
      %p223 = scmp.eq.s32.totalorder %s26, 3
      %p224 = scmp.ne.s32.totalorder %s219, %s221
      %p225 = scmp.eq.s32.totalorder %s26, 0
      %p226 = por %p224, %p225
      %p227 = scmp.ne.s32.totalorder %s219, %s221
      %p228 = scmp.eq.s32.totalorder %s31, 3
      %p229 = por %p227, %p228
      %p230 = scmp.ne.s32.totalorder %s221, %s222
      %p231 = scmp.eq.s32.totalorder %s31, 0
      %p232 = por %p230, %p231
      %p233 = scmp.ne.s32.totalorder %s221, %s222
      %p234 = scmp.eq.s32.totalorder %s32, 3
      %p235 = por %p233, %p234
      %p237 = scmp.ne.s32.totalorder %s222, %s236
      %p238 = scmp.eq.s32.totalorder %s32, 0
      %p239 = por %p237, %p238
      %s241 = sadd.s32 %s240, 1
      %p244 = scmp.eq.s32.totalorder %s26, 3
      %p245 = scmp.ne.s32.totalorder %s240, %s242
      %p246 = scmp.eq.s32.totalorder %s26, 0
      %p247 = por %p245, %p246
      %p248 = scmp.ne.s32.totalorder %s240, %s242
      %p249 = scmp.eq.s32.totalorder %s31, 3
      %p250 = por %p248, %p249
      %p251 = scmp.ne.s32.totalorder %s242, %s243
      %p252 = scmp.eq.s32.totalorder %s31, 0
      %p253 = por %p251, %p252
      %p254 = scmp.ne.s32.totalorder %s242, %s243
      %p255 = scmp.eq.s32.totalorder %s32, 3
      %p256 = por %p254, %p255
      %p258 = scmp.ne.s32.totalorder %s243, %s257
      %p259 = scmp.eq.s32.totalorder %s32, 0
      %p260 = por %p258, %p259
      %s262 = sadd.s32 %s261, 1
      %p265 = scmp.eq.s32.totalorder %s26, 3
      %p266 = scmp.ne.s32.totalorder %s261, %s263
      %p267 = scmp.eq.s32.totalorder %s26, 0
      %p268 = por %p266, %p267
      %p269 = scmp.ne.s32.totalorder %s261, %s263
      %p270 = scmp.eq.s32.totalorder %s31, 3
      %p271 = por %p269, %p270
      %p272 = scmp.ne.s32.totalorder %s263, %s264
      %p273 = scmp.eq.s32.totalorder %s31, 0
      %p274 = por %p272, %p273
      %p275 = scmp.ne.s32.totalorder %s263, %s264
      %p276 = scmp.eq.s32.totalorder %s32, 3
      %p277 = por %p275, %p276
      %p279 = scmp.ne.s32.totalorder %s264, %s278
      %p280 = scmp.eq.s32.totalorder %s32, 0
      %p281 = por %p279, %p280
      %s283 = sadd.s32 %s282, 1
      %p286 = scmp.eq.s32.totalorder %s26, 3
      %p287 = scmp.ne.s32.totalorder %s282, %s284
      %p288 = scmp.eq.s32.totalorder %s26, 0
      %p289 = por %p287, %p288
      %p290 = scmp.ne.s32.totalorder %s282, %s284
      %p291 = scmp.eq.s32.totalorder %s31, 3
      %p292 = por %p290, %p291
      %p293 = scmp.ne.s32.totalorder %s284, %s285
      %p294 = scmp.eq.s32.totalorder %s31, 0
      %p295 = por %p293, %p294
      %p296 = scmp.ne.s32.totalorder %s284, %s285
      %p297 = scmp.eq.s32.totalorder %s32, 3
      %p298 = por %p296, %p297
      %p300 = scmp.ne.s32.totalorder %s285, %s299
      %p301 = scmp.eq.s32.totalorder %s32, 0
      %p302 = por %p300, %p301
      %s304 = sadd.s32 %s303, 1
      %p307 = scmp.eq.s32.totalorder %s26, 3
      %p308 = scmp.ne.s32.totalorder %s303, %s305
      %p309 = scmp.eq.s32.totalorder %s26, 0
      %p310 = por %p308, %p309
      %p311 = scmp.ne.s32.totalorder %s303, %s305
      %p312 = scmp.eq.s32.totalorder %s31, 3
      %p313 = por %p311, %p312
      %p314 = scmp.ne.s32.totalorder %s305, %s306
      %p315 = scmp.eq.s32.totalorder %s31, 0
      %p316 = por %p314, %p315
      %p317 = scmp.ne.s32.totalorder %s305, %s306
      %p318 = scmp.eq.s32.totalorder %s32, 3
      %p319 = por %p317, %p318
      %p321 = scmp.ne.s32.totalorder %s306, %s320
      %p322 = scmp.eq.s32.totalorder %s32, 0
      %p323 = por %p321, %p322
      %s325 = sadd.s32 %s324, 1
      %p328 = scmp.eq.s32.totalorder %s26, 3
      %p329 = scmp.ne.s32.totalorder %s324, %s326
      %p330 = scmp.eq.s32.totalorder %s26, 0
      %p331 = por %p329, %p330
      %p332 = scmp.ne.s32.totalorder %s324, %s326
      %p333 = scmp.eq.s32.totalorder %s31, 3
      %p334 = por %p332, %p333
      %p335 = scmp.ne.s32.totalorder %s326, %s327
      %p336 = scmp.eq.s32.totalorder %s31, 0
      %p337 = por %p335, %p336
      %p338 = scmp.ne.s32.totalorder %s326, %s327
      %p339 = scmp.eq.s32.totalorder %s32, 3
      %p340 = por %p338, %p339
      %p342 = scmp.ne.s32.totalorder %s327, %s341
      %p343 = scmp.eq.s32.totalorder %s32, 0
      %p344 = por %p342, %p343
      %s346 = sadd.s32 %s345, 1
      %p349 = scmp.eq.s32.totalorder %s26, 3
      %p350 = scmp.ne.s32.totalorder %s345, %s347
      %p351 = scmp.eq.s32.totalorder %s26, 0
      %p352 = por %p350, %p351
      %p353 = scmp.ne.s32.totalorder %s345, %s347
      %p354 = scmp.eq.s32.totalorder %s31, 3
      %p355 = por %p353, %p354
      %p356 = scmp.ne.s32.totalorder %s347, %s348
      %p357 = scmp.eq.s32.totalorder %s31, 0
      %p358 = por %p356, %p357
      %p359 = scmp.ne.s32.totalorder %s347, %s348
      %p360 = scmp.eq.s32.totalorder %s32, 3
      %p361 = por %p359, %p360
      %p363 = scmp.ne.s32.totalorder %s348, %s362
      %p364 = scmp.eq.s32.totalorder %s32, 0
      %p365 = por %p363, %p364
      %s366 = ssub.s32 %s33, %s45
      %s367 = ssub.s32 %s34, %s41
      %s368 = sor.u32 %s366, %s367
      %p369 = scmp.eq.s32.totalorder %s368, 0
      %s371 = sadd.s32 %s370, 1
      %s372 = scalar_select %p369, %s370, %s371
      %p375 = pneg %p369
      %p376 = scmp.eq.s32.totalorder %s26, 3
      %p377 = por %p375, %p376
      %p378 = scmp.ne.s32.totalorder %s370, %s373
      %p379 = scmp.eq.s32.totalorder %s26, 0
      %p380 = por %p378, %p379
      %p381 = scmp.ne.s32.totalorder %s370, %s373
      %p382 = scmp.eq.s32.totalorder %s31, 3
      %p383 = por %p381, %p382
      %p384 = scmp.ne.s32.totalorder %s373, %s374
      %p385 = scmp.eq.s32.totalorder %s31, 0
      %p386 = por %p384, %p385
      %p387 = scmp.ne.s32.totalorder %s373, %s374
      %p388 = scmp.eq.s32.totalorder %s32, 3
      %p389 = por %p387, %p388
      %p391 = scmp.ne.s32.totalorder %s374, %s390
      %p392 = scmp.eq.s32.totalorder %s32, 0
      %p393 = por %p391, %p392
      %p394 = scmp.le.s32.totalorder 1, %s26
      %p395 = scmp.lt.s32.totalorder %s26, 5
      %p396 = pnand %p394, %p395
      %p397 = pneg %p396
      // Predicated region
      $region9: #{tpu_custom_call.1} parent=5 // pred_check
        _
      $region10: #{tpu_custom_call.1} parent=5 // pred_check_branch
        %399 = sbr.rel (%p396) target = $region12
      $region11: #{tpu_custom_call.1} parent=5 // pred_region
        %s400 = ssub.s32 %s26, 1
        // Predicated region
        $region13: #{tpu_custom_call.1} parent=11 // pred_check
          %p401 = pneg %p85
        $region14: #{tpu_custom_call.1} parent=11 // pred_check_branch
          %403 = sbr.rel (%p401) target = $region16
        $region15: #{tpu_custom_call.1} parent=11 // pred_region
          %405 = vsyncadd [#allocation7], 0
          %s407 = sshll.u32 %s1, 4
          %s408 = int_to_ptr.hbm [resolvable:$true] %s407
          %s409 = sshll.u32 [#allocation6], 4
          %s410 = int_to_ptr.vmem [resolvable:$true] %s409
          %412 = dma.hbm_to_vmem [thread:$0]  %s408, 16, %s410, [#allocation7]
        $region16: #{tpu_custom_call.1} parent=11 // pred_fallthru
          _
        // Predicated region
        $region17: #{tpu_custom_call.1} parent=11 // pred_check
          %p413 = pneg %p106
        $region18: #{tpu_custom_call.1} parent=11 // pred_check_branch
          %415 = sbr.rel (%p413) target = $region20
        $region19: #{tpu_custom_call.1} parent=11 // pred_region
          _
        $region20: #{tpu_custom_call.1} parent=11 // pred_fallthru
          _
        // Predicated region
        $region21: #{tpu_custom_call.1} parent=11 // pred_check
          %p416 = pneg %p127
        $region22: #{tpu_custom_call.1} parent=11 // pred_check_branch
          %418 = sbr.rel (%p416) target = $region24
        $region23: #{tpu_custom_call.1} parent=11 // pred_region
          _
        $region24: #{tpu_custom_call.1} parent=11 // pred_fallthru
          _
        // Predicated region
        $region25: #{tpu_custom_call.1} parent=11 // pred_check
          %p419 = pneg %p148
        $region26: #{tpu_custom_call.1} parent=11 // pred_check_branch
          %421 = sbr.rel (%p419) target = $region28
        $region27: #{tpu_custom_call.1} parent=11 // pred_region
          _
        $region28: #{tpu_custom_call.1} parent=11 // pred_fallthru
          _
        // Predicated region
        $region29: #{tpu_custom_call.1} parent=11 // pred_check
          %p422 = pneg %p169
        $region30: #{tpu_custom_call.1} parent=11 // pred_check_branch
          %424 = sbr.rel (%p422) target = $region32
        $region31: #{tpu_custom_call.1} parent=11 // pred_region
          _
        $region32: #{tpu_custom_call.1} parent=11 // pred_fallthru
          _
        // Predicated region
        $region33: #{tpu_custom_call.1} parent=11 // pred_check
          %p425 = pneg %p190
        $region34: #{tpu_custom_call.1} parent=11 // pred_check_branch
          %427 = sbr.rel (%p425) target = $region36
        $region35: #{tpu_custom_call.1} parent=11 // pred_region
          _
        $region36: #{tpu_custom_call.1} parent=11 // pred_fallthru
          _
        // Predicated region
        $region37: #{tpu_custom_call.1} parent=11 // pred_check
          %p428 = pneg %p211
        $region38: #{tpu_custom_call.1} parent=11 // pred_check_branch
          %430 = sbr.rel (%p428) target = $region40
        $region39: #{tpu_custom_call.1} parent=11 // pred_region
          _
        $region40: #{tpu_custom_call.1} parent=11 // pred_fallthru
          _
        // Predicated region
        $region41: #{tpu_custom_call.1} parent=11 // pred_check
          %p431 = pneg %p232
        $region42: #{tpu_custom_call.1} parent=11 // pred_check_branch
          %433 = sbr.rel (%p431) target = $region44
        $region43: #{tpu_custom_call.1} parent=11 // pred_region
          _
        $region44: #{tpu_custom_call.1} parent=11 // pred_fallthru
          _
        // Predicated region
        $region45: #{tpu_custom_call.1} parent=11 // pred_check
          %p434 = pneg %p253
        $region46: #{tpu_custom_call.1} parent=11 // pred_check_branch
          %436 = sbr.rel (%p434) target = $region48
        $region47: #{tpu_custom_call.1} parent=11 // pred_region
          _
        $region48: #{tpu_custom_call.1} parent=11 // pred_fallthru
          _
        // Predicated region
        $region49: #{tpu_custom_call.1} parent=11 // pred_check
          %p437 = pneg %p274
        $region50: #{tpu_custom_call.1} parent=11 // pred_check_branch
          %439 = sbr.rel (%p437) target = $region52
        $region51: #{tpu_custom_call.1} parent=11 // pred_region
          _
        $region52: #{tpu_custom_call.1} parent=11 // pred_fallthru
          _
        // Predicated region
        $region53: #{tpu_custom_call.1} parent=11 // pred_check
          %p440 = pneg %p295
        $region54: #{tpu_custom_call.1} parent=11 // pred_check_branch
          %442 = sbr.rel (%p440) target = $region56
        $region55: #{tpu_custom_call.1} parent=11 // pred_region
          %444 = vsyncadd [#allocation10], 0
          %s445 = sshll.u32 %s11, 4
          %s446 = int_to_ptr.hbm [resolvable:$true] %s445
          %s447 = sshll.u32 [#allocation9], 4
          %s448 = int_to_ptr.vmem [resolvable:$true] %s447
          %453 = dma.hbm_to_vmem [thread:$0]  %s446, 256, %s448, [#allocation10], 64, 64, 4
        $region56: #{tpu_custom_call.1} parent=11 // pred_fallthru
          _
        // Predicated region
        $region57: #{tpu_custom_call.1} parent=11 // pred_check
          %p454 = pneg %p316
        $region58: #{tpu_custom_call.1} parent=11 // pred_check_branch
          %456 = sbr.rel (%p454) target = $region60
        $region59: #{tpu_custom_call.1} parent=11 // pred_region
          _
        $region60: #{tpu_custom_call.1} parent=11 // pred_fallthru
          _
        // Predicated region
        $region61: #{tpu_custom_call.1} parent=11 // pred_check
          %p457 = pneg %p337
        $region62: #{tpu_custom_call.1} parent=11 // pred_check_branch
          %459 = sbr.rel (%p457) target = $region64
        $region63: #{tpu_custom_call.1} parent=11 // pred_region
          _
        $region64: #{tpu_custom_call.1} parent=11 // pred_fallthru
          _
        // Predicated region
        $region65: #{tpu_custom_call.1} parent=11 // pred_check
          %p460 = pneg %p358
        $region66: #{tpu_custom_call.1} parent=11 // pred_check_branch
          %462 = sbr.rel (%p460) target = $region68
        $region67: #{tpu_custom_call.1} parent=11 // pred_region
          _
        $region68: #{tpu_custom_call.1} parent=11 // pred_fallthru
          _
      $region12: #{tpu_custom_call.1} parent=5 // pred_fallthru
        _
      %p463 = scmp.lt.s32.totalorder %s26, 4
      // Predicated region
      $region69: #{tpu_custom_call.1} parent=5 // pred_check
        %p464 = pneg %p463
      $region70: #{tpu_custom_call.1} parent=5 // pred_check_branch
        %466 = sbr.rel (%p464) target = $region72
      $region71: #{tpu_custom_call.1} parent=5 // pred_region
        // Predicated region
        $region73: #{tpu_custom_call.1} parent=71 // pred_check
          %p467 = pneg %p58
        $region74: #{tpu_custom_call.1} parent=71 // pred_check_branch
          %469 = sbr.rel (%p467) target = $region76
        $region75: #{tpu_custom_call.1} parent=71 // pred_region
          %p470 = scmp.lt.s32.totalorder %s33, 1
          %s471 = scalar_select %p470, %s33, 1
          %s472 = smul.addr %s471, 2
          %s473 = smul.addr %s472, 8
          %s474 = scalar_lea.vmem %s0, %s473
        $region76: #{tpu_custom_call.1} parent=71 // pred_fallthru
          _
      $region72: #{tpu_custom_call.1} parent=5 // pred_fallthru
        _
      %p475 = scmp.le.s32.totalorder 1, %s26
      %p476 = scmp.lt.s32.totalorder %s26, 5
      %p477 = pnand %p475, %p476
      %p478 = pneg %p477
      // Predicated region
      $region77: #{tpu_custom_call.1} parent=5 // pred_check
        _
      $region78: #{tpu_custom_call.1} parent=5 // pred_check_branch
        %480 = sbr.rel (%p477) target = $region80
      $region79: #{tpu_custom_call.1} parent=5 // pred_region
        %s481 = ssub.s32 %s26, 1
        // Predicated region
        $region81: #{tpu_custom_call.1} parent=79 // pred_check
          %p482 = pneg %p85
        $region82: #{tpu_custom_call.1} parent=79 // pred_check_branch
          %484 = sbr.rel (%p482) target = $region84
        $region83: #{tpu_custom_call.1} parent=79 // pred_region
          %486 = dma.done [#allocation7], 16
        $region84: #{tpu_custom_call.1} parent=79 // pred_fallthru
          _
        // Predicated region
        $region85: #{tpu_custom_call.1} parent=79 // pred_check
          %p487 = pneg %p295
        $region86: #{tpu_custom_call.1} parent=79 // pred_check_branch
          %489 = sbr.rel (%p487) target = $region88
        $region87: #{tpu_custom_call.1} parent=79 // pred_region
          %491 = dma.done [#allocation10], 256
        $region88: #{tpu_custom_call.1} parent=79 // pred_fallthru
          _
        %p492 = scmp.lt.s32.totalorder %s35, 1
        %s493 = scalar_select %p492, %s35, 1
        %s494 = smul.addr %s493, 2
        %s495 = smul.addr %s494, 8
        %s496 = scalar_lea.vmem %s0, %s495
        %p497 = pneg %p64
        %p498 = pneg %p61
        %p499 = pneg %p85
        %p500 = pneg %p82
        %p501 = pneg %p106
        %p502 = pneg %p103
        %p503 = pneg %p127
        %p504 = pneg %p124
        %p505 = pneg %p148
        %p506 = pneg %p145
        %p507 = pneg %p169
        %p508 = pneg %p166
        %p509 = pneg %p190
        %p510 = pneg %p187
        %p511 = pneg %p211
        %p512 = pneg %p208
        %p513 = pneg %p232
        %p514 = pneg %p229
        %p515 = pneg %p253
        %p516 = pneg %p250
        %p517 = pneg %p274
        %p518 = pneg %p271
        %p519 = pneg %p295
        %p520 = pneg %p292
        %p521 = pneg %p316
        %p522 = pneg %p313
        %p523 = pneg %p337
        %p524 = pneg %p334
        %p525 = pneg %p358
        %p526 = pneg %p355
        %p527 = pneg %p386
        %p528 = pneg %p383
        %s529 = sand.u32 %s373, 1
        %s530 = scalar_lea.sflag [#allocation8], %s529
        %s531 = sand.u32 %s373, 1
        %s532 = smul.addr %s531, 8
        %s533 = scalar_lea.vmem [#allocation11], %s532
        %p534 = scmp.lt.s32.totalorder %s35, 1
        %s535 = scalar_select %p534, %s35, 1
        %s536 = smul.addr %s535, 2
        %s537 = smul.addr %s536, 8
        %s538 = scalar_lea.vmem %s0, %s537
        %p540 = scmp.eq.s32.totalorder %s36, 0
        // Predicated region
        $region89: #{tpu_custom_call.1} parent=79 // pred_check
          %p541 = pneg %p540
        $region90: #{tpu_custom_call.1} parent=79 // pred_check_branch
          %543 = sbr.rel (%p541) target = $region92
        $region91: #{tpu_custom_call.1} parent=79 // pred_region
          %v544 = vld [vmem:[%s538] sm:$0xff]
          %v545 = vld [vmem:[%s538 + $0x8] sm:$0xff]
          %v546 = vld [vmem:[#allocation6] sm:$0x1]
          %v547 = vld [vmem:[%s2] sm:$0x1]
          %vm548 = vcmask 261120
          %v549 = vsel %vm548, %v544, 0.0
          %550 = vadd.xlane.f32.xlu0 %v549
          %v551 = vpop.xlane.xlu0 %550
          %v552 = vsel %vm548, %v545, 0.0
          %553 = vadd.xlane.f32.xlu0 %v552
          %v554 = vpop.xlane.xlu0 %553
          %v555 = vmul.f32 %v544, %v544
          %v556 = vmul.f32 %v545, %v545
          %v557 = vsel %vm548, %v555, 0.0
          %558 = vadd.xlane.f32.xlu0 %v557
          %v559 = vpop.xlane.xlu0 %558
          %v560 = vsel %vm548, %v556, 0.0
          %561 = vadd.xlane.f32.xlu0 %v560
          %v562 = vpop.xlane.xlu0 %561
          %v563 = vmul.f32 %v551, 0.03125
          %v564 = vmul.f32 %v554, 0.03125
          %v565 = vmul.f32 %v559, 0.03125
          %v566 = vmul.f32 %v562, 0.03125
          %v567 = vmul.f32 %v563, %v563
          %v568 = vmul.f32 %v564, %v564
          %v569 = vsub.f32 %v565, %v567
          %v570 = vsub.f32 %v566, %v568
          %v571 = vsub.f32 %v544, %v563
          %v572 = vsub.f32 %v545, %v564
          %v573 = vadd.f32 %v569, 1e-05
          %v574 = vadd.f32 %v570, 1e-05
          %v575 = vrsqrt.pop %v573
          %v576 = vmul.f32 %v575, %v573
          %v577 = vmul.f32 %v576, %v575
          %v578 = vmul.f32 0.5, %v577
          %v579 = vsub.f32 1.5, %v578
          %v580 = vmul.f32 %v575, %v579
          %vm581 = vweird.f32 %v573
          %vm582 = vweird.f32 %v575
          %vm583 = vmor %vm581, %vm582
          %v584 = vsel %vm583, %v575, %v580
          %v585 = vrsqrt.pop %v574
          %v586 = vmul.f32 %v585, %v574
          %v587 = vmul.f32 %v586, %v585
          %v588 = vmul.f32 0.5, %v587
          %v589 = vsub.f32 1.5, %v588
          %v590 = vmul.f32 %v585, %v589
          %vm591 = vweird.f32 %v574
          %vm592 = vweird.f32 %v585
          %vm593 = vmor %vm591, %vm592
          %v594 = vsel %vm593, %v585, %v590
          %v595 = vmul.f32 %v571, %v584
          %v596 = vmul.f32 %v572, %v594
          %v598 = vperm.slane %v546, 0
          %v600 = vmul.f32 %v595, %v598
          %v601 = vmul.f32 %v596, %v598
          %v603 = vperm.slane %v547, 0
          %v605 = vadd.f32 %v600, %v603
          %v606 = vadd.f32 %v601, %v603
          %v607 = vpack.c.bf16 %v606, %v605
          %v608 = vld [vmem:[%s5] sm:$0xf]
          %v609 = vld [vmem:[%s5 + $0x4] sm:$0xf]
          %v610 = vld [vmem:[%s5 + $0x8] sm:$0xf]
          %v611 = vld [vmem:[%s5 + $0xc] sm:$0xf]
          %v612 = vld [vmem:[%s6] sm:$0x1]
          %v614 = vperm.slane %v612, 0
          %v620 = vunpack.c.l.b16 %v608
          %v621 = vunpack.c.l.b16 %v609
          %v622 = vunpack.c.l.b16 %v610
          %v623 = vunpack.c.l.b16 %v611
          %v624 = vpack.c.b16 %v621, %v620
          %v625 = vpack.c.b16 %v623, %v622
          %v629 = vsel %vm548, %v607, 0
          %631 = vmatpush.bf16.msra.mxu0 0
          %632 = vmatpush.bf16.msra.mxu0 0
          %633 = vmatpush.bf16.msra.mxu0 0
          %634 = vmatpush.bf16.msra.mxu0 0
          %635 = vmatpush.bf16.msra.mxu0 0
          %636 = vmatpush.bf16.msra.mxu0 0
          %637 = vmatpush.bf16.msra.mxu0 %v625
          %638 = vmatpush.bf16.msra.mxu0 %v624
          %639 = vmatmul.bf16.gmra.mxu0 %v629
          %v640 = vpop.f32.mrf.mxu0
          %v641 = vadd.f32 %v614, %v640
          %v642 = vpop.f32.mrf.mxu0
          %v643 = vadd.f32 %v614, %v642
          %644 = vdwg.mxu0
          %v645 = vpack.c.bf16 %v641, %v641
          %v646 = vpack.c.bf16 %v643, %v643
          %vm647 = vcmask 60416
          %648 = vst.msk [vmem:[#allocation2] sm:$0xf] %vm647, %v645
          %649 = vst.msk [vmem:[#allocation2 + $0x4] sm:$0xf] %vm647, %v646
          %652 = vrot.lane.b32.xlu0 %v645, 96
          %v653 = vpop.permute.xlu0 %652
          %654 = vrot.lane.b32.xlu0 %v646, 96
          %v655 = vpop.permute.xlu0 %654
          %658 = vst.msk [vmem:[#allocation3] sm:$0xf] %vm647, %v653
          %659 = vst.msk [vmem:[#allocation3 + $0x4] sm:$0xf] %vm647, %v655
          %660 = vrot.lane.b32.xlu0 %v645, 120
          %v661 = vpop.permute.xlu0 %660
          %662 = vrot.lane.b32.xlu0 %v646, 120
          %v663 = vpop.permute.xlu0 %662
          %s666 = scalar_lea.vmem [#allocation2], 8
          %667 = vst.msk [vmem:[%s666] sm:$0xf] %vm647, %v661
          %668 = vst.msk [vmem:[%s666 + $0x4] sm:$0xf] %vm647, %v663
          %669 = vrot.lane.b32.xlu0 %v645, 88
          %v670 = vpop.permute.xlu0 %669
          %671 = vrot.lane.b32.xlu0 %v646, 88
          %v672 = vpop.permute.xlu0 %671
          %s675 = scalar_lea.vmem [#allocation3], 8
          %676 = vst.msk [vmem:[%s675] sm:$0xf] %vm647, %v670
          %677 = vst.msk [vmem:[%s675 + $0x4] sm:$0xf] %vm647, %v672
          %678 = vrot.lane.b32.xlu0 %v645, 112
          %v679 = vpop.permute.xlu0 %678
          %680 = vrot.lane.b32.xlu0 %v646, 112
          %v681 = vpop.permute.xlu0 %680
          %s684 = scalar_lea.vmem [#allocation2], 16
          %685 = vst.msk [vmem:[%s684] sm:$0xf] %vm647, %v679
          %686 = vst.msk [vmem:[%s684 + $0x4] sm:$0xf] %vm647, %v681
          %687 = vrot.lane.b32.xlu0 %v645, 80
          %v688 = vpop.permute.xlu0 %687
          %689 = vrot.lane.b32.xlu0 %v646, 80
          %v690 = vpop.permute.xlu0 %689
          %s693 = scalar_lea.vmem [#allocation3], 16
          %694 = vst.msk [vmem:[%s693] sm:$0xf] %vm647, %v688
          %695 = vst.msk [vmem:[%s693 + $0x4] sm:$0xf] %vm647, %v690
          %696 = vrot.lane.b32.xlu0 %v645, 104
          %v697 = vpop.permute.xlu0 %696
          %698 = vrot.lane.b32.xlu0 %v646, 104
          %v699 = vpop.permute.xlu0 %698
          %s702 = scalar_lea.vmem [#allocation2], 24
          %703 = vst.msk [vmem:[%s702] sm:$0xf] %vm647, %v697
          %704 = vst.msk [vmem:[%s702 + $0x4] sm:$0xf] %vm647, %v699
          %705 = vrot.lane.b32.xlu0 %v645, 72
          %v706 = vpop.permute.xlu0 %705
          %707 = vrot.lane.b32.xlu0 %v646, 72
          %v708 = vpop.permute.xlu0 %707
          %s711 = scalar_lea.vmem [#allocation3], 24
          %712 = vst.msk [vmem:[%s711] sm:$0xf] %vm647, %v706
          %713 = vst.msk [vmem:[%s711 + $0x4] sm:$0xf] %vm647, %v708
        $region92: #{tpu_custom_call.1} parent=79 // pred_fallthru
          _
        %s714 = smul.u32 %s36, 8
        %s715 = scalar_lea.vmem %s538, %s714
        %v716 = vld [vmem:[%s715] sm:$0xff]
        %v717 = vld [vmem:[#allocation6] sm:$0x1]
        %v718 = vld [vmem:[%s2] sm:$0x1]
        %vm719 = vcmask 261120
        %v720 = vsel %vm719, %v716, 0.0
        %721 = vadd.xlane.f32.xlu0 %v720
        %v722 = vpop.xlane.xlu0 %721
        %v723 = vmul.f32 %v716, %v716
        %v724 = vsel %vm719, %v723, 0.0
        %725 = vadd.xlane.f32.xlu0 %v724
        %v726 = vpop.xlane.xlu0 %725
        %v727 = vmul.f32 %v722, 0.03125
        %v728 = vmul.f32 %v726, 0.03125
        %v729 = vmul.f32 %v727, %v727
        %v730 = vsub.f32 %v728, %v729
        %v731 = vsub.f32 %v716, %v727
        %v732 = vadd.f32 %v730, 1e-05
        %v733 = vrsqrt.pop %v732
        %v734 = vmul.f32 %v733, %v732
        %v735 = vmul.f32 %v734, %v733
        %v736 = vmul.f32 0.5, %v735
        %v737 = vsub.f32 1.5, %v736
        %v738 = vmul.f32 %v733, %v737
        %vm739 = vweird.f32 %v732
        %vm740 = vweird.f32 %v733
        %vm741 = vmor %vm739, %vm740
        %v742 = vsel %vm741, %v733, %v738
        %v743 = vmul.f32 %v731, %v742
        %v745 = vperm.slane %v717, 0
        %v747 = vmul.f32 %v743, %v745
        %v749 = vperm.slane %v718, 0
        %v751 = vadd.f32 %v747, %v749
        %v752 = vpack.c.bf16 %v751, %v751
        %v753 = vld [vmem:[%s3] sm:$0xf]
        %v754 = vld [vmem:[%s3 + $0x4] sm:$0xf]
        %v755 = vld [vmem:[%s3 + $0x8] sm:$0xf]
        %v756 = vld [vmem:[%s3 + $0xc] sm:$0xf]
        %v757 = vld [vmem:[%s4] sm:$0x1]
        %v759 = vperm.slane %v757, 0
        %v765 = vunpack.c.l.b16 %v753
        %v766 = vunpack.c.l.b16 %v754
        %v767 = vunpack.c.l.b16 %v755
        %v768 = vunpack.c.l.b16 %v756
        %v769 = vpack.c.b16 %v766, %v765
        %v770 = vpack.c.b16 %v768, %v767
        %v774 = vsel %vm719, %v752, 0
        %776 = vmatpush.bf16.msra.mxu0 0
        %777 = vmatpush.bf16.msra.mxu0 0
        %778 = vmatpush.bf16.msra.mxu0 0
        %779 = vmatpush.bf16.msra.mxu0 0
        %780 = vmatpush.bf16.msra.mxu0 0
        %781 = vmatpush.bf16.msra.mxu0 0
        %782 = vmatpush.bf16.msra.mxu0 %v770
        %783 = vmatpush.bf16.msra.mxu0 %v769
        %784 = vmatmul.bf16.gmra.mxu0 %v774
        %v785 = vpop.f32.mrf.mxu0
        %v786 = vadd.f32 %v759, %v785
        %v787 = vpop.f32.mrf.mxu0
        %788 = vdwg.mxu0
        %v789 = vpack.c.bf16 %v786, %v786
        %vm790 = vcmask 60416
        %791 = vst.msk [vmem:[#allocation4] sm:$0xf] %vm790, %v789
        %793 = vrot.lane.b32.xlu0 %v789, 120
        %v794 = vpop.permute.xlu0 %793
        %s796 = scalar_lea.vmem [#allocation4], 4
        %797 = vst.msk [vmem:[%s796] sm:$0xf] %vm790, %v794
        %798 = vrot.lane.b32.xlu0 %v789, 112
        %v799 = vpop.permute.xlu0 %798
        %s801 = scalar_lea.vmem [#allocation4], 8
        %802 = vst.msk [vmem:[%s801] sm:$0xf] %vm790, %v799
        %803 = vrot.lane.b32.xlu0 %v789, 104
        %v804 = vpop.permute.xlu0 %803
        %s806 = scalar_lea.vmem [#allocation4], 12
        %807 = vst.msk [vmem:[%s806] sm:$0xf] %vm790, %v804
        %v808 = vld [vmem:[#allocation4] sm:$0xf]
        %v809 = vld [vmem:[#allocation4 + $0x4] sm:$0xf]
        %v810 = vld [vmem:[#allocation4 + $0x8] sm:$0xf]
        %v811 = vld [vmem:[#allocation4 + $0xc] sm:$0xf]
        %v812 = vld [vmem:[#allocation2] sm:$0xf]
        %v813 = vld [vmem:[#allocation2 + $0x4] sm:$0xf]
        %v814 = vld [vmem:[#allocation2 + $0x8] sm:$0xf]
        %v815 = vld [vmem:[#allocation2 + $0xc] sm:$0xf]
        %v816 = vld [vmem:[#allocation2 + $0x10] sm:$0xf]
        %v817 = vld [vmem:[#allocation2 + $0x14] sm:$0xf]
        %v818 = vld [vmem:[#allocation2 + $0x18] sm:$0xf]
        %v819 = vld [vmem:[#allocation2 + $0x1c] sm:$0xf]
        %v822 = vunpack.c.l.b16 %v812
        %v823 = vunpack.c.l.b16 %v813
        %v824 = vpack.c.b16 %v823, %v822
        %vm825 = vcmask 64512
        %v827 = vsel %vm825, %v808, 0
        %v830 = vsel %vm825, %v824, 0
        %832 = vmatpush.bf16.xpose.msra.mxu0 0
        %833 = vmatpush.bf16.xpose.msra.mxu0 0
        %834 = vmatpush.bf16.xpose.msra.mxu0 0
        %835 = vmatpush.bf16.xpose.msra.mxu0 0
        %836 = vmatpush.bf16.xpose.msra.mxu0 0
        %837 = vmatpush.bf16.xpose.msra.mxu0 0
        %838 = vmatpush.bf16.xpose.msra.mxu0 0
        %839 = vmatpush.bf16.xpose.msra.mxu0 %v830
        %840 = vmatmul.bf16.gmra.mxu0 %v827
        %v841 = vpop.f32.mrf.mxu0
        %v842 = vadd.f32 0.0, %v841
        %v843 = vpop.f32.mrf.mxu0
        %844 = vdwg.mxu0
        %v847 = vunpack.c.l.b16 %v814
        %v848 = vunpack.c.l.b16 %v815
        %v849 = vpack.c.b16 %v848, %v847
        %v851 = vsel %vm825, %v809, 0
        %v854 = vsel %vm825, %v849, 0
        %856 = vmatpush.bf16.xpose.msra.mxu0 0
        %857 = vmatpush.bf16.xpose.msra.mxu0 0
        %858 = vmatpush.bf16.xpose.msra.mxu0 0
        %859 = vmatpush.bf16.xpose.msra.mxu0 0
        %860 = vmatpush.bf16.xpose.msra.mxu0 0
        %861 = vmatpush.bf16.xpose.msra.mxu0 0
        %862 = vmatpush.bf16.xpose.msra.mxu0 0
        %863 = vmatpush.bf16.xpose.msra.mxu0 %v854
        %864 = vmatmul.bf16.gmra.mxu0 %v851
        %v865 = vpop.f32.mrf.mxu0
        %v866 = vadd.f32 0.0, %v865
        %v867 = vpop.f32.mrf.mxu0
        %868 = vdwg.mxu0
        %v871 = vunpack.c.l.b16 %v816
        %v872 = vunpack.c.l.b16 %v817
        %v873 = vpack.c.b16 %v872, %v871
        %v875 = vsel %vm825, %v810, 0
        %v878 = vsel %vm825, %v873, 0
        %880 = vmatpush.bf16.xpose.msra.mxu0 0
        %881 = vmatpush.bf16.xpose.msra.mxu0 0
        %882 = vmatpush.bf16.xpose.msra.mxu0 0
        %883 = vmatpush.bf16.xpose.msra.mxu0 0
        %884 = vmatpush.bf16.xpose.msra.mxu0 0
        %885 = vmatpush.bf16.xpose.msra.mxu0 0
        %886 = vmatpush.bf16.xpose.msra.mxu0 0
        %887 = vmatpush.bf16.xpose.msra.mxu0 %v878
        %888 = vmatmul.bf16.gmra.mxu0 %v875
        %v889 = vpop.f32.mrf.mxu0
        %v890 = vadd.f32 0.0, %v889
        %v891 = vpop.f32.mrf.mxu0
        %892 = vdwg.mxu0
        %v895 = vunpack.c.l.b16 %v818
        %v896 = vunpack.c.l.b16 %v819
        %v897 = vpack.c.b16 %v896, %v895
        %v899 = vsel %vm825, %v811, 0
        %v902 = vsel %vm825, %v897, 0
        %904 = vmatpush.bf16.xpose.msra.mxu0 0
        %905 = vmatpush.bf16.xpose.msra.mxu0 0
        %906 = vmatpush.bf16.xpose.msra.mxu0 0
        %907 = vmatpush.bf16.xpose.msra.mxu0 0
        %908 = vmatpush.bf16.xpose.msra.mxu0 0
        %909 = vmatpush.bf16.xpose.msra.mxu0 0
        %910 = vmatpush.bf16.xpose.msra.mxu0 0
        %911 = vmatpush.bf16.xpose.msra.mxu0 %v902
        %912 = vmatmul.bf16.gmra.mxu0 %v899
        %v913 = vpop.f32.mrf.mxu0
        %v914 = vadd.f32 0.0, %v913
        %v915 = vpop.f32.mrf.mxu0
        %916 = vdwg.mxu0
        %vm917 = vcmask 130048
        %v918 = vsel %vm917, %v842, -inf
        %919 = vmax.xlane.f32.xlu0 %v918
        %v920 = vpop.xlane.xlu0 %919
        %v921 = vsel %vm917, %v866, -inf
        %922 = vmax.xlane.f32.xlu0 %v921
        %v923 = vpop.xlane.xlu0 %922
        %v924 = vsel %vm917, %v890, -inf
        %925 = vmax.xlane.f32.xlu0 %v924
        %v926 = vpop.xlane.xlu0 %925
        %v927 = vsel %vm917, %v914, -inf
        %928 = vmax.xlane.f32.xlu0 %v927
        %v929 = vpop.xlane.xlu0 %928
        %v930 = vsub.f32 %v842, %v920
        %v931 = vsub.f32 %v866, %v923
        %v932 = vsub.f32 %v890, %v926
        %v933 = vsub.f32 %v914, %v929
        %v934 = vmul.f32 %v930, 1.442695
        %v935 = vpow.pop %v934
        %v936 = vmul.f32 %v931, 1.442695
        %v937 = vpow.pop %v936
        %v938 = vmul.f32 %v932, 1.442695
        %v939 = vpow.pop %v938
        %v940 = vmul.f32 %v933, 1.442695
        %v941 = vpow.pop %v940
        %v942 = vsel %vm917, %v935, 0.0
        %943 = vadd.xlane.f32.xlu0 %v942
        %v944 = vpop.xlane.xlu0 %943
        %v945 = vsel %vm917, %v937, 0.0
        %946 = vadd.xlane.f32.xlu0 %v945
        %v947 = vpop.xlane.xlu0 %946
        %v948 = vsel %vm917, %v939, 0.0
        %949 = vadd.xlane.f32.xlu0 %v948
        %v950 = vpop.xlane.xlu0 %949
        %v951 = vsel %vm917, %v941, 0.0
        %952 = vadd.xlane.f32.xlu0 %v951
        %v953 = vpop.xlane.xlu0 %952
        %v954 = vpack.c.bf16 %v935, %v935
        %v955 = vpack.c.bf16 %v937, %v937
        %v956 = vpack.c.bf16 %v939, %v939
        %v957 = vpack.c.bf16 %v941, %v941
        %v958 = vld [vmem:[#allocation3] sm:$0xf]
        %v959 = vld [vmem:[#allocation3 + $0x4] sm:$0xf]
        %v960 = vld [vmem:[#allocation3 + $0x8] sm:$0xf]
        %v961 = vld [vmem:[#allocation3 + $0xc] sm:$0xf]
        %v962 = vld [vmem:[#allocation3 + $0x10] sm:$0xf]
        %v963 = vld [vmem:[#allocation3 + $0x14] sm:$0xf]
        %v964 = vld [vmem:[#allocation3 + $0x18] sm:$0xf]
        %v965 = vld [vmem:[#allocation3 + $0x1c] sm:$0xf]
        %v968 = vunpack.c.l.b16 %v958
        %v969 = vunpack.c.l.b16 %v959
        %v970 = vpack.c.b16 %v969, %v968
        %v973 = vsel %vm917, %v954, 0
        %975 = vmatpush.bf16.msra.mxu0 0
        %976 = vmatpush.bf16.msra.mxu0 0
        %977 = vmatpush.bf16.msra.mxu0 0
        %978 = vmatpush.bf16.msra.mxu0 0
        %979 = vmatpush.bf16.msra.mxu0 0
        %980 = vmatpush.bf16.msra.mxu0 0
        %981 = vmatpush.bf16.msra.mxu0 0
        %982 = vmatpush.bf16.msra.mxu0 %v970
        %983 = vmatmul.bf16.gmra.mxu0 %v973
        %v984 = vpop.f32.mrf.mxu0
        %v985 = vadd.f32 0.0, %v984
        %v986 = vpop.f32.mrf.mxu0
        %987 = vdwg.mxu0
        %v990 = vunpack.c.l.b16 %v960
        %v991 = vunpack.c.l.b16 %v961
        %v992 = vpack.c.b16 %v991, %v990
        %v995 = vsel %vm917, %v955, 0
        %997 = vmatpush.bf16.msra.mxu0 0
        %998 = vmatpush.bf16.msra.mxu0 0
        %999 = vmatpush.bf16.msra.mxu0 0
        %1000 = vmatpush.bf16.msra.mxu0 0
        %1001 = vmatpush.bf16.msra.mxu0 0
        %1002 = vmatpush.bf16.msra.mxu0 0
        %1003 = vmatpush.bf16.msra.mxu0 0
        %1004 = vmatpush.bf16.msra.mxu0 %v992
        %1005 = vmatmul.bf16.gmra.mxu0 %v995
        %v1006 = vpop.f32.mrf.mxu0
        %v1007 = vadd.f32 0.0, %v1006
        %v1008 = vpop.f32.mrf.mxu0
        %1009 = vdwg.mxu0
        %v1012 = vunpack.c.l.b16 %v962
        %v1013 = vunpack.c.l.b16 %v963
        %v1014 = vpack.c.b16 %v1013, %v1012
        %v1017 = vsel %vm917, %v956, 0
        %1019 = vmatpush.bf16.msra.mxu0 0
        %1020 = vmatpush.bf16.msra.mxu0 0
        %1021 = vmatpush.bf16.msra.mxu0 0
        %1022 = vmatpush.bf16.msra.mxu0 0
        %1023 = vmatpush.bf16.msra.mxu0 0
        %1024 = vmatpush.bf16.msra.mxu0 0
        %1025 = vmatpush.bf16.msra.mxu0 0
        %1026 = vmatpush.bf16.msra.mxu0 %v1014
        %1027 = vmatmul.bf16.gmra.mxu0 %v1017
        %v1028 = vpop.f32.mrf.mxu0
        %v1029 = vadd.f32 0.0, %v1028
        %v1030 = vpop.f32.mrf.mxu0
        %1031 = vdwg.mxu0
        %v1034 = vunpack.c.l.b16 %v964
        %v1035 = vunpack.c.l.b16 %v965
        %v1036 = vpack.c.b16 %v1035, %v1034
        %v1039 = vsel %vm917, %v957, 0
        %1041 = vmatpush.bf16.msra.mxu0 0
        %1042 = vmatpush.bf16.msra.mxu0 0
        %1043 = vmatpush.bf16.msra.mxu0 0
        %1044 = vmatpush.bf16.msra.mxu0 0
        %1045 = vmatpush.bf16.msra.mxu0 0
        %1046 = vmatpush.bf16.msra.mxu0 0
        %1047 = vmatpush.bf16.msra.mxu0 0
        %1048 = vmatpush.bf16.msra.mxu0 %v1036
        %1049 = vmatmul.bf16.gmra.mxu0 %v1039
        %v1050 = vpop.f32.mrf.mxu0
        %v1051 = vadd.f32 0.0, %v1050
        %v1052 = vpop.f32.mrf.mxu0
        %1053 = vdwg.mxu0
        %v1054 = vrcp.pop %v944
        %v1055 = vrcp.pop %v947
        %v1056 = vrcp.pop %v950
        %v1057 = vrcp.pop %v953
        %v1058 = vmul.f32 %v985, %v1054
        %v1059 = vmul.f32 %v1007, %v1055
        %v1060 = vmul.f32 %v1029, %v1056
        %v1061 = vmul.f32 %v1051, %v1057
        %v1062 = vpack.c.bf16 %v1058, %v1058
        %v1063 = vpack.c.bf16 %v1059, %v1059
        %v1064 = vpack.c.bf16 %v1060, %v1060
        %v1065 = vpack.c.bf16 %v1061, %v1061
        %1066 = vst.msk [vmem:[#allocation5] sm:$0xf] %vm790, %v1062
        %1068 = vrot.lane.b32.xlu0 %v1063, 8
        %v1069 = vpop.permute.xlu0 %1068
        %vm1071 = vcmask 126016
        %1072 = vst.msk [vmem:[#allocation5] sm:$0xf] %vm1071, %v1069
        %1074 = vrot.lane.b32.xlu0 %v1064, 16
        %v1075 = vpop.permute.xlu0 %1074
        %vm1077 = vcmask 191616
        %1078 = vst.msk [vmem:[#allocation5] sm:$0xf] %vm1077, %v1075
        %1080 = vrot.lane.b32.xlu0 %v1065, 24
        %v1081 = vpop.permute.xlu0 %1080
        %vm1083 = vcmask 257216
        %1084 = vst.msk [vmem:[#allocation5] sm:$0xf] %vm1083, %v1081
        %v1085 = vld [vmem:[#allocation5] sm:$0xf]
        %v1086 = vld [vmem:[%s7] sm:$0xf]
        %v1087 = vld [vmem:[%s7 + $0x4] sm:$0xf]
        %v1088 = vld [vmem:[%s7 + $0x8] sm:$0xf]
        %v1089 = vld [vmem:[%s7 + $0xc] sm:$0xf]
        %v1090 = vld [vmem:[%s8] sm:$0x1]
        %v1092 = vperm.slane %v1090, 0
        %v1098 = vunpack.c.l.b16 %v1086
        %v1099 = vunpack.c.l.b16 %v1087
        %v1100 = vunpack.c.l.b16 %v1088
        %v1101 = vunpack.c.l.b16 %v1089
        %v1102 = vpack.c.b16 %v1099, %v1098
        %v1103 = vpack.c.b16 %v1101, %v1100
        %v1107 = vsel %vm719, %v1085, 0
        %1109 = vmatpush.bf16.msra.mxu0 0
        %1110 = vmatpush.bf16.msra.mxu0 0
        %1111 = vmatpush.bf16.msra.mxu0 0
        %1112 = vmatpush.bf16.msra.mxu0 0
        %1113 = vmatpush.bf16.msra.mxu0 0
        %1114 = vmatpush.bf16.msra.mxu0 0
        %1115 = vmatpush.bf16.msra.mxu0 %v1103
        %1116 = vmatpush.bf16.msra.mxu0 %v1102
        %1117 = vmatmul.bf16.gmra.mxu0 %v1107
        %v1118 = vpop.f32.mrf.mxu0
        %v1119 = vadd.f32 %v1092, %v1118
        %v1120 = vpop.f32.mrf.mxu0
        %1121 = vdwg.mxu0
        %v1122 = vadd.f32 %v716, %v1119
        %v1123 = vld [vmem:[%s9] sm:$0x1]
        %v1124 = vld [vmem:[%s10] sm:$0x1]
        %v1125 = vsel %vm719, %v1122, 0.0
        %1126 = vadd.xlane.f32.xlu0 %v1125
        %v1127 = vpop.xlane.xlu0 %1126
        %v1128 = vmul.f32 %v1122, %v1122
        %v1129 = vsel %vm719, %v1128, 0.0
        %1130 = vadd.xlane.f32.xlu0 %v1129
        %v1131 = vpop.xlane.xlu0 %1130
        %v1132 = vmul.f32 %v1127, 0.03125
        %v1133 = vmul.f32 %v1131, 0.03125
        %v1134 = vmul.f32 %v1132, %v1132
        %v1135 = vsub.f32 %v1133, %v1134
        %v1136 = vsub.f32 %v1122, %v1132
        %v1137 = vadd.f32 %v1135, 1e-05
        %v1138 = vrsqrt.pop %v1137
        %v1139 = vmul.f32 %v1138, %v1137
        %v1140 = vmul.f32 %v1139, %v1138
        %v1141 = vmul.f32 0.5, %v1140
        %v1142 = vsub.f32 1.5, %v1141
        %v1143 = vmul.f32 %v1138, %v1142
        %vm1144 = vweird.f32 %v1137
        %vm1145 = vweird.f32 %v1138
        %vm1146 = vmor %vm1144, %vm1145
        %v1147 = vsel %vm1146, %v1138, %v1143
        %v1148 = vmul.f32 %v1136, %v1147
        %v1150 = vperm.slane %v1123, 0
        %v1152 = vmul.f32 %v1148, %v1150
        %v1154 = vperm.slane %v1124, 0
        %v1156 = vadd.f32 %v1152, %v1154
        %v1157 = vpack.c.bf16 %v1156, %v1156
        %v1158 = vld [vmem:[#allocation9] sm:$0xf]
        %v1159 = vld [vmem:[#allocation9 + $0x4] sm:$0xf]
        %v1160 = vld [vmem:[#allocation9 + $0x8] sm:$0xf]
        %v1161 = vld [vmem:[#allocation9 + $0xc] sm:$0xf]
        %v1162 = vld [vmem:[%s12] sm:$0x1]
        %v1164 = vperm.slane %v1162, 0
        %v1170 = vunpack.c.l.b16 %v1158
        %v1171 = vunpack.c.l.b16 %v1159
        %v1172 = vunpack.c.l.b16 %v1160
        %v1173 = vunpack.c.l.b16 %v1161
        %v1174 = vpack.c.b16 %v1171, %v1170
        %v1175 = vpack.c.b16 %v1173, %v1172
        %v1179 = vsel %vm719, %v1157, 0
        %1181 = vmatpush.bf16.msra.mxu0 0
        %1182 = vmatpush.bf16.msra.mxu0 0
        %1183 = vmatpush.bf16.msra.mxu0 0
        %1184 = vmatpush.bf16.msra.mxu0 0
        %1185 = vmatpush.bf16.msra.mxu0 0
        %1186 = vmatpush.bf16.msra.mxu0 0
        %1187 = vmatpush.bf16.msra.mxu0 %v1175
        %1188 = vmatpush.bf16.msra.mxu0 %v1174
        %1189 = vmatmul.bf16.gmra.mxu0 %v1179
        %v1190 = vpop.f32.mrf.mxu0
        %v1191 = vadd.f32 %v1164, %v1190
        %v1192 = vpop.f32.mrf.mxu0
        %1193 = vdwg.mxu0
        %v1194 = vmul.f32 %v1191, %v1191
        %v1195 = vmul.f32 %v1191, %v1194
        %v1196 = vmul.f32 %v1195, 0.044715
        %v1197 = vadd.f32 %v1191, %v1196
        %v1198 = vmul.f32 %v1197, 0.7978846
        %v1199 = vtanh.pop %v1198
        %v1200 = vadd.f32 %v1199, 1.0
        %v1201 = vmul.f32 %v1200, 0.5
        %v1202 = vmul.f32 %v1191, %v1201
        %v1203 = vpack.c.bf16 %v1202, %v1202
        %v1204 = vld [vmem:[%s13] sm:$0xf]
        %v1205 = vld [vmem:[%s13 + $0x4] sm:$0xf]
        %v1206 = vld [vmem:[%s13 + $0x8] sm:$0xf]
        %v1207 = vld [vmem:[%s13 + $0xc] sm:$0xf]
        %v1208 = vld [vmem:[%s13 + $0x10] sm:$0xf]
        %v1209 = vld [vmem:[%s13 + $0x14] sm:$0xf]
        %v1210 = vld [vmem:[%s13 + $0x18] sm:$0xf]
        %v1211 = vld [vmem:[%s13 + $0x1c] sm:$0xf]
        %v1212 = vld [vmem:[%s13 + $0x20] sm:$0xf]
        %v1213 = vld [vmem:[%s13 + $0x24] sm:$0xf]
        %v1214 = vld [vmem:[%s13 + $0x28] sm:$0xf]
        %v1215 = vld [vmem:[%s13 + $0x2c] sm:$0xf]
        %v1216 = vld [vmem:[%s13 + $0x30] sm:$0xf]
        %v1217 = vld [vmem:[%s13 + $0x34] sm:$0xf]
        %v1218 = vld [vmem:[%s13 + $0x38] sm:$0xf]
        %v1219 = vld [vmem:[%s13 + $0x3c] sm:$0xf]
        %v1220 = vld [vmem:[%s14] sm:$0x1]
        %v1222 = vperm.slane %v1220, 0
        %v1240 = vunpack.c.l.b16 %v1204
        %v1241 = vunpack.c.l.b16 %v1205
        %v1242 = vunpack.c.l.b16 %v1206
        %v1243 = vunpack.c.l.b16 %v1207
        %v1244 = vunpack.c.l.b16 %v1208
        %v1245 = vunpack.c.l.b16 %v1209
        %v1246 = vunpack.c.l.b16 %v1210
        %v1247 = vunpack.c.l.b16 %v1211
        %v1248 = vunpack.c.l.b16 %v1212
        %v1249 = vunpack.c.l.b16 %v1213
        %v1250 = vunpack.c.l.b16 %v1214
        %v1251 = vunpack.c.l.b16 %v1215
        %v1252 = vunpack.c.l.b16 %v1216
        %v1253 = vunpack.c.l.b16 %v1217
        %v1254 = vunpack.c.l.b16 %v1218
        %v1255 = vunpack.c.l.b16 %v1219
        %v1256 = vpack.c.b16 %v1241, %v1240
        %v1257 = vpack.c.b16 %v1243, %v1242
        %v1258 = vpack.c.b16 %v1245, %v1244
        %v1259 = vpack.c.b16 %v1247, %v1246
        %v1260 = vpack.c.b16 %v1249, %v1248
        %v1261 = vpack.c.b16 %v1251, %v1250
        %v1262 = vpack.c.b16 %v1253, %v1252
        %v1263 = vpack.c.b16 %v1255, %v1254
        %1272 = vmatpush.bf16.msra.mxu0 %v1263
        %1273 = vmatpush.bf16.msra.mxu0 %v1262
        %1274 = vmatpush.bf16.msra.mxu0 %v1261
        %1275 = vmatpush.bf16.msra.mxu0 %v1260
        %1276 = vmatpush.bf16.msra.mxu0 %v1259
        %1277 = vmatpush.bf16.msra.mxu0 %v1258
        %1278 = vmatpush.bf16.msra.mxu0 %v1257
        %1279 = vmatpush.bf16.msra.mxu0 %v1256
        %1280 = vmatmul.bf16.gmra.mxu0 %v1203
        %v1281 = vpop.f32.mrf.mxu0
        %v1282 = vadd.f32 %v1222, %v1281
        %v1283 = vpop.f32.mrf.mxu0
        %1284 = vdwg.mxu0
        %v1285 = vadd.f32 %v1122, %v1282
        %1286 = vst.msk [vmem:[%s533] sm:$0xff] %vm719, %v1285
        %s1287 = sand.u32 %s373, 1
        %s1288 = scalar_lea.sflag [#allocation8], %s1287
        %s1289 = sand.u32 %s373, 1
        %s1290 = smul.addr %s1289, 8
        %s1291 = scalar_lea.vmem [#allocation11], %s1290
        // Predicated region
        $region93: #{tpu_custom_call.1} parent=79 // pred_check
          %p1292 = pneg %p383
        $region94: #{tpu_custom_call.1} parent=79 // pred_check_branch
          %1294 = sbr.rel (%p1292) target = $region96
        $region95: #{tpu_custom_call.1} parent=79 // pred_region
          %1296 = vsyncadd %s1288, 0
          %s1297 = smul.addr %s35, 2
          %s1298 = sadd.s32 %s36, %s1297
          %s1299 = smul.addr %s1298, 8
          %s1300 = scalar_lea.hbm %s15, %s1299
          %s1302 = sshll.u32 %s1291, 4
          %s1303 = int_to_ptr.vmem [resolvable:$true] %s1302
          %s1304 = sshll.u32 %s1300, 4
          %s1305 = int_to_ptr.hbm [resolvable:$true] %s1304
          %1307 = dma.vmem_to_hbm [thread:$0]  %s1303, 128, %s1305, %s1288
        $region96: #{tpu_custom_call.1} parent=79 // pred_fallthru
          _
      $region80: #{tpu_custom_call.1} parent=5 // pred_fallthru
        _
      %p1308 = scmp.le.s32.totalorder 2, %s26
      // Predicated region
      $region97: #{tpu_custom_call.1} parent=5 // pred_check
        %p1309 = pneg %p1308
      $region98: #{tpu_custom_call.1} parent=5 // pred_check_branch
        %1311 = sbr.rel (%p1309) target = $region100
      $region99: #{tpu_custom_call.1} parent=5 // pred_region
        %s1312 = ssub.s32 %s26, 2
        // Predicated region
        $region101: #{tpu_custom_call.1} parent=99 // pred_check
          %p1313 = pneg %p389
        $region102: #{tpu_custom_call.1} parent=99 // pred_check_branch
          %1315 = sbr.rel (%p1313) target = $region104
        $region103: #{tpu_custom_call.1} parent=99 // pred_region
          %s1316 = sand.u32 %s374, 1
          %s1317 = scalar_lea.sflag [#allocation8], %s1316
          %s1318 = sand.u32 %s374, 1
          %s1319 = smul.addr %s1318, 8
          %s1320 = scalar_lea.vmem [#allocation11], %s1319
          %1322 = dma.done %s1317, 128
        $region104: #{tpu_custom_call.1} parent=99 // pred_fallthru
          _
      $region100: #{tpu_custom_call.1} parent=5 // pred_fallthru
        _
    $region6: #{tpu_custom_call.1} parent=1 // loop_footer
      %s30 = sadd.s32 1, %s26
    $region7: #{tpu_custom_call.1} parent=1 // loop_footer_branch
      %25 = sbr.rel target = $region3
    $region8: #{tpu_custom_call.1} parent=1 // loop_exit
      _
    %1323 = vsyncpa [#allocation7], 1
    %s1324 = scalar_lea.sflag [#allocation7], 1
    %1325 = vsyncpa %s1324, 1
    %1326 = vsyncpa [#allocation10], 1
    %1327 = vsyncpa [#allocation8], 1
    %s1328 = scalar_lea.sflag [#allocation8], 1
    %1329 = vsyncpa %s1328, 1

</llo_original>
